<compile_context>
chip_gen: v7x
topology: tpu7x:2x2x1
jax: 0.10.0
libtpu: 0.0.40
codegen_flags: <defaults>
</compile_context>

<pallas_src>
import functools

import jax
import jax.numpy as jnp
from jax.experimental import pallas as pl
from jax.experimental.pallas import tpu as pltpu

# TODO(synk): BatchNorm is folded in eval mode (running stats); PyTorch's
# default train-mode block uses batch statistics.
# TODO(synk): for large images, tile the grid over (batch, row-blocks) with a
# 1-row halo (manual DMA) instead of one whole image per grid step, to bound
# VMEM and feed both v7x TensorCores.
# TODO(synk): the weight/scale/bias blocks are grid-invariant; under VMEM
# pressure single-buffer them via pipeline_mode=pl.Buffered(1).

_LANE = 128   # channel padding target (lane width)
_LPAD = 8     # left halo offset in the padded conv1 buffer (keeps the staging
              # store aligned to the f32 (8,128) tiling)


def _round_up(v, m):
    return ((v + m - 1) // m) * m


# ------------------------------ Pallas kernel ------------------------------ #
def _bottleneck_kernel(x_ref, w1_ref, s1_ref, b1_ref,
                       w2_ref, s2_ref, b2_ref,
                       w3_ref, s3_ref, b3_ref,
                       o_ref, a1p_ref):
    H, W, Cp = x_ref.shape[1], x_ref.shape[2], x_ref.shape[3]
    Mp = w1_ref.shape[1]
    Op = w3_ref.shape[1]

    x = x_ref[0]                                   # (H, W, Cp)  f32
    x2d = x.reshape(H * W, Cp)

    # ---- conv1 (1x1) + bn1 + relu : bf16 MXU matmul, f32 epilogue ----
    acc1 = jnp.dot(x2d.astype(jnp.bfloat16), w1_ref[...],
                   preferred_element_type=jnp.float32)
    a1 = jnp.maximum(acc1 * s1_ref[...] + b1_ref[...], 0.0)

    # Stage conv1 output into a zero-padded VMEM buffer: rows [1, H+1),
    # columns [_LPAD, _LPAD+W) -> a 1-pixel zero halo around the image while
    # keeping the staging store sublane-aligned.
    a1p_ref[...] = jnp.zeros_like(a1p_ref)
    a1p_ref[1:H + 1, _LPAD:_LPAD + W, :] = a1.reshape(H, W, Mp)

    # ---- conv2 (3x3, stride=1, pad=1) as 9 shifted matmuls, f32 accumulator --
    acc2 = jnp.zeros((H * W, Mp), jnp.float32)
    for dy in range(3):
        for dx in range(3):
            c0 = _LPAD - 1 + dx
            patch = a1p_ref[dy:dy + H, c0:c0 + W, :]           # (H, W, Mp)
            acc2 = acc2 + jnp.dot(
                patch.reshape(H * W, Mp).astype(jnp.bfloat16),
                w2_ref[dy * 3 + dx],
                preferred_element_type=jnp.float32)
    a2 = jnp.maximum(acc2 * s2_ref[...] + b2_ref[...], 0.0)

    # ---- conv3 (1x1) + bn3 + identity residual + relu ----
    acc3 = jnp.dot(a2.astype(jnp.bfloat16), w3_ref[...],
                   preferred_element_type=jnp.float32)
    y = jnp.maximum(acc3 * s3_ref[...] + b3_ref[...] + x2d, 0.0)
    o_ref[0] = y.reshape(H, W, Op).astype(o_ref.dtype)


# ------------------------------ JAX wrapper -------------------------------- #
def _fold_bn(gamma, beta, mean, var, eps=1e-5, pad_to=None):
    scale = gamma / jnp.sqrt(var + eps)
    bias = beta - mean * scale
    if pad_to is not None:
        pad = pad_to - scale.shape[0]
        scale = jnp.pad(scale, (0, pad))
        bias = jnp.pad(bias, (0, pad))
    return scale.reshape(1, -1), bias.reshape(1, -1)


@functools.partial(jax.jit, static_argnames=("stride",))
def bottleneck_forward(x_nchw, params, stride=1):
    if stride != 1:
        # TODO(synk): stride>1 / downsample branch not implemented; with
        # downsample=None the module is only valid for stride=1 anyway.
        raise NotImplementedError("fused kernel supports stride=1, downsample=None")

    # NCHW (PyTorch) -> NHWC so channels sit on lanes. In a full NHWC network
    # these boundary transposes would disappear.
    x = jnp.transpose(x_nchw, (0, 2, 3, 1)).astype(jnp.float32)
    N, H, W, Cin = x.shape
    c_mid = params["w1"].shape[0]
    c_out = params["w3"].shape[0]
    if Cin != c_out:
        raise NotImplementedError(
            "identity residual requires in_channels == out_channels * expansion")

    Cp = _round_up(Cin, _LANE)      # padded in/out channels (Cin == c_out)
    Mp = _round_up(c_mid, _LANE)    # padded mid channels

    # Zero-pad channels so all matmul/store tiles are lane-dense (128-aligned).
    x_p = jnp.pad(x, ((0, 0), (0, 0), (0, 0), (0, Cp - Cin)))

    # Weights -> matmul layout, zero-padded, bf16 for the MXU.
    w1 = params["w1"].reshape(c_mid, Cin).T                         # (Cin, Cmid)
    w1 = jnp.pad(w1, ((0, Cp - Cin), (0, Mp - c_mid))).astype(jnp.bfloat16)
    w2 = jnp.transpose(params["w2"], (2, 3, 1, 0))                  # (3,3,cin,cout)
    w2 = jnp.pad(w2, ((0, 0), (0, 0), (0, Mp - c_mid), (0, Mp - c_mid)))
    w2 = w2.reshape(9, Mp, Mp).astype(jnp.bfloat16)
    w3 = params["w3"].reshape(c_out, c_mid).T                       # (Cmid, Cout)
    w3 = jnp.pad(w3, ((0, Mp - c_mid), (0, Cp - c_out))).astype(jnp.bfloat16)

    s1, b1 = _fold_bn(params["gamma1"], params["beta1"],
                      params["mean1"], params["var1"], pad_to=Mp)
    s2, b2 = _fold_bn(params["gamma2"], params["beta2"],
                      params["mean2"], params["var2"], pad_to=Mp)
    s3, b3 = _fold_bn(params["gamma3"], params["beta3"],
                      params["mean3"], params["var3"], pad_to=Cp)

    m_rows = N * H * W
    cost = pl.CostEstimate(
        flops=2 * m_rows * (Cp * Mp + 9 * Mp * Mp + Mp * Cp),
        transcendentals=0,
        bytes_accessed=(x_p.size + m_rows * Cp) * 4
        + (w1.size + w2.size + w3.size) * 2
        + 2 * (2 * Mp + Cp) * 4,
    )

    const2 = lambda n: (0, 0)
    const3 = lambda n: (0, 0, 0)
    grid_spec = pltpu.PrefetchScalarGridSpec(
        num_scalar_prefetch=0,
        grid=(N,),
        in_specs=[
            pl.BlockSpec((1, H, W, Cp), lambda n: (n, 0, 0, 0)),    # x (+residual)
            pl.BlockSpec((Cp, Mp), const2),                         # w1
            pl.BlockSpec((1, Mp), const2),                          # s1
            pl.BlockSpec((1, Mp), const2),                          # b1
            pl.BlockSpec((9, Mp, Mp), const3),                      # w2
            pl.BlockSpec((1, Mp), const2),                          # s2
            pl.BlockSpec((1, Mp), const2),                          # b2
            pl.BlockSpec((Mp, Cp), const2),                         # w3
            pl.BlockSpec((1, Cp), const2),                          # s3
            pl.BlockSpec((1, Cp), const2),                          # b3
        ],
        out_specs=pl.BlockSpec((1, H, W, Cp), lambda n: (n, 0, 0, 0)),
        scratch_shapes=[pltpu.VMEM((H + 2, W + _LPAD + 1, Mp), jnp.float32)],
    )

    out = pl.pallas_call(
        _bottleneck_kernel,
        out_shape=jax.ShapeDtypeStruct((N, H, W, Cp), jnp.float32),
        grid_spec=grid_spec,
        compiler_params=pltpu.CompilerParams(dimension_semantics=("parallel",)),
        cost_estimate=cost,
    )(x_p, w1, s1, b1, w2, s2, b2, w3, s3, b3)

    out = out[..., :c_out]                                          # drop channel padding
    return jnp.transpose(out, (0, 3, 1, 2))                         # back to NCHW


# ------------------------- reference & param init --------------------------- #
def _bf16(v):
    return v.astype(jnp.bfloat16).astype(jnp.float32)


def _im2col_3x3(x_nhwc):
    N, H, W, C = x_nhwc.shape
    xp = jnp.pad(x_nhwc, ((0, 0), (1, 1), (1, 1), (0, 0)))
    cols = [xp[:, dy:dy + H, dx:dx + W, :] for dy in range(3) for dx in range(3)]
    return jnp.concatenate(cols, axis=-1)


def reference_forward(x_nchw, params):
    """Pure-JAX reference with matching bf16-operand / f32-accumulate math."""
    hi = jax.lax.Precision.HIGHEST
    x = jnp.transpose(x_nchw, (0, 2, 3, 1)).astype(jnp.float32)
    N, H, W, Cin = x.shape
    c_mid = params["w1"].shape[0]
    c_out = params["w3"].shape[0]
    s1, b1 = _fold_bn(params["gamma1"], params["beta1"], params["mean1"], params["var1"])
    s2, b2 = _fold_bn(params["gamma2"], params["beta2"], params["mean2"], params["var2"])
    s3, b3 = _fold_bn(params["gamma3"], params["beta3"], params["mean3"], params["var3"])
    w1 = params["w1"].reshape(c_mid, Cin).T
    w2 = jnp.transpose(params["w2"], (2, 3, 1, 0)).reshape(9 * c_mid, c_mid)
    w3 = params["w3"].reshape(c_out, c_mid).T
    x2d = x.reshape(-1, Cin)
    a1 = jnp.maximum(jnp.dot(_bf16(x2d), _bf16(w1), precision=hi) * s1 + b1, 0.0)
    p = _im2col_3x3(a1.reshape(N, H, W, c_mid)).reshape(-1, 9 * c_mid)
    a2 = jnp.maximum(jnp.dot(_bf16(p), _bf16(w2), precision=hi) * s2 + b2, 0.0)
    o = jnp.maximum(jnp.dot(_bf16(a2), _bf16(w3), precision=hi) * s3 + b3 + x2d, 0.0)
    return jnp.transpose(o.reshape(N, H, W, c_out), (0, 3, 1, 2))


def init_params(key, in_channels, out_channels, expansion=4):
    c_mid = out_channels
    c_out = out_channels * expansion
    ks = jax.random.split(key, 15)
    p = {}
    # conv weights in PyTorch layout (Cout, Cin, kh, kw)
    p["w1"] = 0.1 * jax.random.normal(ks[0], (c_mid, in_channels, 1, 1), jnp.float32)
    p["w2"] = 0.1 * jax.random.normal(ks[1], (c_mid, c_mid, 3, 3), jnp.float32)
    p["w3"] = 0.1 * jax.random.normal(ks[2], (c_out, c_mid, 1, 1), jnp.float32)
    for j, c in zip((1, 2, 3), (c_mid, c_mid, c_out)):
        base = 3 + 4 * (j - 1)
        p[f"gamma{j}"] = 1.0 + 0.1 * jax.random.normal(ks[base + 0], (c,), jnp.float32)
        p[f"beta{j}"] = 0.1 * jax.random.normal(ks[base + 1], (c,), jnp.float32)
        p[f"mean{j}"] = 0.05 * jax.random.normal(ks[base + 2], (c,), jnp.float32)
        p[f"var{j}"] = 1.0 + 0.1 * jax.random.uniform(ks[base + 3], (c,), jnp.float32)
    return p


if __name__ == "__main__":
    key = jax.random.PRNGKey(0)
    k_x, k_p = jax.random.split(key)

    out_channels = 4
    expansion = 4
    in_channels = out_channels * expansion   # 16 -> identity residual is valid
    N, H, W = 2, 16, 16

    x = jax.random.normal(k_x, (N, in_channels, H, W), jnp.float32)
    params = init_params(k_p, in_channels, out_channels, expansion)

    y = jax.block_until_ready(bottleneck_forward(x, params, stride=1))
    y_ref = reference_forward(x, params)

    assert y.shape == (N, out_channels * expansion, H, W)
    max_err = float(jnp.max(jnp.abs(y - y_ref)))
    assert jnp.allclose(y, y_ref, atol=1e-2, rtol=1e-2), f"mismatch vs reference, max_err={max_err}"

    print("KERNEL_OK")
</pallas_src>

<mosaic_0001>
module attributes {stable_mosaic.version = 11 : i64} {
  func.func @_bottleneck_kernel(%arg0: i32, %arg1: memref<1x16x16x128xf32, #tpu.memory_space<vmem>>, %arg2: memref<128x128xbf16, #tpu.memory_space<vmem>>, %arg3: memref<1x128xf32, #tpu.memory_space<vmem>>, %arg4: memref<1x128xf32, #tpu.memory_space<vmem>>, %arg5: memref<9x128x128xbf16, #tpu.memory_space<vmem>>, %arg6: memref<1x128xf32, #tpu.memory_space<vmem>>, %arg7: memref<1x128xf32, #tpu.memory_space<vmem>>, %arg8: memref<128x128xbf16, #tpu.memory_space<vmem>>, %arg9: memref<1x128xf32, #tpu.memory_space<vmem>>, %arg10: memref<1x128xf32, #tpu.memory_space<vmem>>, %arg11: memref<1x16x16x128xf32, #tpu.memory_space<vmem>>, %arg12: memref<18x25x128xf32, #tpu.memory_space<vmem>>) attributes {dimension_semantics = [#tpu.dimension_semantics<parallel>], iteration_bounds = array<i64: 2>, scalar_prefetch = 0 : i64, scratch_operands = 1 : i64, tpu.core_type = #tpu.core_type<tc>, window_params = [{transform_indices = @transform_0, window_bounds = array<i64: 1, 16, 16, 128>}, {pipeline_mode = #tpu.pipeline_mode<synchronous>, transform_indices = @transform_1, window_bounds = array<i64: 128, 128>}, {pipeline_mode = #tpu.pipeline_mode<synchronous>, transform_indices = @transform_2, window_bounds = array<i64: 1, 128>}, {pipeline_mode = #tpu.pipeline_mode<synchronous>, transform_indices = @transform_3, window_bounds = array<i64: 1, 128>}, {pipeline_mode = #tpu.pipeline_mode<synchronous>, transform_indices = @transform_4, window_bounds = array<i64: 9, 128, 128>}, {pipeline_mode = #tpu.pipeline_mode<synchronous>, transform_indices = @transform_5, window_bounds = array<i64: 1, 128>}, {pipeline_mode = #tpu.pipeline_mode<synchronous>, transform_indices = @transform_6, window_bounds = array<i64: 1, 128>}, {pipeline_mode = #tpu.pipeline_mode<synchronous>, transform_indices = @transform_7, window_bounds = array<i64: 128, 128>}, {pipeline_mode = #tpu.pipeline_mode<synchronous>, transform_indices = @transform_8, window_bounds = array<i64: 1, 128>}, {pipeline_mode = #tpu.pipeline_mode<synchronous>, transform_indices = @transform_9, window_bounds = array<i64: 1, 128>}, {transform_indices = @transform_10, window_bounds = array<i64: 1, 16, 16, 128>}]} {
    %c0 = arith.constant 0 : index
    %c0_0 = arith.constant 0 : index
    %c0_1 = arith.constant 0 : index
    %c0_2 = arith.constant 0 : index
    %0 = vector.load %arg1[%c0, %c0_0, %c0_1, %c0_2] : memref<1x16x16x128xf32, #tpu.memory_space<vmem>>, vector<1x16x16x128xf32>
    %1 = vector.shape_cast %0 : vector<1x16x16x128xf32> to vector<16x16x128xf32>
    %2 = vector.shape_cast %1 : vector<16x16x128xf32> to vector<256x128xf32>
    %3 = arith.truncf %2 : vector<256x128xf32> to vector<256x128xbf16>
    %c0_3 = arith.constant 0 : index
    %c0_4 = arith.constant 0 : index
    %4 = vector.load %arg2[%c0_3, %c0_4] : memref<128x128xbf16, #tpu.memory_space<vmem>>, vector<128x128xbf16>
    %cst = arith.constant dense<0.000000e+00> : vector<256x128xf32>
    %5 = tpu.matmul %3, %4, %cst {dimension_numbers = #tpu.dot_dimension_numbers<[1], [0], [0], [1], [0, 0, 1, 1], [], []>} : vector<256x128xbf16>, vector<128x128xbf16>, vector<256x128xf32> -> vector<256x128xf32>
    %c0_5 = arith.constant 0 : index
    %c0_6 = arith.constant 0 : index
    %6 = vector.load %arg3[%c0_5, %c0_6] : memref<1x128xf32, #tpu.memory_space<vmem>>, vector<1x128xf32>
    %7 = vector.broadcast %6 : vector<1x128xf32> to vector<256x128xf32>
    %8 = arith.mulf %5, %7 : vector<256x128xf32>
    %c0_7 = arith.constant 0 : index
    %c0_8 = arith.constant 0 : index
    %9 = vector.load %arg4[%c0_7, %c0_8] : memref<1x128xf32, #tpu.memory_space<vmem>>, vector<1x128xf32>
    %10 = vector.broadcast %9 : vector<1x128xf32> to vector<256x128xf32>
    %11 = arith.addf %8, %10 : vector<256x128xf32>
    %cst_9 = arith.constant 0.000000e+00 : f32
    %12 = vector.broadcast %cst_9 : f32 to vector<256x128xf32>
    %13 = arith.maximumf %11, %12 : vector<256x128xf32>
    %cst_10 = arith.constant 0.000000e+00 : f32
    %14 = vector.broadcast %cst_10 : f32 to vector<18x25x128xf32>
    %c0_11 = arith.constant 0 : index
    %c0_12 = arith.constant 0 : index
    %c0_13 = arith.constant 0 : index
    %15 = vector.load %arg12[%c0_11, %c0_12, %c0_13] : memref<18x25x128xf32, #tpu.memory_space<vmem>>, vector<18x25x128xf32>
    tpu.vector_store %arg12[%c0_11, %c0_12, %c0_13], %14 {strides = array<i32>} : memref<18x25x128xf32, #tpu.memory_space<vmem>>, vector<18x25x128xf32>,
    %16 = vector.shape_cast %13 : vector<256x128xf32> to vector<16x16x128xf32>
    %c1 = arith.constant 1 : index
    %c8 = arith.constant 8 : index
    %c0_14 = arith.constant 0 : index
    %17 = vector.load %arg12[%c1, %c8, %c0_14] : memref<18x25x128xf32, #tpu.memory_space<vmem>>, vector<16x16x128xf32>
    tpu.vector_store %arg12[%c1, %c8, %c0_14], %16 {strides = array<i32>} : memref<18x25x128xf32, #tpu.memory_space<vmem>>, vector<16x16x128xf32>,
    %cst_15 = arith.constant 0.000000e+00 : f32
    %18 = vector.broadcast %cst_15 : f32 to vector<256x128xf32>
    %c0_16 = arith.constant 0 : index
    %c7 = arith.constant 7 : index
    %c0_17 = arith.constant 0 : index
    %19 = vector.load %arg12[%c0_16, %c7, %c0_17] : memref<18x25x128xf32, #tpu.memory_space<vmem>>, vector<16x16x128xf32>
    %20 = vector.shape_cast %19 : vector<16x16x128xf32> to vector<256x128xf32>
    %21 = arith.truncf %20 : vector<256x128xf32> to vector<256x128xbf16>
    %c0_18 = arith.constant 0 : index
    %c0_19 = arith.constant 0 : index
    %c0_20 = arith.constant 0 : index
    %22 = vector.load %arg5[%c0_18, %c0_19, %c0_20] : memref<9x128x128xbf16, #tpu.memory_space<vmem>>, vector<1x128x128xbf16>
    %23 = vector.shape_cast %22 : vector<1x128x128xbf16> to vector<128x128xbf16>
    %cst_21 = arith.constant dense<0.000000e+00> : vector<256x128xf32>
    %24 = tpu.matmul %21, %23, %cst_21 {dimension_numbers = #tpu.dot_dimension_numbers<[1], [0], [0], [1], [0, 0, 1, 1], [], []>} : vector<256x128xbf16>, vector<128x128xbf16>, vector<256x128xf32> -> vector<256x128xf32>
    %25 = arith.addf %18, %24 : vector<256x128xf32>
    %c0_22 = arith.constant 0 : index
    %c8_23 = arith.constant 8 : index
    %c0_24 = arith.constant 0 : index
    %26 = vector.load %arg12[%c0_22, %c8_23, %c0_24] : memref<18x25x128xf32, #tpu.memory_space<vmem>>, vector<16x16x128xf32>
    %27 = vector.shape_cast %26 : vector<16x16x128xf32> to vector<256x128xf32>
    %28 = arith.truncf %27 : vector<256x128xf32> to vector<256x128xbf16>
    %c1_25 = arith.constant 1 : index
    %c0_26 = arith.constant 0 : index
    %c0_27 = arith.constant 0 : index
    %29 = vector.load %arg5[%c1_25, %c0_26, %c0_27] : memref<9x128x128xbf16, #tpu.memory_space<vmem>>, vector<1x128x128xbf16>
    %30 = vector.shape_cast %29 : vector<1x128x128xbf16> to vector<128x128xbf16>
    %cst_28 = arith.constant dense<0.000000e+00> : vector<256x128xf32>
    %31 = tpu.matmul %28, %30, %cst_28 {dimension_numbers = #tpu.dot_dimension_numbers<[1], [0], [0], [1], [0, 0, 1, 1], [], []>} : vector<256x128xbf16>, vector<128x128xbf16>, vector<256x128xf32> -> vector<256x128xf32>
    %32 = arith.addf %25, %31 : vector<256x128xf32>
    %c0_29 = arith.constant 0 : index
    %c9 = arith.constant 9 : index
    %c0_30 = arith.constant 0 : index
    %33 = vector.load %arg12[%c0_29, %c9, %c0_30] : memref<18x25x128xf32, #tpu.memory_space<vmem>>, vector<16x16x128xf32>
    %34 = vector.shape_cast %33 : vector<16x16x128xf32> to vector<256x128xf32>
    %35 = arith.truncf %34 : vector<256x128xf32> to vector<256x128xbf16>
    %c2 = arith.constant 2 : index
    %c0_31 = arith.constant 0 : index
    %c0_32 = arith.constant 0 : index
    %36 = vector.load %arg5[%c2, %c0_31, %c0_32] : memref<9x128x128xbf16, #tpu.memory_space<vmem>>, vector<1x128x128xbf16>
    %37 = vector.shape_cast %36 : vector<1x128x128xbf16> to vector<128x128xbf16>
    %cst_33 = arith.constant dense<0.000000e+00> : vector<256x128xf32>
    %38 = tpu.matmul %35, %37, %cst_33 {dimension_numbers = #tpu.dot_dimension_numbers<[1], [0], [0], [1], [0, 0, 1, 1], [], []>} : vector<256x128xbf16>, vector<128x128xbf16>, vector<256x128xf32> -> vector<256x128xf32>
    %39 = arith.addf %32, %38 : vector<256x128xf32>
    %c1_34 = arith.constant 1 : index
    %c7_35 = arith.constant 7 : index
    %c0_36 = arith.constant 0 : index
    %40 = vector.load %arg12[%c1_34, %c7_35, %c0_36] : memref<18x25x128xf32, #tpu.memory_space<vmem>>, vector<16x16x128xf32>
    %41 = vector.shape_cast %40 : vector<16x16x128xf32> to vector<256x128xf32>
    %42 = arith.truncf %41 : vector<256x128xf32> to vector<256x128xbf16>
    %c3 = arith.constant 3 : index
    %c0_37 = arith.constant 0 : index
    %c0_38 = arith.constant 0 : index
    %43 = vector.load %arg5[%c3, %c0_37, %c0_38] : memref<9x128x128xbf16, #tpu.memory_space<vmem>>, vector<1x128x128xbf16>
    %44 = vector.shape_cast %43 : vector<1x128x128xbf16> to vector<128x128xbf16>
    %cst_39 = arith.constant dense<0.000000e+00> : vector<256x128xf32>
    %45 = tpu.matmul %42, %44, %cst_39 {dimension_numbers = #tpu.dot_dimension_numbers<[1], [0], [0], [1], [0, 0, 1, 1], [], []>} : vector<256x128xbf16>, vector<128x128xbf16>, vector<256x128xf32> -> vector<256x128xf32>
    %46 = arith.addf %39, %45 : vector<256x128xf32>
    %c1_40 = arith.constant 1 : index
    %c8_41 = arith.constant 8 : index
    %c0_42 = arith.constant 0 : index
    %47 = vector.load %arg12[%c1_40, %c8_41, %c0_42] : memref<18x25x128xf32, #tpu.memory_space<vmem>>, vector<16x16x128xf32>
    %48 = vector.shape_cast %47 : vector<16x16x128xf32> to vector<256x128xf32>
    %49 = arith.truncf %48 : vector<256x128xf32> to vector<256x128xbf16>
    %c4 = arith.constant 4 : index
    %c0_43 = arith.constant 0 : index
    %c0_44 = arith.constant 0 : index
    %50 = vector.load %arg5[%c4, %c0_43, %c0_44] : memref<9x128x128xbf16, #tpu.memory_space<vmem>>, vector<1x128x128xbf16>
    %51 = vector.shape_cast %50 : vector<1x128x128xbf16> to vector<128x128xbf16>
    %cst_45 = arith.constant dense<0.000000e+00> : vector<256x128xf32>
    %52 = tpu.matmul %49, %51, %cst_45 {dimension_numbers = #tpu.dot_dimension_numbers<[1], [0], [0], [1], [0, 0, 1, 1], [], []>} : vector<256x128xbf16>, vector<128x128xbf16>, vector<256x128xf32> -> vector<256x128xf32>
    %53 = arith.addf %46, %52 : vector<256x128xf32>
    %c1_46 = arith.constant 1 : index
    %c9_47 = arith.constant 9 : index
    %c0_48 = arith.constant 0 : index
    %54 = vector.load %arg12[%c1_46, %c9_47, %c0_48] : memref<18x25x128xf32, #tpu.memory_space<vmem>>, vector<16x16x128xf32>
    %55 = vector.shape_cast %54 : vector<16x16x128xf32> to vector<256x128xf32>
    %56 = arith.truncf %55 : vector<256x128xf32> to vector<256x128xbf16>
    %c5 = arith.constant 5 : index
    %c0_49 = arith.constant 0 : index
    %c0_50 = arith.constant 0 : index
    %57 = vector.load %arg5[%c5, %c0_49, %c0_50] : memref<9x128x128xbf16, #tpu.memory_space<vmem>>, vector<1x128x128xbf16>
    %58 = vector.shape_cast %57 : vector<1x128x128xbf16> to vector<128x128xbf16>
    %cst_51 = arith.constant dense<0.000000e+00> : vector<256x128xf32>
    %59 = tpu.matmul %56, %58, %cst_51 {dimension_numbers = #tpu.dot_dimension_numbers<[1], [0], [0], [1], [0, 0, 1, 1], [], []>} : vector<256x128xbf16>, vector<128x128xbf16>, vector<256x128xf32> -> vector<256x128xf32>
    %60 = arith.addf %53, %59 : vector<256x128xf32>
    %c2_52 = arith.constant 2 : index
    %c7_53 = arith.constant 7 : index
    %c0_54 = arith.constant 0 : index
    %61 = vector.load %arg12[%c2_52, %c7_53, %c0_54] : memref<18x25x128xf32, #tpu.memory_space<vmem>>, vector<16x16x128xf32>
    %62 = vector.shape_cast %61 : vector<16x16x128xf32> to vector<256x128xf32>
    %63 = arith.truncf %62 : vector<256x128xf32> to vector<256x128xbf16>
    %c6 = arith.constant 6 : index
    %c0_55 = arith.constant 0 : index
    %c0_56 = arith.constant 0 : index
    %64 = vector.load %arg5[%c6, %c0_55, %c0_56] : memref<9x128x128xbf16, #tpu.memory_space<vmem>>, vector<1x128x128xbf16>
    %65 = vector.shape_cast %64 : vector<1x128x128xbf16> to vector<128x128xbf16>
    %cst_57 = arith.constant dense<0.000000e+00> : vector<256x128xf32>
    %66 = tpu.matmul %63, %65, %cst_57 {dimension_numbers = #tpu.dot_dimension_numbers<[1], [0], [0], [1], [0, 0, 1, 1], [], []>} : vector<256x128xbf16>, vector<128x128xbf16>, vector<256x128xf32> -> vector<256x128xf32>
    %67 = arith.addf %60, %66 : vector<256x128xf32>
    %c2_58 = arith.constant 2 : index
    %c8_59 = arith.constant 8 : index
    %c0_60 = arith.constant 0 : index
    %68 = vector.load %arg12[%c2_58, %c8_59, %c0_60] : memref<18x25x128xf32, #tpu.memory_space<vmem>>, vector<16x16x128xf32>
    %69 = vector.shape_cast %68 : vector<16x16x128xf32> to vector<256x128xf32>
    %70 = arith.truncf %69 : vector<256x128xf32> to vector<256x128xbf16>
    %c7_61 = arith.constant 7 : index
    %c0_62 = arith.constant 0 : index
    %c0_63 = arith.constant 0 : index
    %71 = vector.load %arg5[%c7_61, %c0_62, %c0_63] : memref<9x128x128xbf16, #tpu.memory_space<vmem>>, vector<1x128x128xbf16>
    %72 = vector.shape_cast %71 : vector<1x128x128xbf16> to vector<128x128xbf16>
    %cst_64 = arith.constant dense<0.000000e+00> : vector<256x128xf32>
    %73 = tpu.matmul %70, %72, %cst_64 {dimension_numbers = #tpu.dot_dimension_numbers<[1], [0], [0], [1], [0, 0, 1, 1], [], []>} : vector<256x128xbf16>, vector<128x128xbf16>, vector<256x128xf32> -> vector<256x128xf32>
    %74 = arith.addf %67, %73 : vector<256x128xf32>
    %c2_65 = arith.constant 2 : index
    %c9_66 = arith.constant 9 : index
    %c0_67 = arith.constant 0 : index
    %75 = vector.load %arg12[%c2_65, %c9_66, %c0_67] : memref<18x25x128xf32, #tpu.memory_space<vmem>>, vector<16x16x128xf32>
    %76 = vector.shape_cast %75 : vector<16x16x128xf32> to vector<256x128xf32>
    %77 = arith.truncf %76 : vector<256x128xf32> to vector<256x128xbf16>
    %c8_68 = arith.constant 8 : index
    %c0_69 = arith.constant 0 : index
    %c0_70 = arith.constant 0 : index
    %78 = vector.load %arg5[%c8_68, %c0_69, %c0_70] : memref<9x128x128xbf16, #tpu.memory_space<vmem>>, vector<1x128x128xbf16>
    %79 = vector.shape_cast %78 : vector<1x128x128xbf16> to vector<128x128xbf16>
    %cst_71 = arith.constant dense<0.000000e+00> : vector<256x128xf32>
    %80 = tpu.matmul %77, %79, %cst_71 {dimension_numbers = #tpu.dot_dimension_numbers<[1], [0], [0], [1], [0, 0, 1, 1], [], []>} : vector<256x128xbf16>, vector<128x128xbf16>, vector<256x128xf32> -> vector<256x128xf32>
    %81 = arith.addf %74, %80 : vector<256x128xf32>
    %c0_72 = arith.constant 0 : index
    %c0_73 = arith.constant 0 : index
    %82 = vector.load %arg6[%c0_72, %c0_73] : memref<1x128xf32, #tpu.memory_space<vmem>>, vector<1x128xf32>
    %83 = vector.broadcast %82 : vector<1x128xf32> to vector<256x128xf32>
    %84 = arith.mulf %81, %83 : vector<256x128xf32>
    %c0_74 = arith.constant 0 : index
    %c0_75 = arith.constant 0 : index
    %85 = vector.load %arg7[%c0_74, %c0_75] : memref<1x128xf32, #tpu.memory_space<vmem>>, vector<1x128xf32>
    %86 = vector.broadcast %85 : vector<1x128xf32> to vector<256x128xf32>
    %87 = arith.addf %84, %86 : vector<256x128xf32>
    %cst_76 = arith.constant 0.000000e+00 : f32
    %88 = vector.broadcast %cst_76 : f32 to vector<256x128xf32>
    %89 = arith.maximumf %87, %88 : vector<256x128xf32>
    %90 = arith.truncf %89 : vector<256x128xf32> to vector<256x128xbf16>
    %c0_77 = arith.constant 0 : index
    %c0_78 = arith.constant 0 : index
    %91 = vector.load %arg8[%c0_77, %c0_78] : memref<128x128xbf16, #tpu.memory_space<vmem>>, vector<128x128xbf16>
    %cst_79 = arith.constant dense<0.000000e+00> : vector<256x128xf32>
    %92 = tpu.matmul %90, %91, %cst_79 {dimension_numbers = #tpu.dot_dimension_numbers<[1], [0], [0], [1], [0, 0, 1, 1], [], []>} : vector<256x128xbf16>, vector<128x128xbf16>, vector<256x128xf32> -> vector<256x128xf32>
    %c0_80 = arith.constant 0 : index
    %c0_81 = arith.constant 0 : index
    %93 = vector.load %arg9[%c0_80, %c0_81] : memref<1x128xf32, #tpu.memory_space<vmem>>, vector<1x128xf32>
    %94 = vector.broadcast %93 : vector<1x128xf32> to vector<256x128xf32>
    %95 = arith.mulf %92, %94 : vector<256x128xf32>
    %c0_82 = arith.constant 0 : index
    %c0_83 = arith.constant 0 : index
    %96 = vector.load %arg10[%c0_82, %c0_83] : memref<1x128xf32, #tpu.memory_space<vmem>>, vector<1x128xf32>
    %97 = vector.broadcast %96 : vector<1x128xf32> to vector<256x128xf32>
    %98 = arith.addf %95, %97 : vector<256x128xf32>
    %99 = arith.addf %98, %2 : vector<256x128xf32>
    %cst_84 = arith.constant 0.000000e+00 : f32
    %100 = vector.broadcast %cst_84 : f32 to vector<256x128xf32>
    %101 = arith.maximumf %99, %100 : vector<256x128xf32>
    %102 = vector.shape_cast %101 : vector<256x128xf32> to vector<16x16x128xf32>
    %c0_85 = arith.constant 0 : index
    %c0_86 = arith.constant 0 : index
    %c0_87 = arith.constant 0 : index
    %c0_88 = arith.constant 0 : index
    %103 = vector.load %arg11[%c0_85, %c0_86, %c0_87, %c0_88] : memref<1x16x16x128xf32, #tpu.memory_space<vmem>>, vector<1x16x16x128xf32>
    %104 = vector.shape_cast %103 : vector<1x16x16x128xf32> to vector<16x16x128xf32>
    %105 = vector.shape_cast %102 : vector<16x16x128xf32> to vector<1x16x16x128xf32>
    tpu.vector_store %arg11[%c0_85, %c0_86, %c0_87, %c0_88], %105 {strides = array<i32>} : memref<1x16x16x128xf32, #tpu.memory_space<vmem>>, vector<1x16x16x128xf32>,
    return
  }
  func.func @transform_0(%arg0: i32) -> (i32, i32, i32, i32) {
    %c0_i32 = arith.constant 0 : i32
    %c0_i32_0 = arith.constant 0 : i32
    %c0_i32_1 = arith.constant 0 : i32
    %c0_i32_2 = arith.constant 0 : i32
    return %arg0, %c0_i32, %c0_i32_0, %c0_i32_1 : i32, i32, i32, i32
  }
  func.func @transform_1(%arg0: i32) -> (i32, i32) {
    %c0_i32 = arith.constant 0 : i32
    %c0_i32_0 = arith.constant 0 : i32
    %c0_i32_1 = arith.constant 0 : i32
    return %c0_i32, %c0_i32_0 : i32, i32
  }
  func.func @transform_2(%arg0: i32) -> (i32, i32) {
    %c0_i32 = arith.constant 0 : i32
    %c0_i32_0 = arith.constant 0 : i32
    %c0_i32_1 = arith.constant 0 : i32
    return %c0_i32, %c0_i32_0 : i32, i32
  }
  func.func @transform_3(%arg0: i32) -> (i32, i32) {
    %c0_i32 = arith.constant 0 : i32
    %c0_i32_0 = arith.constant 0 : i32
    %c0_i32_1 = arith.constant 0 : i32
    return %c0_i32, %c0_i32_0 : i32, i32
  }
  func.func @transform_4(%arg0: i32) -> (i32, i32, i32) {
    %c0_i32 = arith.constant 0 : i32
    %c0_i32_0 = arith.constant 0 : i32
    %c0_i32_1 = arith.constant 0 : i32
    %c0_i32_2 = arith.constant 0 : i32
    return %c0_i32, %c0_i32_0, %c0_i32_1 : i32, i32, i32
  }
  func.func @transform_5(%arg0: i32) -> (i32, i32) {
    %c0_i32 = arith.constant 0 : i32
    %c0_i32_0 = arith.constant 0 : i32
    %c0_i32_1 = arith.constant 0 : i32
    return %c0_i32, %c0_i32_0 : i32, i32
  }
  func.func @transform_6(%arg0: i32) -> (i32, i32) {
    %c0_i32 = arith.constant 0 : i32
    %c0_i32_0 = arith.constant 0 : i32
    %c0_i32_1 = arith.constant 0 : i32
    return %c0_i32, %c0_i32_0 : i32, i32
  }
  func.func @transform_7(%arg0: i32) -> (i32, i32) {
    %c0_i32 = arith.constant 0 : i32
    %c0_i32_0 = arith.constant 0 : i32
    %c0_i32_1 = arith.constant 0 : i32
    return %c0_i32, %c0_i32_0 : i32, i32
  }
  func.func @transform_8(%arg0: i32) -> (i32, i32) {
    %c0_i32 = arith.constant 0 : i32
    %c0_i32_0 = arith.constant 0 : i32
    %c0_i32_1 = arith.constant 0 : i32
    return %c0_i32, %c0_i32_0 : i32, i32
  }
  func.func @transform_9(%arg0: i32) -> (i32, i32) {
    %c0_i32 = arith.constant 0 : i32
    %c0_i32_0 = arith.constant 0 : i32
    %c0_i32_1 = arith.constant 0 : i32
    return %c0_i32, %c0_i32_0 : i32, i32
  }
  func.func @transform_10(%arg0: i32) -> (i32, i32, i32, i32) {
    %c0_i32 = arith.constant 0 : i32
    %c0_i32_0 = arith.constant 0 : i32
    %c0_i32_1 = arith.constant 0 : i32
    %c0_i32_2 = arith.constant 0 : i32
    return %arg0, %c0_i32, %c0_i32_0, %c0_i32_1 : i32, i32, i32, i32
  }
}

</mosaic_0001>

<llo_original>
// kernel: bottleneck_forward.1
$region0: #{bottleneck_forward.1}
  #allocation0 [shape = 'u32[]', space=smem, size = 0x4, offset = 0x4, fixed_abs, tag = 'smem constant byte address 0x4 - core index']
  #allocation1 [shape = 'u32[144,128]{1,0:T(1,128)}', space=vmem, size = 0x12000, scoped, tag = 'internal scratch']
  #allocation2 [shape = 'f32[18,25,128]{2,1,0:T(8,128)}', space=vmem, size = 0x48000, scoped, tag = 'scratch operand']
  %s0 = inlined_call_operand.vmem [shape: f32[2,16,16,128], index: 0, kind: input, shape index: {}]
  %s1 = inlined_call_operand.vmem [shape: bf16[128,128], index: 1, kind: input, shape index: {}]
  %s2 = inlined_call_operand.vmem [shape: f32[1,128], index: 2, kind: input, shape index: {}]
  %s3 = inlined_call_operand.vmem [shape: f32[1,128], index: 3, kind: input, shape index: {}]
  %s4 = inlined_call_operand.vmem [shape: bf16[9,128,128], index: 4, kind: input, shape index: {}]
  %s5 = inlined_call_operand.vmem [shape: f32[1,128], index: 5, kind: input, shape index: {}]
  %s6 = inlined_call_operand.vmem [shape: f32[1,128], index: 6, kind: input, shape index: {}]
  %s7 = inlined_call_operand.vmem [shape: bf16[128,128], index: 7, kind: input, shape index: {}]
  %s8 = inlined_call_operand.vmem [shape: f32[1,128], index: 8, kind: input, shape index: {}]
  %s9 = inlined_call_operand.vmem [shape: f32[1,128], index: 9, kind: input, shape index: {}]
  %s10 = inlined_call_operand.vmem [shape: f32[2,16,16,128], index: 10, kind: output, shape index: {}]
  %s11 = sld [smem:[#allocation0]]
  $region73: #{bottleneck_forward.1} parent=0
    _
  %s13 = ssub.s32 1, %s11
  %s14 = scalar_select 0, %s13, %s11
  loop: start=0, step=1, limit=4
  $region2: #{bottleneck_forward.1} parent=0 // loop_pre_header
    _
  $region3: #{bottleneck_forward.1} parent=0 // loop_header
    %s16 = sphi 0, %s20
    %p17 = scmp.ge.s32.totalorder %s16, 4
    %s26 = sphi 0, %s28
    %s29 = sphi 0, %s26
    %s30 = sphi 0, %s29
    %s46 = sphi 0, %s30
    %s50 = sphi 0, %s50
    %s52 = sphi 0, %s50
    %s53 = sphi 0, %s52
    %s67 = sphi 0, %s53
    %s71 = sphi 0, %s71
    %s73 = sphi 0, %s71
    %s74 = sphi 0, %s73
    %s88 = sphi 0, %s74
    %s92 = sphi 0, %s92
    %s94 = sphi 0, %s92
    %s95 = sphi 0, %s94
    %s109 = sphi 0, %s95
    %s113 = sphi 0, %s113
    %s115 = sphi 0, %s113
    %s116 = sphi 0, %s115
    %s130 = sphi 0, %s116
    %s134 = sphi 0, %s134
    %s136 = sphi 0, %s134
    %s137 = sphi 0, %s136
    %s151 = sphi 0, %s137
    %s155 = sphi 0, %s155
    %s157 = sphi 0, %s155
    %s158 = sphi 0, %s157
    %s172 = sphi 0, %s158
    %s176 = sphi 0, %s176
    %s178 = sphi 0, %s176
    %s179 = sphi 0, %s178
    %s193 = sphi 0, %s179
    %s197 = sphi 0, %s197
    %s199 = sphi 0, %s197
    %s200 = sphi 0, %s199
    %s214 = sphi 0, %s200
    %s218 = sphi 0, %s218
    %s220 = sphi 0, %s218
    %s221 = sphi 0, %s220
    %s235 = sphi 0, %s221
    %s241 = sphi 0, %s243
    %s244 = sphi 0, %s241
    %s245 = sphi 0, %s244
    %s261 = sphi 0, %s245
  $region4: #{bottleneck_forward.1} parent=0 // loop_header_branch
    %19 = sbr.rel (%p17) target = $region8
  $region5: #{bottleneck_forward.1} parent=0 // loop_body
    %s21 = ssub.s32 %s16, 1
    %s22 = ssub.s32 %s16, 2
    %s23 = sadd.s32 %s16, 1
    %s24 = ssub.s32 %s16, %s23
    %p25 = scmp.eq.s32.totalorder %s24, 0
    %s27 = sadd.s32 %s26, 1
    %s28 = scalar_select %p25, %s26, %s27
    %p31 = pneg %p25
    %p32 = scmp.eq.s32.totalorder %s16, 1
    %p33 = por %p31, %p32
    %p34 = scmp.ne.s32.totalorder %s26, %s29
    %p35 = scmp.eq.s32.totalorder %s16, 0
    %p36 = por %p34, %p35
    %p37 = scmp.ne.s32.totalorder %s26, %s29
    %p38 = scmp.eq.s32.totalorder %s21, 1
    %p39 = por %p37, %p38
    %p40 = scmp.ne.s32.totalorder %s29, %s30
    %p41 = scmp.eq.s32.totalorder %s21, 0
    %p42 = por %p40, %p41
    %p43 = scmp.ne.s32.totalorder %s29, %s30
    %p44 = scmp.eq.s32.totalorder %s22, 1
    %p45 = por %p43, %p44
    %p47 = scmp.ne.s32.totalorder %s30, %s46
    %p48 = scmp.eq.s32.totalorder %s22, 0
    %p49 = por %p47, %p48
    %s51 = sadd.s32 %s50, 1
    %p54 = scmp.eq.s32.totalorder %s16, 1
    %p55 = scmp.ne.s32.totalorder %s50, %s52
    %p56 = scmp.eq.s32.totalorder %s16, 0
    %p57 = por %p55, %p56
    %p58 = scmp.ne.s32.totalorder %s50, %s52
    %p59 = scmp.eq.s32.totalorder %s21, 1
    %p60 = por %p58, %p59
    %p61 = scmp.ne.s32.totalorder %s52, %s53
    %p62 = scmp.eq.s32.totalorder %s21, 0
    %p63 = por %p61, %p62
    %p64 = scmp.ne.s32.totalorder %s52, %s53
    %p65 = scmp.eq.s32.totalorder %s22, 1
    %p66 = por %p64, %p65
    %p68 = scmp.ne.s32.totalorder %s53, %s67
    %p69 = scmp.eq.s32.totalorder %s22, 0
    %p70 = por %p68, %p69
    %s72 = sadd.s32 %s71, 1
    %p75 = scmp.eq.s32.totalorder %s16, 1
    %p76 = scmp.ne.s32.totalorder %s71, %s73
    %p77 = scmp.eq.s32.totalorder %s16, 0
    %p78 = por %p76, %p77
    %p79 = scmp.ne.s32.totalorder %s71, %s73
    %p80 = scmp.eq.s32.totalorder %s21, 1
    %p81 = por %p79, %p80
    %p82 = scmp.ne.s32.totalorder %s73, %s74
    %p83 = scmp.eq.s32.totalorder %s21, 0
    %p84 = por %p82, %p83
    %p85 = scmp.ne.s32.totalorder %s73, %s74
    %p86 = scmp.eq.s32.totalorder %s22, 1
    %p87 = por %p85, %p86
    %p89 = scmp.ne.s32.totalorder %s74, %s88
    %p90 = scmp.eq.s32.totalorder %s22, 0
    %p91 = por %p89, %p90
    %s93 = sadd.s32 %s92, 1
    %p96 = scmp.eq.s32.totalorder %s16, 1
    %p97 = scmp.ne.s32.totalorder %s92, %s94
    %p98 = scmp.eq.s32.totalorder %s16, 0
    %p99 = por %p97, %p98
    %p100 = scmp.ne.s32.totalorder %s92, %s94
    %p101 = scmp.eq.s32.totalorder %s21, 1
    %p102 = por %p100, %p101
    %p103 = scmp.ne.s32.totalorder %s94, %s95
    %p104 = scmp.eq.s32.totalorder %s21, 0
    %p105 = por %p103, %p104
    %p106 = scmp.ne.s32.totalorder %s94, %s95
    %p107 = scmp.eq.s32.totalorder %s22, 1
    %p108 = por %p106, %p107
    %p110 = scmp.ne.s32.totalorder %s95, %s109
    %p111 = scmp.eq.s32.totalorder %s22, 0
    %p112 = por %p110, %p111
    %s114 = sadd.s32 %s113, 1
    %p117 = scmp.eq.s32.totalorder %s16, 1
    %p118 = scmp.ne.s32.totalorder %s113, %s115
    %p119 = scmp.eq.s32.totalorder %s16, 0
    %p120 = por %p118, %p119
    %p121 = scmp.ne.s32.totalorder %s113, %s115
    %p122 = scmp.eq.s32.totalorder %s21, 1
    %p123 = por %p121, %p122
    %p124 = scmp.ne.s32.totalorder %s115, %s116
    %p125 = scmp.eq.s32.totalorder %s21, 0
    %p126 = por %p124, %p125
    %p127 = scmp.ne.s32.totalorder %s115, %s116
    %p128 = scmp.eq.s32.totalorder %s22, 1
    %p129 = por %p127, %p128
    %p131 = scmp.ne.s32.totalorder %s116, %s130
    %p132 = scmp.eq.s32.totalorder %s22, 0
    %p133 = por %p131, %p132
    %s135 = sadd.s32 %s134, 1
    %p138 = scmp.eq.s32.totalorder %s16, 1
    %p139 = scmp.ne.s32.totalorder %s134, %s136
    %p140 = scmp.eq.s32.totalorder %s16, 0
    %p141 = por %p139, %p140
    %p142 = scmp.ne.s32.totalorder %s134, %s136
    %p143 = scmp.eq.s32.totalorder %s21, 1
    %p144 = por %p142, %p143
    %p145 = scmp.ne.s32.totalorder %s136, %s137
    %p146 = scmp.eq.s32.totalorder %s21, 0
    %p147 = por %p145, %p146
    %p148 = scmp.ne.s32.totalorder %s136, %s137
    %p149 = scmp.eq.s32.totalorder %s22, 1
    %p150 = por %p148, %p149
    %p152 = scmp.ne.s32.totalorder %s137, %s151
    %p153 = scmp.eq.s32.totalorder %s22, 0
    %p154 = por %p152, %p153
    %s156 = sadd.s32 %s155, 1
    %p159 = scmp.eq.s32.totalorder %s16, 1
    %p160 = scmp.ne.s32.totalorder %s155, %s157
    %p161 = scmp.eq.s32.totalorder %s16, 0
    %p162 = por %p160, %p161
    %p163 = scmp.ne.s32.totalorder %s155, %s157
    %p164 = scmp.eq.s32.totalorder %s21, 1
    %p165 = por %p163, %p164
    %p166 = scmp.ne.s32.totalorder %s157, %s158
    %p167 = scmp.eq.s32.totalorder %s21, 0
    %p168 = por %p166, %p167
    %p169 = scmp.ne.s32.totalorder %s157, %s158
    %p170 = scmp.eq.s32.totalorder %s22, 1
    %p171 = por %p169, %p170
    %p173 = scmp.ne.s32.totalorder %s158, %s172
    %p174 = scmp.eq.s32.totalorder %s22, 0
    %p175 = por %p173, %p174
    %s177 = sadd.s32 %s176, 1
    %p180 = scmp.eq.s32.totalorder %s16, 1
    %p181 = scmp.ne.s32.totalorder %s176, %s178
    %p182 = scmp.eq.s32.totalorder %s16, 0
    %p183 = por %p181, %p182
    %p184 = scmp.ne.s32.totalorder %s176, %s178
    %p185 = scmp.eq.s32.totalorder %s21, 1
    %p186 = por %p184, %p185
    %p187 = scmp.ne.s32.totalorder %s178, %s179
    %p188 = scmp.eq.s32.totalorder %s21, 0
    %p189 = por %p187, %p188
    %p190 = scmp.ne.s32.totalorder %s178, %s179
    %p191 = scmp.eq.s32.totalorder %s22, 1
    %p192 = por %p190, %p191
    %p194 = scmp.ne.s32.totalorder %s179, %s193
    %p195 = scmp.eq.s32.totalorder %s22, 0
    %p196 = por %p194, %p195
    %s198 = sadd.s32 %s197, 1
    %p201 = scmp.eq.s32.totalorder %s16, 1
    %p202 = scmp.ne.s32.totalorder %s197, %s199
    %p203 = scmp.eq.s32.totalorder %s16, 0
    %p204 = por %p202, %p203
    %p205 = scmp.ne.s32.totalorder %s197, %s199
    %p206 = scmp.eq.s32.totalorder %s21, 1
    %p207 = por %p205, %p206
    %p208 = scmp.ne.s32.totalorder %s199, %s200
    %p209 = scmp.eq.s32.totalorder %s21, 0
    %p210 = por %p208, %p209
    %p211 = scmp.ne.s32.totalorder %s199, %s200
    %p212 = scmp.eq.s32.totalorder %s22, 1
    %p213 = por %p211, %p212
    %p215 = scmp.ne.s32.totalorder %s200, %s214
    %p216 = scmp.eq.s32.totalorder %s22, 0
    %p217 = por %p215, %p216
    %s219 = sadd.s32 %s218, 1
    %p222 = scmp.eq.s32.totalorder %s16, 1
    %p223 = scmp.ne.s32.totalorder %s218, %s220
    %p224 = scmp.eq.s32.totalorder %s16, 0
    %p225 = por %p223, %p224
    %p226 = scmp.ne.s32.totalorder %s218, %s220
    %p227 = scmp.eq.s32.totalorder %s21, 1
    %p228 = por %p226, %p227
    %p229 = scmp.ne.s32.totalorder %s220, %s221
    %p230 = scmp.eq.s32.totalorder %s21, 0
    %p231 = por %p229, %p230
    %p232 = scmp.ne.s32.totalorder %s220, %s221
    %p233 = scmp.eq.s32.totalorder %s22, 1
    %p234 = por %p232, %p233
    %p236 = scmp.ne.s32.totalorder %s221, %s235
    %p237 = scmp.eq.s32.totalorder %s22, 0
    %p238 = por %p236, %p237
    %s239 = ssub.s32 %s16, %s23
    %p240 = scmp.eq.s32.totalorder %s239, 0
    %s242 = sadd.s32 %s241, 1
    %s243 = scalar_select %p240, %s241, %s242
    %p246 = pneg %p240
    %p247 = scmp.eq.s32.totalorder %s16, 1
    %p248 = por %p246, %p247
    %p249 = scmp.ne.s32.totalorder %s241, %s244
    %p250 = scmp.eq.s32.totalorder %s16, 0
    %p251 = por %p249, %p250
    %p252 = scmp.ne.s32.totalorder %s241, %s244
    %p253 = scmp.eq.s32.totalorder %s21, 1
    %p254 = por %p252, %p253
    %p255 = scmp.ne.s32.totalorder %s244, %s245
    %p256 = scmp.eq.s32.totalorder %s21, 0
    %p257 = por %p255, %p256
    %p258 = scmp.ne.s32.totalorder %s244, %s245
    %p259 = scmp.eq.s32.totalorder %s22, 1
    %p260 = por %p258, %p259
    %p262 = scmp.ne.s32.totalorder %s245, %s261
    %p263 = scmp.eq.s32.totalorder %s22, 0
    %p264 = por %p262, %p263
    %p265 = scmp.le.s32.totalorder 1, %s16
    %p266 = scmp.lt.s32.totalorder %s16, 3
    %p267 = pnand %p265, %p266
    %p268 = pneg %p267
    // Predicated region
    $region9: #{bottleneck_forward.1} parent=5 // pred_check
      _
    $region10: #{bottleneck_forward.1} parent=5 // pred_check_branch
      %270 = sbr.rel (%p267) target = $region12
    $region11: #{bottleneck_forward.1} parent=5 // pred_region
      %s271 = ssub.s32 %s16, 1
      // Predicated region
      $region13: #{bottleneck_forward.1} parent=11 // pred_check
        %p272 = pneg %p63
      $region14: #{bottleneck_forward.1} parent=11 // pred_check_branch
        %274 = sbr.rel (%p272) target = $region16
      $region15: #{bottleneck_forward.1} parent=11 // pred_region
        _
      $region16: #{bottleneck_forward.1} parent=11 // pred_fallthru
        _
      // Predicated region
      $region17: #{bottleneck_forward.1} parent=11 // pred_check
        %p275 = pneg %p84
      $region18: #{bottleneck_forward.1} parent=11 // pred_check_branch
        %277 = sbr.rel (%p275) target = $region20
      $region19: #{bottleneck_forward.1} parent=11 // pred_region
        _
      $region20: #{bottleneck_forward.1} parent=11 // pred_fallthru
        _
      // Predicated region
      $region21: #{bottleneck_forward.1} parent=11 // pred_check
        %p278 = pneg %p105
      $region22: #{bottleneck_forward.1} parent=11 // pred_check_branch
        %280 = sbr.rel (%p278) target = $region24
      $region23: #{bottleneck_forward.1} parent=11 // pred_region
        _
      $region24: #{bottleneck_forward.1} parent=11 // pred_fallthru
        _
      // Predicated region
      $region25: #{bottleneck_forward.1} parent=11 // pred_check
        %p281 = pneg %p126
      $region26: #{bottleneck_forward.1} parent=11 // pred_check_branch
        %283 = sbr.rel (%p281) target = $region28
      $region27: #{bottleneck_forward.1} parent=11 // pred_region
        _
      $region28: #{bottleneck_forward.1} parent=11 // pred_fallthru
        _
      // Predicated region
      $region29: #{bottleneck_forward.1} parent=11 // pred_check
        %p284 = pneg %p147
      $region30: #{bottleneck_forward.1} parent=11 // pred_check_branch
        %286 = sbr.rel (%p284) target = $region32
      $region31: #{bottleneck_forward.1} parent=11 // pred_region
        _
      $region32: #{bottleneck_forward.1} parent=11 // pred_fallthru
        _
      // Predicated region
      $region33: #{bottleneck_forward.1} parent=11 // pred_check
        %p287 = pneg %p168
      $region34: #{bottleneck_forward.1} parent=11 // pred_check_branch
        %289 = sbr.rel (%p287) target = $region36
      $region35: #{bottleneck_forward.1} parent=11 // pred_region
        _
      $region36: #{bottleneck_forward.1} parent=11 // pred_fallthru
        _
      // Predicated region
      $region37: #{bottleneck_forward.1} parent=11 // pred_check
        %p290 = pneg %p189
      $region38: #{bottleneck_forward.1} parent=11 // pred_check_branch
        %292 = sbr.rel (%p290) target = $region40
      $region39: #{bottleneck_forward.1} parent=11 // pred_region
        _
      $region40: #{bottleneck_forward.1} parent=11 // pred_fallthru
        _
      // Predicated region
      $region41: #{bottleneck_forward.1} parent=11 // pred_check
        %p293 = pneg %p210
      $region42: #{bottleneck_forward.1} parent=11 // pred_check_branch
        %295 = sbr.rel (%p293) target = $region44
      $region43: #{bottleneck_forward.1} parent=11 // pred_region
        _
      $region44: #{bottleneck_forward.1} parent=11 // pred_fallthru
        _
      // Predicated region
      $region45: #{bottleneck_forward.1} parent=11 // pred_check
        %p296 = pneg %p231
      $region46: #{bottleneck_forward.1} parent=11 // pred_check_branch
        %298 = sbr.rel (%p296) target = $region48
      $region47: #{bottleneck_forward.1} parent=11 // pred_region
        _
      $region48: #{bottleneck_forward.1} parent=11 // pred_fallthru
        _
    $region12: #{bottleneck_forward.1} parent=5 // pred_fallthru
      _
    %p299 = scmp.lt.s32.totalorder %s16, 2
    // Predicated region
    $region49: #{bottleneck_forward.1} parent=5 // pred_check
      %p300 = pneg %p299
    $region50: #{bottleneck_forward.1} parent=5 // pred_check_branch
      %302 = sbr.rel (%p300) target = $region52
    $region51: #{bottleneck_forward.1} parent=5 // pred_region
      // Predicated region
      $region53: #{bottleneck_forward.1} parent=51 // pred_check
        %p303 = pneg %p36
      $region54: #{bottleneck_forward.1} parent=51 // pred_check_branch
        %305 = sbr.rel (%p303) target = $region56
      $region55: #{bottleneck_forward.1} parent=51 // pred_region
        %p306 = scmp.lt.s32.totalorder %s16, 1
        %s307 = scalar_select %p306, %s16, 1
        %s308 = smul.addr %s307, 32
        %s309 = smul.addr %s308, 8
        %s310 = scalar_lea.vmem %s0, %s309
      $region56: #{bottleneck_forward.1} parent=51 // pred_fallthru
        _
    $region52: #{bottleneck_forward.1} parent=5 // pred_fallthru
      _
    %p311 = scmp.le.s32.totalorder 1, %s16
    %p312 = scmp.lt.s32.totalorder %s16, 3
    %p313 = pnand %p311, %p312
    %p314 = pneg %p313
    // Predicated region
    $region57: #{bottleneck_forward.1} parent=5 // pred_check
      _
    $region58: #{bottleneck_forward.1} parent=5 // pred_check_branch
      %316 = sbr.rel (%p313) target = $region60
    $region59: #{bottleneck_forward.1} parent=5 // pred_region
      %s317 = ssub.s32 %s16, 1
      %p318 = scmp.lt.s32.totalorder %s21, 1
      %s319 = scalar_select %p318, %s21, 1
      %s320 = smul.addr %s319, 32
      %s321 = smul.addr %s320, 8
      %s322 = scalar_lea.vmem %s0, %s321
      %p323 = pneg %p42
      %p324 = pneg %p39
      %p325 = pneg %p63
      %p326 = pneg %p60
      %p327 = pneg %p84
      %p328 = pneg %p81
      %p329 = pneg %p105
      %p330 = pneg %p102
      %p331 = pneg %p126
      %p332 = pneg %p123
      %p333 = pneg %p147
      %p334 = pneg %p144
      %p335 = pneg %p168
      %p336 = pneg %p165
      %p337 = pneg %p189
      %p338 = pneg %p186
      %p339 = pneg %p210
      %p340 = pneg %p207
      %p341 = pneg %p231
      %p342 = pneg %p228
      %p343 = pneg %p257
      %p344 = pneg %p254
      %p345 = scmp.lt.s32.totalorder %s21, 1
      %s346 = scalar_select %p345, %s21, 1
      %s347 = smul.addr %s346, 32
      %s348 = smul.addr %s347, 8
      %s349 = scalar_lea.vmem %s10, %s348
      %p350 = scmp.lt.s32.totalorder %s21, 1
      %s351 = scalar_select %p350, %s21, 1
      %s352 = smul.addr %s351, 32
      %s353 = smul.addr %s352, 8
      %s354 = scalar_lea.vmem %s0, %s353
      %p355 = scmp.lt.s32.totalorder %s21, 1
      %s356 = scalar_select %p355, %s21, 1
      %s357 = smul.addr %s356, 32
      %s358 = smul.addr %s357, 8
      %s359 = scalar_lea.vmem %s10, %s358
      %v361 = vld [vmem:[%s354] sm:$0xff]
      %v362 = vld [vmem:[%s354 + $0x8] sm:$0xff]
      %v363 = vld [vmem:[%s354 + $0x10] sm:$0xff]
      %v364 = vld [vmem:[%s354 + $0x18] sm:$0xff]
      %v365 = vld [vmem:[%s354 + $0x20] sm:$0xff]
      %v366 = vld [vmem:[%s354 + $0x28] sm:$0xff]
      %v367 = vld [vmem:[%s354 + $0x30] sm:$0xff]
      %v368 = vld [vmem:[%s354 + $0x38] sm:$0xff]
      %v369 = vld [vmem:[%s354 + $0x40] sm:$0xff]
      %v370 = vld [vmem:[%s354 + $0x48] sm:$0xff]
      %v371 = vld [vmem:[%s354 + $0x50] sm:$0xff]
      %v372 = vld [vmem:[%s354 + $0x58] sm:$0xff]
      %v373 = vld [vmem:[%s354 + $0x60] sm:$0xff]
      %v374 = vld [vmem:[%s354 + $0x68] sm:$0xff]
      %v375 = vld [vmem:[%s354 + $0x70] sm:$0xff]
      %v376 = vld [vmem:[%s354 + $0x78] sm:$0xff]
      %v377 = vld [vmem:[%s354 + $0x80] sm:$0xff]
      %v378 = vld [vmem:[%s354 + $0x88] sm:$0xff]
      %v379 = vld [vmem:[%s354 + $0x90] sm:$0xff]
      %v380 = vld [vmem:[%s354 + $0x98] sm:$0xff]
      %v381 = vld [vmem:[%s354 + $0xa0] sm:$0xff]
      %v382 = vld [vmem:[%s354 + $0xa8] sm:$0xff]
      %v383 = vld [vmem:[%s354 + $0xb0] sm:$0xff]
      %v384 = vld [vmem:[%s354 + $0xb8] sm:$0xff]
      %v385 = vld [vmem:[%s354 + $0xc0] sm:$0xff]
      %v386 = vld [vmem:[%s354 + $0xc8] sm:$0xff]
      %v387 = vld [vmem:[%s354 + $0xd0] sm:$0xff]
      %v388 = vld [vmem:[%s354 + $0xd8] sm:$0xff]
      %v389 = vld [vmem:[%s354 + $0xe0] sm:$0xff]
      %v390 = vld [vmem:[%s354 + $0xe8] sm:$0xff]
      %v391 = vld [vmem:[%s354 + $0xf0] sm:$0xff]
      %v392 = vld [vmem:[%s354 + $0xf8] sm:$0xff]
      %v393 = vpack.c.bf16 %v362, %v361
      %v394 = vpack.c.bf16 %v364, %v363
      %v395 = vpack.c.bf16 %v366, %v365
      %v396 = vpack.c.bf16 %v368, %v367
      %v397 = vpack.c.bf16 %v370, %v369
      %v398 = vpack.c.bf16 %v372, %v371
      %v399 = vpack.c.bf16 %v374, %v373
      %v400 = vpack.c.bf16 %v376, %v375
      %v401 = vpack.c.bf16 %v378, %v377
      %v402 = vpack.c.bf16 %v380, %v379
      %v403 = vpack.c.bf16 %v382, %v381
      %v404 = vpack.c.bf16 %v384, %v383
      %v405 = vpack.c.bf16 %v386, %v385
      %v406 = vpack.c.bf16 %v388, %v387
      %v407 = vpack.c.bf16 %v390, %v389
      %v408 = vpack.c.bf16 %v392, %v391
      %v409 = vld [vmem:[%s1] sm:$0xf]
      %v410 = vld [vmem:[%s1 + $0x4] sm:$0xf]
      %v411 = vld [vmem:[%s1 + $0x8] sm:$0xf]
      %v412 = vld [vmem:[%s1 + $0xc] sm:$0xf]
      %v413 = vld [vmem:[%s1 + $0x10] sm:$0xf]
      %v414 = vld [vmem:[%s1 + $0x14] sm:$0xf]
      %v415 = vld [vmem:[%s1 + $0x18] sm:$0xf]
      %v416 = vld [vmem:[%s1 + $0x1c] sm:$0xf]
      %v417 = vld [vmem:[%s1 + $0x20] sm:$0xf]
      %v418 = vld [vmem:[%s1 + $0x24] sm:$0xf]
      %v419 = vld [vmem:[%s1 + $0x28] sm:$0xf]
      %v420 = vld [vmem:[%s1 + $0x2c] sm:$0xf]
      %v421 = vld [vmem:[%s1 + $0x30] sm:$0xf]
      %v422 = vld [vmem:[%s1 + $0x34] sm:$0xf]
      %v423 = vld [vmem:[%s1 + $0x38] sm:$0xf]
      %v424 = vld [vmem:[%s1 + $0x3c] sm:$0xf]
      %v441 = vunpack.c.l.b16 %v409
      %v442 = vunpack.c.l.b16 %v410
      %v443 = vunpack.c.l.b16 %v411
      %v444 = vunpack.c.l.b16 %v412
      %v445 = vunpack.c.l.b16 %v413
      %v446 = vunpack.c.l.b16 %v414
      %v447 = vunpack.c.l.b16 %v415
      %v448 = vunpack.c.l.b16 %v416
      %v449 = vunpack.c.l.b16 %v417
      %v450 = vunpack.c.l.b16 %v418
      %v451 = vunpack.c.l.b16 %v419
      %v452 = vunpack.c.l.b16 %v420
      %v453 = vunpack.c.l.b16 %v421
      %v454 = vunpack.c.l.b16 %v422
      %v455 = vunpack.c.l.b16 %v423
      %v456 = vunpack.c.l.b16 %v424
      %v457 = vpack.c.b16 %v442, %v441
      %v458 = vpack.c.b16 %v444, %v443
      %v459 = vpack.c.b16 %v446, %v445
      %v460 = vpack.c.b16 %v448, %v447
      %v461 = vpack.c.b16 %v450, %v449
      %v462 = vpack.c.b16 %v452, %v451
      %v463 = vpack.c.b16 %v454, %v453
      %v464 = vpack.c.b16 %v456, %v455
      %473 = vmatprep.subr.bf16.mxu0 0
      %474 = vmatpush1.bf16.msra.mxu0 %v457
      %475 = vmatprep.subr.bf16.mxu0 0
      %476 = vmatpush1.bf16.msra.mxu0 %v458
      %477 = vmatprep.subr.bf16.mxu0 0
      %478 = vmatpush1.bf16.msra.mxu0 %v459
      %479 = vmatprep.subr.bf16.mxu0 0
      %480 = vmatpush1.bf16.msra.mxu0 %v460
      %481 = vmatprep.subr.bf16.mxu0 0
      %482 = vmatpush1.bf16.msra.mxu0 %v461
      %483 = vmatprep.subr.bf16.mxu0 0
      %484 = vmatpush1.bf16.msra.mxu0 %v462
      %485 = vmatprep.subr.bf16.mxu0 0
      %486 = vmatpush1.bf16.msra.mxu0 %v463
      %487 = vmatprep.subr.bf16.mxu0 0
      %488 = vmatpush1.bf16.msra.mxu0 %v464
      %489 = vmatprep.subr.bf16.mxu0 0
      %490 = vmatpush1.bf16.msra.mxu0 0
      %491 = vmatprep.subr.bf16.mxu0 0
      %492 = vmatpush1.bf16.msra.mxu0 0
      %493 = vmatprep.subr.bf16.mxu0 0
      %494 = vmatpush1.bf16.msra.mxu0 0
      %495 = vmatprep.subr.bf16.mxu0 0
      %496 = vmatpush1.bf16.msra.mxu0 0
      %497 = vmatprep.subr.bf16.mxu0 0
      %498 = vmatpush1.bf16.msra.mxu0 0
      %499 = vmatprep.subr.bf16.mxu0 0
      %500 = vmatpush1.bf16.msra.mxu0 0
      %501 = vmatprep.subr.bf16.mxu0 0
      %502 = vmatpush1.bf16.msra.mxu0 0
      %503 = vmatprep.subr.bf16.mxu0 0
      %504 = vmatpush1.bf16.msra.mxu0 0
      %505 = vmatprep.mubr.bf16.mxu0 0
      %506 = vmatmul.mubr.bf16.gmra.mrb[0].mxu0 %v393
      %v507 = vpop.f32.mrb[0].mxu0
      %v508 = vadd.f32 0.0, %v507
      %v509 = vpop.f32.mrb[0].mxu0
      %v510 = vpop.f32.mrb[0].mxu0
      %v511 = vadd.f32 0.0, %v510
      %v512 = vpop.f32.mrb[0].mxu0
      %513 = vmatprep.mubr.bf16.mxu0 0
      %514 = vmatmul.mubr.bf16.gmra.mrb[0].mxu0 %v394
      %v515 = vpop.f32.mrb[0].mxu0
      %v516 = vadd.f32 0.0, %v515
      %v517 = vpop.f32.mrb[0].mxu0
      %v518 = vpop.f32.mrb[0].mxu0
      %v519 = vadd.f32 0.0, %v518
      %v520 = vpop.f32.mrb[0].mxu0
      %521 = vmatprep.mubr.bf16.mxu0 0
      %522 = vmatmul.mubr.bf16.gmra.mrb[0].mxu0 %v395
      %v523 = vpop.f32.mrb[0].mxu0
      %v524 = vadd.f32 0.0, %v523
      %v525 = vpop.f32.mrb[0].mxu0
      %v526 = vpop.f32.mrb[0].mxu0
      %v527 = vadd.f32 0.0, %v526
      %v528 = vpop.f32.mrb[0].mxu0
      %529 = vmatprep.mubr.bf16.mxu0 0
      %530 = vmatmul.mubr.bf16.gmra.mrb[0].mxu0 %v396
      %v531 = vpop.f32.mrb[0].mxu0
      %v532 = vadd.f32 0.0, %v531
      %v533 = vpop.f32.mrb[0].mxu0
      %v534 = vpop.f32.mrb[0].mxu0
      %v535 = vadd.f32 0.0, %v534
      %v536 = vpop.f32.mrb[0].mxu0
      %537 = vmatprep.mubr.bf16.mxu0 0
      %538 = vmatmul.mubr.bf16.gmra.mrb[0].mxu0 %v397
      %v539 = vpop.f32.mrb[0].mxu0
      %v540 = vadd.f32 0.0, %v539
      %v541 = vpop.f32.mrb[0].mxu0
      %v542 = vpop.f32.mrb[0].mxu0
      %v543 = vadd.f32 0.0, %v542
      %v544 = vpop.f32.mrb[0].mxu0
      %545 = vmatprep.mubr.bf16.mxu0 0
      %546 = vmatmul.mubr.bf16.gmra.mrb[0].mxu0 %v398
      %v547 = vpop.f32.mrb[0].mxu0
      %v548 = vadd.f32 0.0, %v547
      %v549 = vpop.f32.mrb[0].mxu0
      %v550 = vpop.f32.mrb[0].mxu0
      %v551 = vadd.f32 0.0, %v550
      %v552 = vpop.f32.mrb[0].mxu0
      %553 = vmatprep.mubr.bf16.mxu0 0
      %554 = vmatmul.mubr.bf16.gmra.mrb[0].mxu0 %v399
      %v555 = vpop.f32.mrb[0].mxu0
      %v556 = vadd.f32 0.0, %v555
      %v557 = vpop.f32.mrb[0].mxu0
      %v558 = vpop.f32.mrb[0].mxu0
      %v559 = vadd.f32 0.0, %v558
      %v560 = vpop.f32.mrb[0].mxu0
      %561 = vmatprep.mubr.bf16.mxu0 0
      %562 = vmatmul.mubr.bf16.gmra.mrb[0].mxu0 %v400
      %v563 = vpop.f32.mrb[0].mxu0
      %v564 = vadd.f32 0.0, %v563
      %v565 = vpop.f32.mrb[0].mxu0
      %v566 = vpop.f32.mrb[0].mxu0
      %v567 = vadd.f32 0.0, %v566
      %v568 = vpop.f32.mrb[0].mxu0
      %569 = vmatprep.mubr.bf16.mxu0 0
      %570 = vmatmul.mubr.bf16.gmra.mrb[0].mxu0 %v401
      %v571 = vpop.f32.mrb[0].mxu0
      %v572 = vadd.f32 0.0, %v571
      %v573 = vpop.f32.mrb[0].mxu0
      %v574 = vpop.f32.mrb[0].mxu0
      %v575 = vadd.f32 0.0, %v574
      %v576 = vpop.f32.mrb[0].mxu0
      %577 = vmatprep.mubr.bf16.mxu0 0
      %578 = vmatmul.mubr.bf16.gmra.mrb[0].mxu0 %v402
      %v579 = vpop.f32.mrb[0].mxu0
      %v580 = vadd.f32 0.0, %v579
      %v581 = vpop.f32.mrb[0].mxu0
      %v582 = vpop.f32.mrb[0].mxu0
      %v583 = vadd.f32 0.0, %v582
      %v584 = vpop.f32.mrb[0].mxu0
      %585 = vmatprep.mubr.bf16.mxu0 0
      %586 = vmatmul.mubr.bf16.gmra.mrb[0].mxu0 %v403
      %v587 = vpop.f32.mrb[0].mxu0
      %v588 = vadd.f32 0.0, %v587
      %v589 = vpop.f32.mrb[0].mxu0
      %v590 = vpop.f32.mrb[0].mxu0
      %v591 = vadd.f32 0.0, %v590
      %v592 = vpop.f32.mrb[0].mxu0
      %593 = vmatprep.mubr.bf16.mxu0 0
      %594 = vmatmul.mubr.bf16.gmra.mrb[0].mxu0 %v404
      %v595 = vpop.f32.mrb[0].mxu0
      %v596 = vadd.f32 0.0, %v595
      %v597 = vpop.f32.mrb[0].mxu0
      %v598 = vpop.f32.mrb[0].mxu0
      %v599 = vadd.f32 0.0, %v598
      %v600 = vpop.f32.mrb[0].mxu0
      %601 = vmatprep.mubr.bf16.mxu0 0
      %602 = vmatmul.mubr.bf16.gmra.mrb[0].mxu0 %v405
      %v603 = vpop.f32.mrb[0].mxu0
      %v604 = vadd.f32 0.0, %v603
      %v605 = vpop.f32.mrb[0].mxu0
      %v606 = vpop.f32.mrb[0].mxu0
      %v607 = vadd.f32 0.0, %v606
      %v608 = vpop.f32.mrb[0].mxu0
      %609 = vmatprep.mubr.bf16.mxu0 0
      %610 = vmatmul.mubr.bf16.gmra.mrb[0].mxu0 %v406
      %v611 = vpop.f32.mrb[0].mxu0
      %v612 = vadd.f32 0.0, %v611
      %v613 = vpop.f32.mrb[0].mxu0
      %v614 = vpop.f32.mrb[0].mxu0
      %v615 = vadd.f32 0.0, %v614
      %v616 = vpop.f32.mrb[0].mxu0
      %617 = vmatprep.mubr.bf16.mxu0 0
      %618 = vmatmul.mubr.bf16.gmra.mrb[0].mxu0 %v407
      %v619 = vpop.f32.mrb[0].mxu0
      %v620 = vadd.f32 0.0, %v619
      %v621 = vpop.f32.mrb[0].mxu0
      %v622 = vpop.f32.mrb[0].mxu0
      %v623 = vadd.f32 0.0, %v622
      %v624 = vpop.f32.mrb[0].mxu0
      %625 = vmatprep.mubr.bf16.mxu0 0
      %626 = vmatmul.mubr.bf16.gmra.mrb[0].mxu0 %v408
      %v627 = vpop.f32.mrb[0].mxu0
      %v628 = vadd.f32 0.0, %v627
      %v629 = vpop.f32.mrb[0].mxu0
      %v630 = vpop.f32.mrb[0].mxu0
      %v631 = vadd.f32 0.0, %v630
      %v632 = vpop.f32.mrb[0].mxu0
      %633 = vdwg.mxu0
      %v634 = vld [vmem:[%s2] sm:$0x1]
      %v636 = vlaneseq
      %v637 = vshrl.u32 %v636, 7
      %v638 = vsub.s32 0, %v637
      %v639 = vrot.slane %v634, %v638
      %v641 = vmul.f32 %v508, %v639
      %v642 = vmul.f32 %v511, %v639
      %v643 = vmul.f32 %v516, %v639
      %v644 = vmul.f32 %v519, %v639
      %v645 = vmul.f32 %v524, %v639
      %v646 = vmul.f32 %v527, %v639
      %v647 = vmul.f32 %v532, %v639
      %v648 = vmul.f32 %v535, %v639
      %v649 = vmul.f32 %v540, %v639
      %v650 = vmul.f32 %v543, %v639
      %v651 = vmul.f32 %v548, %v639
      %v652 = vmul.f32 %v551, %v639
      %v653 = vmul.f32 %v556, %v639
      %v654 = vmul.f32 %v559, %v639
      %v655 = vmul.f32 %v564, %v639
      %v656 = vmul.f32 %v567, %v639
      %v657 = vmul.f32 %v572, %v639
      %v658 = vmul.f32 %v575, %v639
      %v659 = vmul.f32 %v580, %v639
      %v660 = vmul.f32 %v583, %v639
      %v661 = vmul.f32 %v588, %v639
      %v662 = vmul.f32 %v591, %v639
      %v663 = vmul.f32 %v596, %v639
      %v664 = vmul.f32 %v599, %v639
      %v665 = vmul.f32 %v604, %v639
      %v666 = vmul.f32 %v607, %v639
      %v667 = vmul.f32 %v612, %v639
      %v668 = vmul.f32 %v615, %v639
      %v669 = vmul.f32 %v620, %v639
      %v670 = vmul.f32 %v623, %v639
      %v671 = vmul.f32 %v628, %v639
      %v672 = vmul.f32 %v631, %v639
      %v673 = vld [vmem:[%s3] sm:$0x1]
      %v675 = vlaneseq
      %v676 = vshrl.u32 %v675, 7
      %v677 = vsub.s32 0, %v676
      %v678 = vrot.slane %v673, %v677
      %v680 = vadd.f32 %v641, %v678
      %v681 = vadd.f32 %v642, %v678
      %v682 = vadd.f32 %v643, %v678
      %v683 = vadd.f32 %v644, %v678
      %v684 = vadd.f32 %v645, %v678
      %v685 = vadd.f32 %v646, %v678
      %v686 = vadd.f32 %v647, %v678
      %v687 = vadd.f32 %v648, %v678
      %v688 = vadd.f32 %v649, %v678
      %v689 = vadd.f32 %v650, %v678
      %v690 = vadd.f32 %v651, %v678
      %v691 = vadd.f32 %v652, %v678
      %v692 = vadd.f32 %v653, %v678
      %v693 = vadd.f32 %v654, %v678
      %v694 = vadd.f32 %v655, %v678
      %v695 = vadd.f32 %v656, %v678
      %v696 = vadd.f32 %v657, %v678
      %v697 = vadd.f32 %v658, %v678
      %v698 = vadd.f32 %v659, %v678
      %v699 = vadd.f32 %v660, %v678
      %v700 = vadd.f32 %v661, %v678
      %v701 = vadd.f32 %v662, %v678
      %v702 = vadd.f32 %v663, %v678
      %v703 = vadd.f32 %v664, %v678
      %v704 = vadd.f32 %v665, %v678
      %v705 = vadd.f32 %v666, %v678
      %v706 = vadd.f32 %v667, %v678
      %v707 = vadd.f32 %v668, %v678
      %v708 = vadd.f32 %v669, %v678
      %v709 = vadd.f32 %v670, %v678
      %v710 = vadd.f32 %v671, %v678
      %v711 = vadd.f32 %v672, %v678
      %v712 = vmax.f32 %v680, 0.0
      %v713 = vmax.f32 %v681, 0.0
      %v714 = vmax.f32 %v682, 0.0
      %v715 = vmax.f32 %v683, 0.0
      %v716 = vmax.f32 %v684, 0.0
      %v717 = vmax.f32 %v685, 0.0
      %v718 = vmax.f32 %v686, 0.0
      %v719 = vmax.f32 %v687, 0.0
      %v720 = vmax.f32 %v688, 0.0
      %v721 = vmax.f32 %v689, 0.0
      %v722 = vmax.f32 %v690, 0.0
      %v723 = vmax.f32 %v691, 0.0
      %v724 = vmax.f32 %v692, 0.0
      %v725 = vmax.f32 %v693, 0.0
      %v726 = vmax.f32 %v694, 0.0
      %v727 = vmax.f32 %v695, 0.0
      %v728 = vmax.f32 %v696, 0.0
      %v729 = vmax.f32 %v697, 0.0
      %v730 = vmax.f32 %v698, 0.0
      %v731 = vmax.f32 %v699, 0.0
      %v732 = vmax.f32 %v700, 0.0
      %v733 = vmax.f32 %v701, 0.0
      %v734 = vmax.f32 %v702, 0.0
      %v735 = vmax.f32 %v703, 0.0
      %v736 = vmax.f32 %v704, 0.0
      %v737 = vmax.f32 %v705, 0.0
      %v738 = vmax.f32 %v706, 0.0
      %v739 = vmax.f32 %v707, 0.0
      %v740 = vmax.f32 %v708, 0.0
      %v741 = vmax.f32 %v709, 0.0
      %v742 = vmax.f32 %v710, 0.0
      %v743 = vmax.f32 %v711, 0.0
      %744 = vst [vmem:[#allocation2] sm:$0xff] 0.0
      %745 = vst [vmem:[#allocation2 + $0x8] sm:$0xff] 0.0
      %746 = vst [vmem:[#allocation2 + $0x10] sm:$0xff] 0.0
      %747 = vst [vmem:[#allocation2 + $0x18] sm:$0x1] 0.0
      %748 = vst [vmem:[#allocation2 + $0x20] sm:$0xff] 0.0
      %749 = vst [vmem:[#allocation2 + $0x28] sm:$0xff] 0.0
      %750 = vst [vmem:[#allocation2 + $0x30] sm:$0xff] 0.0
      %751 = vst [vmem:[#allocation2 + $0x38] sm:$0x1] 0.0
      %752 = vst [vmem:[#allocation2 + $0x40] sm:$0xff] 0.0
      %753 = vst [vmem:[#allocation2 + $0x48] sm:$0xff] 0.0
      %754 = vst [vmem:[#allocation2 + $0x50] sm:$0xff] 0.0
      %755 = vst [vmem:[#allocation2 + $0x58] sm:$0x1] 0.0
      %756 = vst [vmem:[#allocation2 + $0x60] sm:$0xff] 0.0
      %757 = vst [vmem:[#allocation2 + $0x68] sm:$0xff] 0.0
      %758 = vst [vmem:[#allocation2 + $0x70] sm:$0xff] 0.0
      %759 = vst [vmem:[#allocation2 + $0x78] sm:$0x1] 0.0
      %760 = vst [vmem:[#allocation2 + $0x80] sm:$0xff] 0.0
      %761 = vst [vmem:[#allocation2 + $0x88] sm:$0xff] 0.0
      %762 = vst [vmem:[#allocation2 + $0x90] sm:$0xff] 0.0
      %763 = vst [vmem:[#allocation2 + $0x98] sm:$0x1] 0.0
      %764 = vst [vmem:[#allocation2 + $0xa0] sm:$0xff] 0.0
      %765 = vst [vmem:[#allocation2 + $0xa8] sm:$0xff] 0.0
      %766 = vst [vmem:[#allocation2 + $0xb0] sm:$0xff] 0.0
      %767 = vst [vmem:[#allocation2 + $0xb8] sm:$0x1] 0.0
      %768 = vst [vmem:[#allocation2 + $0xc0] sm:$0xff] 0.0
      %769 = vst [vmem:[#allocation2 + $0xc8] sm:$0xff] 0.0
      %770 = vst [vmem:[#allocation2 + $0xd0] sm:$0xff] 0.0
      %771 = vst [vmem:[#allocation2 + $0xd8] sm:$0x1] 0.0
      %772 = vst [vmem:[#allocation2 + $0xe0] sm:$0xff] 0.0
      %773 = vst [vmem:[#allocation2 + $0xe8] sm:$0xff] 0.0
      %774 = vst [vmem:[#allocation2 + $0xf0] sm:$0xff] 0.0
      %775 = vst [vmem:[#allocation2 + $0xf8] sm:$0x1] 0.0
      %776 = vst [vmem:[#allocation2 + $0x100] sm:$0xff] 0.0
      %777 = vst [vmem:[#allocation2 + $0x108] sm:$0xff] 0.0
      %778 = vst [vmem:[#allocation2 + $0x110] sm:$0xff] 0.0
      %779 = vst [vmem:[#allocation2 + $0x118] sm:$0x1] 0.0
      %780 = vst [vmem:[#allocation2 + $0x120] sm:$0xff] 0.0
      %781 = vst [vmem:[#allocation2 + $0x128] sm:$0xff] 0.0
      %782 = vst [vmem:[#allocation2 + $0x130] sm:$0xff] 0.0
      %783 = vst [vmem:[#allocation2 + $0x138] sm:$0x1] 0.0
      %784 = vst [vmem:[#allocation2 + $0x140] sm:$0xff] 0.0
      %785 = vst [vmem:[#allocation2 + $0x148] sm:$0xff] 0.0
      %786 = vst [vmem:[#allocation2 + $0x150] sm:$0xff] 0.0
      %787 = vst [vmem:[#allocation2 + $0x158] sm:$0x1] 0.0
      %788 = vst [vmem:[#allocation2 + $0x160] sm:$0xff] 0.0
      %789 = vst [vmem:[#allocation2 + $0x168] sm:$0xff] 0.0
      %790 = vst [vmem:[#allocation2 + $0x170] sm:$0xff] 0.0
      %791 = vst [vmem:[#allocation2 + $0x178] sm:$0x1] 0.0
      %792 = vst [vmem:[#allocation2 + $0x180] sm:$0xff] 0.0
      %793 = vst [vmem:[#allocation2 + $0x188] sm:$0xff] 0.0
      %794 = vst [vmem:[#allocation2 + $0x190] sm:$0xff] 0.0
      %795 = vst [vmem:[#allocation2 + $0x198] sm:$0x1] 0.0
      %796 = vst [vmem:[#allocation2 + $0x1a0] sm:$0xff] 0.0
      %797 = vst [vmem:[#allocation2 + $0x1a8] sm:$0xff] 0.0
      %798 = vst [vmem:[#allocation2 + $0x1b0] sm:$0xff] 0.0
      %799 = vst [vmem:[#allocation2 + $0x1b8] sm:$0x1] 0.0
      %800 = vst [vmem:[#allocation2 + $0x1c0] sm:$0xff] 0.0
      %801 = vst [vmem:[#allocation2 + $0x1c8] sm:$0xff] 0.0
      %802 = vst [vmem:[#allocation2 + $0x1d0] sm:$0xff] 0.0
      %803 = vst [vmem:[#allocation2 + $0x1d8] sm:$0x1] 0.0
      %804 = vst [vmem:[#allocation2 + $0x1e0] sm:$0xff] 0.0
      %805 = vst [vmem:[#allocation2 + $0x1e8] sm:$0xff] 0.0
      %806 = vst [vmem:[#allocation2 + $0x1f0] sm:$0xff] 0.0
      %807 = vst [vmem:[#allocation2 + $0x1f8] sm:$0x1] 0.0
      %808 = vst [vmem:[#allocation2 + $0x200] sm:$0xff] 0.0
      %809 = vst [vmem:[#allocation2 + $0x208] sm:$0xff] 0.0
      %810 = vst [vmem:[#allocation2 + $0x210] sm:$0xff] 0.0
      %811 = vst [vmem:[#allocation2 + $0x218] sm:$0x1] 0.0
      %812 = vst [vmem:[#allocation2 + $0x220] sm:$0xff] 0.0
      %813 = vst [vmem:[#allocation2 + $0x228] sm:$0xff] 0.0
      %814 = vst [vmem:[#allocation2 + $0x230] sm:$0xff] 0.0
      %815 = vst [vmem:[#allocation2 + $0x238] sm:$0x1] 0.0
      %s816 = scalar_lea.vmem [#allocation2], 32
      %817 = vst [vmem:[%s816 + $0x8] sm:$0xff] %v712
      %818 = vst [vmem:[%s816 + $0x10] sm:$0xff] %v713
      %819 = vst [vmem:[%s816 + $0x28] sm:$0xff] %v714
      %820 = vst [vmem:[%s816 + $0x30] sm:$0xff] %v715
      %821 = vst [vmem:[%s816 + $0x48] sm:$0xff] %v716
      %822 = vst [vmem:[%s816 + $0x50] sm:$0xff] %v717
      %823 = vst [vmem:[%s816 + $0x68] sm:$0xff] %v718
      %824 = vst [vmem:[%s816 + $0x70] sm:$0xff] %v719
      %825 = vst [vmem:[%s816 + $0x88] sm:$0xff] %v720
      %826 = vst [vmem:[%s816 + $0x90] sm:$0xff] %v721
      %827 = vst [vmem:[%s816 + $0xa8] sm:$0xff] %v722
      %828 = vst [vmem:[%s816 + $0xb0] sm:$0xff] %v723
      %829 = vst [vmem:[%s816 + $0xc8] sm:$0xff] %v724
      %830 = vst [vmem:[%s816 + $0xd0] sm:$0xff] %v725
      %831 = vst [vmem:[%s816 + $0xe8] sm:$0xff] %v726
      %832 = vst [vmem:[%s816 + $0xf0] sm:$0xff] %v727
      %833 = vst [vmem:[%s816 + $0x108] sm:$0xff] %v728
      %834 = vst [vmem:[%s816 + $0x110] sm:$0xff] %v729
      %835 = vst [vmem:[%s816 + $0x128] sm:$0xff] %v730
      %836 = vst [vmem:[%s816 + $0x130] sm:$0xff] %v731
      %837 = vst [vmem:[%s816 + $0x148] sm:$0xff] %v732
      %838 = vst [vmem:[%s816 + $0x150] sm:$0xff] %v733
      %839 = vst [vmem:[%s816 + $0x168] sm:$0xff] %v734
      %840 = vst [vmem:[%s816 + $0x170] sm:$0xff] %v735
      %841 = vst [vmem:[%s816 + $0x188] sm:$0xff] %v736
      %842 = vst [vmem:[%s816 + $0x190] sm:$0xff] %v737
      %843 = vst [vmem:[%s816 + $0x1a8] sm:$0xff] %v738
      %844 = vst [vmem:[%s816 + $0x1b0] sm:$0xff] %v739
      %845 = vst [vmem:[%s816 + $0x1c8] sm:$0xff] %v740
      %846 = vst [vmem:[%s816 + $0x1d0] sm:$0xff] %v741
      %847 = vst [vmem:[%s816 + $0x1e8] sm:$0xff] %v742
      %848 = vst [vmem:[%s816 + $0x1f0] sm:$0xff] %v743
      %v849 = vld [vmem:[#allocation2 + $0x7] sm:$0xff]
      %v850 = vld [vmem:[#allocation2 + $0xf] sm:$0xff]
      %v851 = vld [vmem:[#allocation2 + $0x27] sm:$0xff]
      %v852 = vld [vmem:[#allocation2 + $0x2f] sm:$0xff]
      %v853 = vld [vmem:[#allocation2 + $0x47] sm:$0xff]
      %v854 = vld [vmem:[#allocation2 + $0x4f] sm:$0xff]
      %v855 = vld [vmem:[#allocation2 + $0x67] sm:$0xff]
      %v856 = vld [vmem:[#allocation2 + $0x6f] sm:$0xff]
      %v857 = vld [vmem:[#allocation2 + $0x87] sm:$0xff]
      %v858 = vld [vmem:[#allocation2 + $0x8f] sm:$0xff]
      %v859 = vld [vmem:[#allocation2 + $0xa7] sm:$0xff]
      %v860 = vld [vmem:[#allocation2 + $0xaf] sm:$0xff]
      %v861 = vld [vmem:[#allocation2 + $0xc7] sm:$0xff]
      %v862 = vld [vmem:[#allocation2 + $0xcf] sm:$0xff]
      %v863 = vld [vmem:[#allocation2 + $0xe7] sm:$0xff]
      %v864 = vld [vmem:[#allocation2 + $0xef] sm:$0xff]
      %v865 = vld [vmem:[#allocation2 + $0x107] sm:$0xff]
      %v866 = vld [vmem:[#allocation2 + $0x10f] sm:$0xff]
      %v867 = vld [vmem:[#allocation2 + $0x127] sm:$0xff]
      %v868 = vld [vmem:[#allocation2 + $0x12f] sm:$0xff]
      %v869 = vld [vmem:[#allocation2 + $0x147] sm:$0xff]
      %v870 = vld [vmem:[#allocation2 + $0x14f] sm:$0xff]
      %v871 = vld [vmem:[#allocation2 + $0x167] sm:$0xff]
      %v872 = vld [vmem:[#allocation2 + $0x16f] sm:$0xff]
      %v873 = vld [vmem:[#allocation2 + $0x187] sm:$0xff]
      %v874 = vld [vmem:[#allocation2 + $0x18f] sm:$0xff]
      %v875 = vld [vmem:[#allocation2 + $0x1a7] sm:$0xff]
      %v876 = vld [vmem:[#allocation2 + $0x1af] sm:$0xff]
      %v877 = vld [vmem:[#allocation2 + $0x1c7] sm:$0xff]
      %v878 = vld [vmem:[#allocation2 + $0x1cf] sm:$0xff]
      %v879 = vld [vmem:[#allocation2 + $0x1e7] sm:$0xff]
      %v880 = vld [vmem:[#allocation2 + $0x1ef] sm:$0xff]
      %v881 = vpack.c.bf16 %v850, %v849
      %v882 = vpack.c.bf16 %v852, %v851
      %v883 = vpack.c.bf16 %v854, %v853
      %v884 = vpack.c.bf16 %v856, %v855
      %v885 = vpack.c.bf16 %v858, %v857
      %v886 = vpack.c.bf16 %v860, %v859
      %v887 = vpack.c.bf16 %v862, %v861
      %v888 = vpack.c.bf16 %v864, %v863
      %v889 = vpack.c.bf16 %v866, %v865
      %v890 = vpack.c.bf16 %v868, %v867
      %v891 = vpack.c.bf16 %v870, %v869
      %v892 = vpack.c.bf16 %v872, %v871
      %v893 = vpack.c.bf16 %v874, %v873
      %v894 = vpack.c.bf16 %v876, %v875
      %v895 = vpack.c.bf16 %v878, %v877
      %v896 = vpack.c.bf16 %v880, %v879
      %v897 = vld [vmem:[%s4] sm:$0xf]
      %v898 = vld [vmem:[%s4 + $0x4] sm:$0xf]
      %v899 = vld [vmem:[%s4 + $0x8] sm:$0xf]
      %v900 = vld [vmem:[%s4 + $0xc] sm:$0xf]
      %v901 = vld [vmem:[%s4 + $0x10] sm:$0xf]
      %v902 = vld [vmem:[%s4 + $0x14] sm:$0xf]
      %v903 = vld [vmem:[%s4 + $0x18] sm:$0xf]
      %v904 = vld [vmem:[%s4 + $0x1c] sm:$0xf]
      %v905 = vld [vmem:[%s4 + $0x20] sm:$0xf]
      %v906 = vld [vmem:[%s4 + $0x24] sm:$0xf]
      %v907 = vld [vmem:[%s4 + $0x28] sm:$0xf]
      %v908 = vld [vmem:[%s4 + $0x2c] sm:$0xf]
      %v909 = vld [vmem:[%s4 + $0x30] sm:$0xf]
      %v910 = vld [vmem:[%s4 + $0x34] sm:$0xf]
      %v911 = vld [vmem:[%s4 + $0x38] sm:$0xf]
      %v912 = vld [vmem:[%s4 + $0x3c] sm:$0xf]
      %v913 = vld [vmem:[#allocation2 + $0x8] sm:$0xff]
      %v914 = vld [vmem:[#allocation2 + $0x10] sm:$0xff]
      %v915 = vld [vmem:[#allocation2 + $0x28] sm:$0xff]
      %v916 = vld [vmem:[#allocation2 + $0x30] sm:$0xff]
      %v917 = vld [vmem:[#allocation2 + $0x48] sm:$0xff]
      %v918 = vld [vmem:[#allocation2 + $0x50] sm:$0xff]
      %v919 = vld [vmem:[#allocation2 + $0x68] sm:$0xff]
      %v920 = vld [vmem:[#allocation2 + $0x70] sm:$0xff]
      %v921 = vld [vmem:[#allocation2 + $0x88] sm:$0xff]
      %v922 = vld [vmem:[#allocation2 + $0x90] sm:$0xff]
      %v923 = vld [vmem:[#allocation2 + $0xa8] sm:$0xff]
      %v924 = vld [vmem:[#allocation2 + $0xb0] sm:$0xff]
      %v925 = vld [vmem:[#allocation2 + $0xc8] sm:$0xff]
      %v926 = vld [vmem:[#allocation2 + $0xd0] sm:$0xff]
      %v927 = vld [vmem:[#allocation2 + $0xe8] sm:$0xff]
      %v928 = vld [vmem:[#allocation2 + $0xf0] sm:$0xff]
      %v929 = vld [vmem:[#allocation2 + $0x108] sm:$0xff]
      %v930 = vld [vmem:[#allocation2 + $0x110] sm:$0xff]
      %v931 = vld [vmem:[#allocation2 + $0x128] sm:$0xff]
      %v932 = vld [vmem:[#allocation2 + $0x130] sm:$0xff]
      %v933 = vld [vmem:[#allocation2 + $0x148] sm:$0xff]
      %v934 = vld [vmem:[#allocation2 + $0x150] sm:$0xff]
      %v935 = vld [vmem:[#allocation2 + $0x168] sm:$0xff]
      %v936 = vld [vmem:[#allocation2 + $0x170] sm:$0xff]
      %v937 = vld [vmem:[#allocation2 + $0x188] sm:$0xff]
      %v938 = vld [vmem:[#allocation2 + $0x190] sm:$0xff]
      %v939 = vld [vmem:[#allocation2 + $0x1a8] sm:$0xff]
      %v940 = vld [vmem:[#allocation2 + $0x1b0] sm:$0xff]
      %v941 = vld [vmem:[#allocation2 + $0x1c8] sm:$0xff]
      %v942 = vld [vmem:[#allocation2 + $0x1d0] sm:$0xff]
      %v943 = vld [vmem:[#allocation2 + $0x1e8] sm:$0xff]
      %v944 = vld [vmem:[#allocation2 + $0x1f0] sm:$0xff]
      %v945 = vpack.c.bf16 %v914, %v913
      %v946 = vpack.c.bf16 %v916, %v915
      %v947 = vpack.c.bf16 %v918, %v917
      %v948 = vpack.c.bf16 %v920, %v919
      %v949 = vpack.c.bf16 %v922, %v921
      %v950 = vpack.c.bf16 %v924, %v923
      %v951 = vpack.c.bf16 %v926, %v925
      %v952 = vpack.c.bf16 %v928, %v927
      %v953 = vpack.c.bf16 %v930, %v929
      %v954 = vpack.c.bf16 %v932, %v931
      %v955 = vpack.c.bf16 %v934, %v933
      %v956 = vpack.c.bf16 %v936, %v935
      %v957 = vpack.c.bf16 %v938, %v937
      %v958 = vpack.c.bf16 %v940, %v939
      %v959 = vpack.c.bf16 %v942, %v941
      %v960 = vpack.c.bf16 %v944, %v943
      %s961 = scalar_lea.vmem %s4, 64
      %v962 = vld [vmem:[%s961] sm:$0xf]
      %v963 = vld [vmem:[%s961 + $0x4] sm:$0xf]
      %v964 = vld [vmem:[%s961 + $0x8] sm:$0xf]
      %v965 = vld [vmem:[%s961 + $0xc] sm:$0xf]
      %v966 = vld [vmem:[%s961 + $0x10] sm:$0xf]
      %v967 = vld [vmem:[%s961 + $0x14] sm:$0xf]
      %v968 = vld [vmem:[%s961 + $0x18] sm:$0xf]
      %v969 = vld [vmem:[%s961 + $0x1c] sm:$0xf]
      %v970 = vld [vmem:[%s961 + $0x20] sm:$0xf]
      %v971 = vld [vmem:[%s961 + $0x24] sm:$0xf]
      %v972 = vld [vmem:[%s961 + $0x28] sm:$0xf]
      %v973 = vld [vmem:[%s961 + $0x2c] sm:$0xf]
      %v974 = vld [vmem:[%s961 + $0x30] sm:$0xf]
      %v975 = vld [vmem:[%s961 + $0x34] sm:$0xf]
      %v976 = vld [vmem:[%s961 + $0x38] sm:$0xf]
      %v977 = vld [vmem:[%s961 + $0x3c] sm:$0xf]
      %v994 = vunpack.c.l.b16 %v962
      %v995 = vunpack.c.l.b16 %v963
      %v996 = vunpack.c.l.b16 %v964
      %v997 = vunpack.c.l.b16 %v965
      %v998 = vunpack.c.l.b16 %v966
      %v999 = vunpack.c.l.b16 %v967
      %v1000 = vunpack.c.l.b16 %v968
      %v1001 = vunpack.c.l.b16 %v969
      %v1002 = vunpack.c.l.b16 %v970
      %v1003 = vunpack.c.l.b16 %v971
      %v1004 = vunpack.c.l.b16 %v972
      %v1005 = vunpack.c.l.b16 %v973
      %v1006 = vunpack.c.l.b16 %v974
      %v1007 = vunpack.c.l.b16 %v975
      %v1008 = vunpack.c.l.b16 %v976
      %v1009 = vunpack.c.l.b16 %v977
      %v1010 = vpack.c.b16 %v995, %v994
      %v1011 = vpack.c.b16 %v997, %v996
      %v1012 = vpack.c.b16 %v999, %v998
      %v1013 = vpack.c.b16 %v1001, %v1000
      %v1014 = vpack.c.b16 %v1003, %v1002
      %v1015 = vpack.c.b16 %v1005, %v1004
      %v1016 = vpack.c.b16 %v1007, %v1006
      %v1017 = vpack.c.b16 %v1009, %v1008
      %1026 = vmatprep.subr.bf16.mxu0 0
      %1027 = vmatpush1.bf16.msra.mxu0 %v1010
      %1028 = vmatprep.subr.bf16.mxu0 0
      %1029 = vmatpush1.bf16.msra.mxu0 %v1011
      %1030 = vmatprep.subr.bf16.mxu0 0
      %1031 = vmatpush1.bf16.msra.mxu0 %v1012
      %1032 = vmatprep.subr.bf16.mxu0 0
      %1033 = vmatpush1.bf16.msra.mxu0 %v1013
      %1034 = vmatprep.subr.bf16.mxu0 0
      %1035 = vmatpush1.bf16.msra.mxu0 %v1014
      %1036 = vmatprep.subr.bf16.mxu0 0
      %1037 = vmatpush1.bf16.msra.mxu0 %v1015
      %1038 = vmatprep.subr.bf16.mxu0 0
      %1039 = vmatpush1.bf16.msra.mxu0 %v1016
      %1040 = vmatprep.subr.bf16.mxu0 0
      %1041 = vmatpush1.bf16.msra.mxu0 %v1017
      %1042 = vmatprep.subr.bf16.mxu0 0
      %1043 = vmatpush1.bf16.msra.mxu0 0
      %1044 = vmatprep.subr.bf16.mxu0 0
      %1045 = vmatpush1.bf16.msra.mxu0 0
      %1046 = vmatprep.subr.bf16.mxu0 0
      %1047 = vmatpush1.bf16.msra.mxu0 0
      %1048 = vmatprep.subr.bf16.mxu0 0
      %1049 = vmatpush1.bf16.msra.mxu0 0
      %1050 = vmatprep.subr.bf16.mxu0 0
      %1051 = vmatpush1.bf16.msra.mxu0 0
      %1052 = vmatprep.subr.bf16.mxu0 0
      %1053 = vmatpush1.bf16.msra.mxu0 0
      %1054 = vmatprep.subr.bf16.mxu0 0
      %1055 = vmatpush1.bf16.msra.mxu0 0
      %1056 = vmatprep.subr.bf16.mxu0 0
      %1057 = vmatpush1.bf16.msra.mxu0 0
      %1058 = vmatprep.mubr.bf16.mxu0 0
      %1059 = vmatmul.mubr.bf16.gmra.mrb[0].mxu0 %v945
      %v1060 = vpop.f32.mrb[0].mxu0
      %v1061 = vadd.f32 0.0, %v1060
      %v1062 = vpop.f32.mrb[0].mxu0
      %v1063 = vpop.f32.mrb[0].mxu0
      %v1064 = vadd.f32 0.0, %v1063
      %v1065 = vpop.f32.mrb[0].mxu0
      %1066 = vmatprep.mubr.bf16.mxu0 0
      %1067 = vmatmul.mubr.bf16.gmra.mrb[0].mxu0 %v946
      %v1068 = vpop.f32.mrb[0].mxu0
      %v1069 = vadd.f32 0.0, %v1068
      %v1070 = vpop.f32.mrb[0].mxu0
      %v1071 = vpop.f32.mrb[0].mxu0
      %v1072 = vadd.f32 0.0, %v1071
      %v1073 = vpop.f32.mrb[0].mxu0
      %1074 = vmatprep.mubr.bf16.mxu0 0
      %1075 = vmatmul.mubr.bf16.gmra.mrb[0].mxu0 %v947
      %v1076 = vpop.f32.mrb[0].mxu0
      %v1077 = vadd.f32 0.0, %v1076
      %v1078 = vpop.f32.mrb[0].mxu0
      %v1079 = vpop.f32.mrb[0].mxu0
      %v1080 = vadd.f32 0.0, %v1079
      %v1081 = vpop.f32.mrb[0].mxu0
      %1082 = vmatprep.mubr.bf16.mxu0 0
      %1083 = vmatmul.mubr.bf16.gmra.mrb[0].mxu0 %v948
      %v1084 = vpop.f32.mrb[0].mxu0
      %v1085 = vadd.f32 0.0, %v1084
      %v1086 = vpop.f32.mrb[0].mxu0
      %v1087 = vpop.f32.mrb[0].mxu0
      %v1088 = vadd.f32 0.0, %v1087
      %v1089 = vpop.f32.mrb[0].mxu0
      %1090 = vmatprep.mubr.bf16.mxu0 0
      %1091 = vmatmul.mubr.bf16.gmra.mrb[0].mxu0 %v949
      %v1092 = vpop.f32.mrb[0].mxu0
      %v1093 = vadd.f32 0.0, %v1092
      %v1094 = vpop.f32.mrb[0].mxu0
      %v1095 = vpop.f32.mrb[0].mxu0
      %v1096 = vadd.f32 0.0, %v1095
      %v1097 = vpop.f32.mrb[0].mxu0
      %1098 = vmatprep.mubr.bf16.mxu0 0
      %1099 = vmatmul.mubr.bf16.gmra.mrb[0].mxu0 %v950
      %v1100 = vpop.f32.mrb[0].mxu0
      %v1101 = vadd.f32 0.0, %v1100
      %v1102 = vpop.f32.mrb[0].mxu0
      %v1103 = vpop.f32.mrb[0].mxu0
      %v1104 = vadd.f32 0.0, %v1103
      %v1105 = vpop.f32.mrb[0].mxu0
      %1106 = vmatprep.mubr.bf16.mxu0 0
      %1107 = vmatmul.mubr.bf16.gmra.mrb[0].mxu0 %v951
      %v1108 = vpop.f32.mrb[0].mxu0
      %v1109 = vadd.f32 0.0, %v1108
      %v1110 = vpop.f32.mrb[0].mxu0
      %v1111 = vpop.f32.mrb[0].mxu0
      %v1112 = vadd.f32 0.0, %v1111
      %v1113 = vpop.f32.mrb[0].mxu0
      %1114 = vmatprep.mubr.bf16.mxu0 0
      %1115 = vmatmul.mubr.bf16.gmra.mrb[0].mxu0 %v952
      %v1116 = vpop.f32.mrb[0].mxu0
      %v1117 = vadd.f32 0.0, %v1116
      %v1118 = vpop.f32.mrb[0].mxu0
      %v1119 = vpop.f32.mrb[0].mxu0
      %v1120 = vadd.f32 0.0, %v1119
      %v1121 = vpop.f32.mrb[0].mxu0
      %1122 = vmatprep.mubr.bf16.mxu0 0
      %1123 = vmatmul.mubr.bf16.gmra.mrb[0].mxu0 %v953
      %v1124 = vpop.f32.mrb[0].mxu0
      %v1125 = vadd.f32 0.0, %v1124
      %v1126 = vpop.f32.mrb[0].mxu0
      %v1127 = vpop.f32.mrb[0].mxu0
      %v1128 = vadd.f32 0.0, %v1127
      %v1129 = vpop.f32.mrb[0].mxu0
      %1130 = vmatprep.mubr.bf16.mxu0 0
      %1131 = vmatmul.mubr.bf16.gmra.mrb[0].mxu0 %v954
      %v1132 = vpop.f32.mrb[0].mxu0
      %v1133 = vadd.f32 0.0, %v1132
      %v1134 = vpop.f32.mrb[0].mxu0
      %v1135 = vpop.f32.mrb[0].mxu0
      %v1136 = vadd.f32 0.0, %v1135
      %v1137 = vpop.f32.mrb[0].mxu0
      %1138 = vmatprep.mubr.bf16.mxu0 0
      %1139 = vmatmul.mubr.bf16.gmra.mrb[0].mxu0 %v955
      %v1140 = vpop.f32.mrb[0].mxu0
      %v1141 = vadd.f32 0.0, %v1140
      %v1142 = vpop.f32.mrb[0].mxu0
      %v1143 = vpop.f32.mrb[0].mxu0
      %v1144 = vadd.f32 0.0, %v1143
      %v1145 = vpop.f32.mrb[0].mxu0
      %1146 = vmatprep.mubr.bf16.mxu0 0
      %1147 = vmatmul.mubr.bf16.gmra.mrb[0].mxu0 %v956
      %v1148 = vpop.f32.mrb[0].mxu0
      %v1149 = vadd.f32 0.0, %v1148
      %v1150 = vpop.f32.mrb[0].mxu0
      %v1151 = vpop.f32.mrb[0].mxu0
      %v1152 = vadd.f32 0.0, %v1151
      %v1153 = vpop.f32.mrb[0].mxu0
      %1154 = vmatprep.mubr.bf16.mxu0 0
      %1155 = vmatmul.mubr.bf16.gmra.mrb[0].mxu0 %v957
      %v1156 = vpop.f32.mrb[0].mxu0
      %v1157 = vadd.f32 0.0, %v1156
      %v1158 = vpop.f32.mrb[0].mxu0
      %v1159 = vpop.f32.mrb[0].mxu0
      %v1160 = vadd.f32 0.0, %v1159
      %v1161 = vpop.f32.mrb[0].mxu0
      %1162 = vmatprep.mubr.bf16.mxu0 0
      %1163 = vmatmul.mubr.bf16.gmra.mrb[0].mxu0 %v958
      %v1164 = vpop.f32.mrb[0].mxu0
      %v1165 = vadd.f32 0.0, %v1164
      %v1166 = vpop.f32.mrb[0].mxu0
      %v1167 = vpop.f32.mrb[0].mxu0
      %v1168 = vadd.f32 0.0, %v1167
      %v1169 = vpop.f32.mrb[0].mxu0
      %1170 = vmatprep.mubr.bf16.mxu0 0
      %1171 = vmatmul.mubr.bf16.gmra.mrb[0].mxu0 %v959
      %v1172 = vpop.f32.mrb[0].mxu0
      %v1173 = vadd.f32 0.0, %v1172
      %v1174 = vpop.f32.mrb[0].mxu0
      %v1175 = vpop.f32.mrb[0].mxu0
      %v1176 = vadd.f32 0.0, %v1175
      %v1177 = vpop.f32.mrb[0].mxu0
      %1178 = vmatprep.mubr.bf16.mxu0 0
      %1179 = vmatmul.mubr.bf16.gmra.mrb[0].mxu0 %v960
      %v1180 = vpop.f32.mrb[0].mxu0
      %v1181 = vadd.f32 0.0, %v1180
      %v1182 = vpop.f32.mrb[0].mxu0
      %v1183 = vpop.f32.mrb[0].mxu0
      %v1184 = vadd.f32 0.0, %v1183
      %v1185 = vpop.f32.mrb[0].mxu0
      %1186 = vdwg.mxu0
      %v1203 = vunpack.c.l.b16 %v897
      %v1204 = vunpack.c.l.b16 %v898
      %v1205 = vunpack.c.l.b16 %v899
      %v1206 = vunpack.c.l.b16 %v900
      %v1207 = vunpack.c.l.b16 %v901
      %v1208 = vunpack.c.l.b16 %v902
      %v1209 = vunpack.c.l.b16 %v903
      %v1210 = vunpack.c.l.b16 %v904
      %v1211 = vunpack.c.l.b16 %v905
      %v1212 = vunpack.c.l.b16 %v906
      %v1213 = vunpack.c.l.b16 %v907
      %v1214 = vunpack.c.l.b16 %v908
      %v1215 = vunpack.c.l.b16 %v909
      %v1216 = vunpack.c.l.b16 %v910
      %v1217 = vunpack.c.l.b16 %v911
      %v1218 = vunpack.c.l.b16 %v912
      %v1219 = vpack.c.b16 %v1204, %v1203
      %v1220 = vpack.c.b16 %v1206, %v1205
      %v1221 = vpack.c.b16 %v1208, %v1207
      %v1222 = vpack.c.b16 %v1210, %v1209
      %v1223 = vpack.c.b16 %v1212, %v1211
      %v1224 = vpack.c.b16 %v1214, %v1213
      %v1225 = vpack.c.b16 %v1216, %v1215
      %v1226 = vpack.c.b16 %v1218, %v1217
      %1235 = vmatprep.subr.bf16.mxu0 0
      %1236 = vmatpush1.bf16.msra.mxu0 %v1219
      %1237 = vmatprep.subr.bf16.mxu0 0
      %1238 = vmatpush1.bf16.msra.mxu0 %v1220
      %1239 = vmatprep.subr.bf16.mxu0 0
      %1240 = vmatpush1.bf16.msra.mxu0 %v1221
      %1241 = vmatprep.subr.bf16.mxu0 0
      %1242 = vmatpush1.bf16.msra.mxu0 %v1222
      %1243 = vmatprep.subr.bf16.mxu0 0
      %1244 = vmatpush1.bf16.msra.mxu0 %v1223
      %1245 = vmatprep.subr.bf16.mxu0 0
      %1246 = vmatpush1.bf16.msra.mxu0 %v1224
      %1247 = vmatprep.subr.bf16.mxu0 0
      %1248 = vmatpush1.bf16.msra.mxu0 %v1225
      %1249 = vmatprep.subr.bf16.mxu0 0
      %1250 = vmatpush1.bf16.msra.mxu0 %v1226
      %1251 = vmatprep.subr.bf16.mxu0 0
      %1252 = vmatpush1.bf16.msra.mxu0 0
      %1253 = vmatprep.subr.bf16.mxu0 0
      %1254 = vmatpush1.bf16.msra.mxu0 0
      %1255 = vmatprep.subr.bf16.mxu0 0
      %1256 = vmatpush1.bf16.msra.mxu0 0
      %1257 = vmatprep.subr.bf16.mxu0 0
      %1258 = vmatpush1.bf16.msra.mxu0 0
      %1259 = vmatprep.subr.bf16.mxu0 0
      %1260 = vmatpush1.bf16.msra.mxu0 0
      %1261 = vmatprep.subr.bf16.mxu0 0
      %1262 = vmatpush1.bf16.msra.mxu0 0
      %1263 = vmatprep.subr.bf16.mxu0 0
      %1264 = vmatpush1.bf16.msra.mxu0 0
      %1265 = vmatprep.subr.bf16.mxu0 0
      %1266 = vmatpush1.bf16.msra.mxu0 0
      %1267 = vmatprep.mubr.bf16.mxu0 0
      %1268 = vmatmul.mubr.bf16.gmra.mrb[0].mxu0 %v881
      %v1269 = vpop.f32.mrb[0].mxu0
      %v1270 = vadd.f32 %v1061, %v1269
      %v1271 = vpop.f32.mrb[0].mxu0
      %v1272 = vpop.f32.mrb[0].mxu0
      %v1273 = vadd.f32 %v1064, %v1272
      %v1274 = vpop.f32.mrb[0].mxu0
      %1275 = vmatprep.mubr.bf16.mxu0 0
      %1276 = vmatmul.mubr.bf16.gmra.mrb[0].mxu0 %v882
      %v1277 = vpop.f32.mrb[0].mxu0
      %v1278 = vadd.f32 %v1069, %v1277
      %v1279 = vpop.f32.mrb[0].mxu0
      %v1280 = vpop.f32.mrb[0].mxu0
      %v1281 = vadd.f32 %v1072, %v1280
      %v1282 = vpop.f32.mrb[0].mxu0
      %1283 = vmatprep.mubr.bf16.mxu0 0
      %1284 = vmatmul.mubr.bf16.gmra.mrb[0].mxu0 %v883
      %v1285 = vpop.f32.mrb[0].mxu0
      %v1286 = vadd.f32 %v1077, %v1285
      %v1287 = vpop.f32.mrb[0].mxu0
      %v1288 = vpop.f32.mrb[0].mxu0
      %v1289 = vadd.f32 %v1080, %v1288
      %v1290 = vpop.f32.mrb[0].mxu0
      %1291 = vmatprep.mubr.bf16.mxu0 0
      %1292 = vmatmul.mubr.bf16.gmra.mrb[0].mxu0 %v884
      %v1293 = vpop.f32.mrb[0].mxu0
      %v1294 = vadd.f32 %v1085, %v1293
      %v1295 = vpop.f32.mrb[0].mxu0
      %v1296 = vpop.f32.mrb[0].mxu0
      %v1297 = vadd.f32 %v1088, %v1296
      %v1298 = vpop.f32.mrb[0].mxu0
      %1299 = vmatprep.mubr.bf16.mxu0 0
      %1300 = vmatmul.mubr.bf16.gmra.mrb[0].mxu0 %v885
      %v1301 = vpop.f32.mrb[0].mxu0
      %v1302 = vadd.f32 %v1093, %v1301
      %v1303 = vpop.f32.mrb[0].mxu0
      %v1304 = vpop.f32.mrb[0].mxu0
      %v1305 = vadd.f32 %v1096, %v1304
      %v1306 = vpop.f32.mrb[0].mxu0
      %1307 = vmatprep.mubr.bf16.mxu0 0
      %1308 = vmatmul.mubr.bf16.gmra.mrb[0].mxu0 %v886
      %v1309 = vpop.f32.mrb[0].mxu0
      %v1310 = vadd.f32 %v1101, %v1309
      %v1311 = vpop.f32.mrb[0].mxu0
      %v1312 = vpop.f32.mrb[0].mxu0
      %v1313 = vadd.f32 %v1104, %v1312
      %v1314 = vpop.f32.mrb[0].mxu0
      %1315 = vmatprep.mubr.bf16.mxu0 0
      %1316 = vmatmul.mubr.bf16.gmra.mrb[0].mxu0 %v887
      %v1317 = vpop.f32.mrb[0].mxu0
      %v1318 = vadd.f32 %v1109, %v1317
      %v1319 = vpop.f32.mrb[0].mxu0
      %v1320 = vpop.f32.mrb[0].mxu0
      %v1321 = vadd.f32 %v1112, %v1320
      %v1322 = vpop.f32.mrb[0].mxu0
      %1323 = vmatprep.mubr.bf16.mxu0 0
      %1324 = vmatmul.mubr.bf16.gmra.mrb[0].mxu0 %v888
      %v1325 = vpop.f32.mrb[0].mxu0
      %v1326 = vadd.f32 %v1117, %v1325
      %v1327 = vpop.f32.mrb[0].mxu0
      %v1328 = vpop.f32.mrb[0].mxu0
      %v1329 = vadd.f32 %v1120, %v1328
      %v1330 = vpop.f32.mrb[0].mxu0
      %1331 = vmatprep.mubr.bf16.mxu0 0
      %1332 = vmatmul.mubr.bf16.gmra.mrb[0].mxu0 %v889
      %v1333 = vpop.f32.mrb[0].mxu0
      %v1334 = vadd.f32 %v1125, %v1333
      %v1335 = vpop.f32.mrb[0].mxu0
      %v1336 = vpop.f32.mrb[0].mxu0
      %v1337 = vadd.f32 %v1128, %v1336
      %v1338 = vpop.f32.mrb[0].mxu0
      %1339 = vmatprep.mubr.bf16.mxu0 0
      %1340 = vmatmul.mubr.bf16.gmra.mrb[0].mxu0 %v890
      %v1341 = vpop.f32.mrb[0].mxu0
      %v1342 = vadd.f32 %v1133, %v1341
      %v1343 = vpop.f32.mrb[0].mxu0
      %v1344 = vpop.f32.mrb[0].mxu0
      %v1345 = vadd.f32 %v1136, %v1344
      %v1346 = vpop.f32.mrb[0].mxu0
      %1347 = vmatprep.mubr.bf16.mxu0 0
      %1348 = vmatmul.mubr.bf16.gmra.mrb[0].mxu0 %v891
      %v1349 = vpop.f32.mrb[0].mxu0
      %v1350 = vadd.f32 %v1141, %v1349
      %v1351 = vpop.f32.mrb[0].mxu0
      %v1352 = vpop.f32.mrb[0].mxu0
      %v1353 = vadd.f32 %v1144, %v1352
      %v1354 = vpop.f32.mrb[0].mxu0
      %1355 = vmatprep.mubr.bf16.mxu0 0
      %1356 = vmatmul.mubr.bf16.gmra.mrb[0].mxu0 %v892
      %v1357 = vpop.f32.mrb[0].mxu0
      %v1358 = vadd.f32 %v1149, %v1357
      %v1359 = vpop.f32.mrb[0].mxu0
      %v1360 = vpop.f32.mrb[0].mxu0
      %v1361 = vadd.f32 %v1152, %v1360
      %v1362 = vpop.f32.mrb[0].mxu0
      %1363 = vmatprep.mubr.bf16.mxu0 0
      %1364 = vmatmul.mubr.bf16.gmra.mrb[0].mxu0 %v893
      %v1365 = vpop.f32.mrb[0].mxu0
      %v1366 = vadd.f32 %v1157, %v1365
      %v1367 = vpop.f32.mrb[0].mxu0
      %v1368 = vpop.f32.mrb[0].mxu0
      %v1369 = vadd.f32 %v1160, %v1368
      %v1370 = vpop.f32.mrb[0].mxu0
      %1371 = vmatprep.mubr.bf16.mxu0 0
      %1372 = vmatmul.mubr.bf16.gmra.mrb[0].mxu0 %v894
      %v1373 = vpop.f32.mrb[0].mxu0
      %v1374 = vadd.f32 %v1165, %v1373
      %v1375 = vpop.f32.mrb[0].mxu0
      %v1376 = vpop.f32.mrb[0].mxu0
      %v1377 = vadd.f32 %v1168, %v1376
      %v1378 = vpop.f32.mrb[0].mxu0
      %1379 = vmatprep.mubr.bf16.mxu0 0
      %1380 = vmatmul.mubr.bf16.gmra.mrb[0].mxu0 %v895
      %v1381 = vpop.f32.mrb[0].mxu0
      %v1382 = vadd.f32 %v1173, %v1381
      %v1383 = vpop.f32.mrb[0].mxu0
      %v1384 = vpop.f32.mrb[0].mxu0
      %v1385 = vadd.f32 %v1176, %v1384
      %v1386 = vpop.f32.mrb[0].mxu0
      %1387 = vmatprep.mubr.bf16.mxu0 0
      %1388 = vmatmul.mubr.bf16.gmra.mrb[0].mxu0 %v896
      %v1389 = vpop.f32.mrb[0].mxu0
      %v1390 = vadd.f32 %v1181, %v1389
      %v1391 = vpop.f32.mrb[0].mxu0
      %v1392 = vpop.f32.mrb[0].mxu0
      %v1393 = vadd.f32 %v1184, %v1392
      %v1394 = vpop.f32.mrb[0].mxu0
      %1395 = vdwg.mxu0
      %v1396 = vld [vmem:[#allocation2 + $0x9] sm:$0xff]
      %v1397 = vld [vmem:[#allocation2 + $0x11] sm:$0xff]
      %v1398 = vld [vmem:[#allocation2 + $0x29] sm:$0xff]
      %v1399 = vld [vmem:[#allocation2 + $0x31] sm:$0xff]
      %v1400 = vld [vmem:[#allocation2 + $0x49] sm:$0xff]
      %v1401 = vld [vmem:[#allocation2 + $0x51] sm:$0xff]
      %v1402 = vld [vmem:[#allocation2 + $0x69] sm:$0xff]
      %v1403 = vld [vmem:[#allocation2 + $0x71] sm:$0xff]
      %v1404 = vld [vmem:[#allocation2 + $0x89] sm:$0xff]
      %v1405 = vld [vmem:[#allocation2 + $0x91] sm:$0xff]
      %v1406 = vld [vmem:[#allocation2 + $0xa9] sm:$0xff]
      %v1407 = vld [vmem:[#allocation2 + $0xb1] sm:$0xff]
      %v1408 = vld [vmem:[#allocation2 + $0xc9] sm:$0xff]
      %v1409 = vld [vmem:[#allocation2 + $0xd1] sm:$0xff]
      %v1410 = vld [vmem:[#allocation2 + $0xe9] sm:$0xff]
      %v1411 = vld [vmem:[#allocation2 + $0xf1] sm:$0xff]
      %v1412 = vld [vmem:[#allocation2 + $0x109] sm:$0xff]
      %v1413 = vld [vmem:[#allocation2 + $0x111] sm:$0xff]
      %v1414 = vld [vmem:[#allocation2 + $0x129] sm:$0xff]
      %v1415 = vld [vmem:[#allocation2 + $0x131] sm:$0xff]
      %v1416 = vld [vmem:[#allocation2 + $0x149] sm:$0xff]
      %v1417 = vld [vmem:[#allocation2 + $0x151] sm:$0xff]
      %v1418 = vld [vmem:[#allocation2 + $0x169] sm:$0xff]
      %v1419 = vld [vmem:[#allocation2 + $0x171] sm:$0xff]
      %v1420 = vld [vmem:[#allocation2 + $0x189] sm:$0xff]
      %v1421 = vld [vmem:[#allocation2 + $0x191] sm:$0xff]
      %v1422 = vld [vmem:[#allocation2 + $0x1a9] sm:$0xff]
      %v1423 = vld [vmem:[#allocation2 + $0x1b1] sm:$0xff]
      %v1424 = vld [vmem:[#allocation2 + $0x1c9] sm:$0xff]
      %v1425 = vld [vmem:[#allocation2 + $0x1d1] sm:$0xff]
      %v1426 = vld [vmem:[#allocation2 + $0x1e9] sm:$0xff]
      %v1427 = vld [vmem:[#allocation2 + $0x1f1] sm:$0xff]
      %v1428 = vpack.c.bf16 %v1397, %v1396
      %v1429 = vpack.c.bf16 %v1399, %v1398
      %v1430 = vpack.c.bf16 %v1401, %v1400
      %v1431 = vpack.c.bf16 %v1403, %v1402
      %v1432 = vpack.c.bf16 %v1405, %v1404
      %v1433 = vpack.c.bf16 %v1407, %v1406
      %v1434 = vpack.c.bf16 %v1409, %v1408
      %v1435 = vpack.c.bf16 %v1411, %v1410
      %v1436 = vpack.c.bf16 %v1413, %v1412
      %v1437 = vpack.c.bf16 %v1415, %v1414
      %v1438 = vpack.c.bf16 %v1417, %v1416
      %v1439 = vpack.c.bf16 %v1419, %v1418
      %v1440 = vpack.c.bf16 %v1421, %v1420
      %v1441 = vpack.c.bf16 %v1423, %v1422
      %v1442 = vpack.c.bf16 %v1425, %v1424
      %v1443 = vpack.c.bf16 %v1427, %v1426
      %s1444 = scalar_lea.vmem %s4, 128
      %v1445 = vld [vmem:[%s1444] sm:$0xf]
      %v1446 = vld [vmem:[%s1444 + $0x4] sm:$0xf]
      %v1447 = vld [vmem:[%s1444 + $0x8] sm:$0xf]
      %v1448 = vld [vmem:[%s1444 + $0xc] sm:$0xf]
      %v1449 = vld [vmem:[%s1444 + $0x10] sm:$0xf]
      %v1450 = vld [vmem:[%s1444 + $0x14] sm:$0xf]
      %v1451 = vld [vmem:[%s1444 + $0x18] sm:$0xf]
      %v1452 = vld [vmem:[%s1444 + $0x1c] sm:$0xf]
      %v1453 = vld [vmem:[%s1444 + $0x20] sm:$0xf]
      %v1454 = vld [vmem:[%s1444 + $0x24] sm:$0xf]
      %v1455 = vld [vmem:[%s1444 + $0x28] sm:$0xf]
      %v1456 = vld [vmem:[%s1444 + $0x2c] sm:$0xf]
      %v1457 = vld [vmem:[%s1444 + $0x30] sm:$0xf]
      %v1458 = vld [vmem:[%s1444 + $0x34] sm:$0xf]
      %v1459 = vld [vmem:[%s1444 + $0x38] sm:$0xf]
      %v1460 = vld [vmem:[%s1444 + $0x3c] sm:$0xf]
      %v1477 = vunpack.c.l.b16 %v1445
      %v1478 = vunpack.c.l.b16 %v1446
      %v1479 = vunpack.c.l.b16 %v1447
      %v1480 = vunpack.c.l.b16 %v1448
      %v1481 = vunpack.c.l.b16 %v1449
      %v1482 = vunpack.c.l.b16 %v1450
      %v1483 = vunpack.c.l.b16 %v1451
      %v1484 = vunpack.c.l.b16 %v1452
      %v1485 = vunpack.c.l.b16 %v1453
      %v1486 = vunpack.c.l.b16 %v1454
      %v1487 = vunpack.c.l.b16 %v1455
      %v1488 = vunpack.c.l.b16 %v1456
      %v1489 = vunpack.c.l.b16 %v1457
      %v1490 = vunpack.c.l.b16 %v1458
      %v1491 = vunpack.c.l.b16 %v1459
      %v1492 = vunpack.c.l.b16 %v1460
      %v1493 = vpack.c.b16 %v1478, %v1477
      %v1494 = vpack.c.b16 %v1480, %v1479
      %v1495 = vpack.c.b16 %v1482, %v1481
      %v1496 = vpack.c.b16 %v1484, %v1483
      %v1497 = vpack.c.b16 %v1486, %v1485
      %v1498 = vpack.c.b16 %v1488, %v1487
      %v1499 = vpack.c.b16 %v1490, %v1489
      %v1500 = vpack.c.b16 %v1492, %v1491
      %1509 = vmatprep.subr.bf16.mxu0 0
      %1510 = vmatpush1.bf16.msra.mxu0 %v1493
      %1511 = vmatprep.subr.bf16.mxu0 0
      %1512 = vmatpush1.bf16.msra.mxu0 %v1494
      %1513 = vmatprep.subr.bf16.mxu0 0
      %1514 = vmatpush1.bf16.msra.mxu0 %v1495
      %1515 = vmatprep.subr.bf16.mxu0 0
      %1516 = vmatpush1.bf16.msra.mxu0 %v1496
      %1517 = vmatprep.subr.bf16.mxu0 0
      %1518 = vmatpush1.bf16.msra.mxu0 %v1497
      %1519 = vmatprep.subr.bf16.mxu0 0
      %1520 = vmatpush1.bf16.msra.mxu0 %v1498
      %1521 = vmatprep.subr.bf16.mxu0 0
      %1522 = vmatpush1.bf16.msra.mxu0 %v1499
      %1523 = vmatprep.subr.bf16.mxu0 0
      %1524 = vmatpush1.bf16.msra.mxu0 %v1500
      %1525 = vmatprep.subr.bf16.mxu0 0
      %1526 = vmatpush1.bf16.msra.mxu0 0
      %1527 = vmatprep.subr.bf16.mxu0 0
      %1528 = vmatpush1.bf16.msra.mxu0 0
      %1529 = vmatprep.subr.bf16.mxu0 0
      %1530 = vmatpush1.bf16.msra.mxu0 0
      %1531 = vmatprep.subr.bf16.mxu0 0
      %1532 = vmatpush1.bf16.msra.mxu0 0
      %1533 = vmatprep.subr.bf16.mxu0 0
      %1534 = vmatpush1.bf16.msra.mxu0 0
      %1535 = vmatprep.subr.bf16.mxu0 0
      %1536 = vmatpush1.bf16.msra.mxu0 0
      %1537 = vmatprep.subr.bf16.mxu0 0
      %1538 = vmatpush1.bf16.msra.mxu0 0
      %1539 = vmatprep.subr.bf16.mxu0 0
      %1540 = vmatpush1.bf16.msra.mxu0 0
      %1541 = vmatprep.mubr.bf16.mxu0 0
      %1542 = vmatmul.mubr.bf16.gmra.mrb[0].mxu0 %v1428
      %v1543 = vpop.f32.mrb[0].mxu0
      %v1544 = vadd.f32 0.0, %v1543
      %v1545 = vpop.f32.mrb[0].mxu0
      %v1546 = vpop.f32.mrb[0].mxu0
      %v1547 = vadd.f32 0.0, %v1546
      %v1548 = vpop.f32.mrb[0].mxu0
      %1549 = vmatprep.mubr.bf16.mxu0 0
      %1550 = vmatmul.mubr.bf16.gmra.mrb[0].mxu0 %v1429
      %v1551 = vpop.f32.mrb[0].mxu0
      %v1552 = vadd.f32 0.0, %v1551
      %v1553 = vpop.f32.mrb[0].mxu0
      %v1554 = vpop.f32.mrb[0].mxu0
      %v1555 = vadd.f32 0.0, %v1554
      %v1556 = vpop.f32.mrb[0].mxu0
      %1557 = vmatprep.mubr.bf16.mxu0 0
      %1558 = vmatmul.mubr.bf16.gmra.mrb[0].mxu0 %v1430
      %v1559 = vpop.f32.mrb[0].mxu0
      %v1560 = vadd.f32 0.0, %v1559
      %v1561 = vpop.f32.mrb[0].mxu0
      %v1562 = vpop.f32.mrb[0].mxu0
      %v1563 = vadd.f32 0.0, %v1562
      %v1564 = vpop.f32.mrb[0].mxu0
      %1565 = vmatprep.mubr.bf16.mxu0 0
      %1566 = vmatmul.mubr.bf16.gmra.mrb[0].mxu0 %v1431
      %v1567 = vpop.f32.mrb[0].mxu0
      %v1568 = vadd.f32 0.0, %v1567
      %v1569 = vpop.f32.mrb[0].mxu0
      %v1570 = vpop.f32.mrb[0].mxu0
      %v1571 = vadd.f32 0.0, %v1570
      %v1572 = vpop.f32.mrb[0].mxu0
      %1573 = vmatprep.mubr.bf16.mxu0 0
      %1574 = vmatmul.mubr.bf16.gmra.mrb[0].mxu0 %v1432
      %v1575 = vpop.f32.mrb[0].mxu0
      %v1576 = vadd.f32 0.0, %v1575
      %v1577 = vpop.f32.mrb[0].mxu0
      %v1578 = vpop.f32.mrb[0].mxu0
      %v1579 = vadd.f32 0.0, %v1578
      %v1580 = vpop.f32.mrb[0].mxu0
      %1581 = vmatprep.mubr.bf16.mxu0 0
      %1582 = vmatmul.mubr.bf16.gmra.mrb[0].mxu0 %v1433
      %v1583 = vpop.f32.mrb[0].mxu0
      %v1584 = vadd.f32 0.0, %v1583
      %v1585 = vpop.f32.mrb[0].mxu0
      %v1586 = vpop.f32.mrb[0].mxu0
      %v1587 = vadd.f32 0.0, %v1586
      %v1588 = vpop.f32.mrb[0].mxu0
      %1589 = vmatprep.mubr.bf16.mxu0 0
      %1590 = vmatmul.mubr.bf16.gmra.mrb[0].mxu0 %v1434
      %v1591 = vpop.f32.mrb[0].mxu0
      %v1592 = vadd.f32 0.0, %v1591
      %v1593 = vpop.f32.mrb[0].mxu0
      %v1594 = vpop.f32.mrb[0].mxu0
      %v1595 = vadd.f32 0.0, %v1594
      %v1596 = vpop.f32.mrb[0].mxu0
      %1597 = vmatprep.mubr.bf16.mxu0 0
      %1598 = vmatmul.mubr.bf16.gmra.mrb[0].mxu0 %v1435
      %v1599 = vpop.f32.mrb[0].mxu0
      %v1600 = vadd.f32 0.0, %v1599
      %v1601 = vpop.f32.mrb[0].mxu0
      %v1602 = vpop.f32.mrb[0].mxu0
      %v1603 = vadd.f32 0.0, %v1602
      %v1604 = vpop.f32.mrb[0].mxu0
      %1605 = vmatprep.mubr.bf16.mxu0 0
      %1606 = vmatmul.mubr.bf16.gmra.mrb[0].mxu0 %v1436
      %v1607 = vpop.f32.mrb[0].mxu0
      %v1608 = vadd.f32 0.0, %v1607
      %v1609 = vpop.f32.mrb[0].mxu0
      %v1610 = vpop.f32.mrb[0].mxu0
      %v1611 = vadd.f32 0.0, %v1610
      %v1612 = vpop.f32.mrb[0].mxu0
      %1613 = vmatprep.mubr.bf16.mxu0 0
      %1614 = vmatmul.mubr.bf16.gmra.mrb[0].mxu0 %v1437
      %v1615 = vpop.f32.mrb[0].mxu0
      %v1616 = vadd.f32 0.0, %v1615
      %v1617 = vpop.f32.mrb[0].mxu0
      %v1618 = vpop.f32.mrb[0].mxu0
      %v1619 = vadd.f32 0.0, %v1618
      %v1620 = vpop.f32.mrb[0].mxu0
      %1621 = vmatprep.mubr.bf16.mxu0 0
      %1622 = vmatmul.mubr.bf16.gmra.mrb[0].mxu0 %v1438
      %v1623 = vpop.f32.mrb[0].mxu0
      %v1624 = vadd.f32 0.0, %v1623
      %v1625 = vpop.f32.mrb[0].mxu0
      %v1626 = vpop.f32.mrb[0].mxu0
      %v1627 = vadd.f32 0.0, %v1626
      %v1628 = vpop.f32.mrb[0].mxu0
      %1629 = vmatprep.mubr.bf16.mxu0 0
      %1630 = vmatmul.mubr.bf16.gmra.mrb[0].mxu0 %v1439
      %v1631 = vpop.f32.mrb[0].mxu0
      %v1632 = vadd.f32 0.0, %v1631
      %v1633 = vpop.f32.mrb[0].mxu0
      %v1634 = vpop.f32.mrb[0].mxu0
      %v1635 = vadd.f32 0.0, %v1634
      %v1636 = vpop.f32.mrb[0].mxu0
      %1637 = vmatprep.mubr.bf16.mxu0 0
      %1638 = vmatmul.mubr.bf16.gmra.mrb[0].mxu0 %v1440
      %v1639 = vpop.f32.mrb[0].mxu0
      %v1640 = vadd.f32 0.0, %v1639
      %v1641 = vpop.f32.mrb[0].mxu0
      %v1642 = vpop.f32.mrb[0].mxu0
      %v1643 = vadd.f32 0.0, %v1642
      %v1644 = vpop.f32.mrb[0].mxu0
      %1645 = vmatprep.mubr.bf16.mxu0 0
      %1646 = vmatmul.mubr.bf16.gmra.mrb[0].mxu0 %v1441
      %v1647 = vpop.f32.mrb[0].mxu0
      %v1648 = vadd.f32 0.0, %v1647
      %v1649 = vpop.f32.mrb[0].mxu0
      %v1650 = vpop.f32.mrb[0].mxu0
      %v1651 = vadd.f32 0.0, %v1650
      %v1652 = vpop.f32.mrb[0].mxu0
      %1653 = vmatprep.mubr.bf16.mxu0 0
      %1654 = vmatmul.mubr.bf16.gmra.mrb[0].mxu0 %v1442
      %v1655 = vpop.f32.mrb[0].mxu0
      %v1656 = vadd.f32 0.0, %v1655
      %v1657 = vpop.f32.mrb[0].mxu0
      %v1658 = vpop.f32.mrb[0].mxu0
      %v1659 = vadd.f32 0.0, %v1658
      %v1660 = vpop.f32.mrb[0].mxu0
      %1661 = vmatprep.mubr.bf16.mxu0 0
      %1662 = vmatmul.mubr.bf16.gmra.mrb[0].mxu0 %v1443
      %v1663 = vpop.f32.mrb[0].mxu0
      %v1664 = vadd.f32 0.0, %v1663
      %v1665 = vpop.f32.mrb[0].mxu0
      %v1666 = vpop.f32.mrb[0].mxu0
      %v1667 = vadd.f32 0.0, %v1666
      %v1668 = vpop.f32.mrb[0].mxu0
      %1669 = vdwg.mxu0
      %v1670 = vadd.f32 %v1270, %v1544
      %v1671 = vadd.f32 %v1273, %v1547
      %v1672 = vadd.f32 %v1278, %v1552
      %v1673 = vadd.f32 %v1281, %v1555
      %v1674 = vadd.f32 %v1286, %v1560
      %v1675 = vadd.f32 %v1289, %v1563
      %v1676 = vadd.f32 %v1294, %v1568
      %v1677 = vadd.f32 %v1297, %v1571
      %v1678 = vadd.f32 %v1302, %v1576
      %v1679 = vadd.f32 %v1305, %v1579
      %v1680 = vadd.f32 %v1310, %v1584
      %v1681 = vadd.f32 %v1313, %v1587
      %v1682 = vadd.f32 %v1318, %v1592
      %v1683 = vadd.f32 %v1321, %v1595
      %v1684 = vadd.f32 %v1326, %v1600
      %v1685 = vadd.f32 %v1329, %v1603
      %v1686 = vadd.f32 %v1334, %v1608
      %v1687 = vadd.f32 %v1337, %v1611
      %v1688 = vadd.f32 %v1342, %v1616
      %v1689 = vadd.f32 %v1345, %v1619
      %v1690 = vadd.f32 %v1350, %v1624
      %v1691 = vadd.f32 %v1353, %v1627
      %v1692 = vadd.f32 %v1358, %v1632
      %v1693 = vadd.f32 %v1361, %v1635
      %v1694 = vadd.f32 %v1366, %v1640
      %v1695 = vadd.f32 %v1369, %v1643
      %v1696 = vadd.f32 %v1374, %v1648
      %v1697 = vadd.f32 %v1377, %v1651
      %v1698 = vadd.f32 %v1382, %v1656
      %v1699 = vadd.f32 %v1385, %v1659
      %v1700 = vadd.f32 %v1390, %v1664
      %v1701 = vadd.f32 %v1393, %v1667
      %v1702 = vld [vmem:[%s816 + $0x7] sm:$0xff]
      %v1703 = vld [vmem:[%s816 + $0xf] sm:$0xff]
      %v1704 = vld [vmem:[%s816 + $0x27] sm:$0xff]
      %v1705 = vld [vmem:[%s816 + $0x2f] sm:$0xff]
      %v1706 = vld [vmem:[%s816 + $0x47] sm:$0xff]
      %v1707 = vld [vmem:[%s816 + $0x4f] sm:$0xff]
      %v1708 = vld [vmem:[%s816 + $0x67] sm:$0xff]
      %v1709 = vld [vmem:[%s816 + $0x6f] sm:$0xff]
      %v1710 = vld [vmem:[%s816 + $0x87] sm:$0xff]
      %v1711 = vld [vmem:[%s816 + $0x8f] sm:$0xff]
      %v1712 = vld [vmem:[%s816 + $0xa7] sm:$0xff]
      %v1713 = vld [vmem:[%s816 + $0xaf] sm:$0xff]
      %v1714 = vld [vmem:[%s816 + $0xc7] sm:$0xff]
      %v1715 = vld [vmem:[%s816 + $0xcf] sm:$0xff]
      %v1716 = vld [vmem:[%s816 + $0xe7] sm:$0xff]
      %v1717 = vld [vmem:[%s816 + $0xef] sm:$0xff]
      %v1718 = vld [vmem:[%s816 + $0x107] sm:$0xff]
      %v1719 = vld [vmem:[%s816 + $0x10f] sm:$0xff]
      %v1720 = vld [vmem:[%s816 + $0x127] sm:$0xff]
      %v1721 = vld [vmem:[%s816 + $0x12f] sm:$0xff]
      %v1722 = vld [vmem:[%s816 + $0x147] sm:$0xff]
      %v1723 = vld [vmem:[%s816 + $0x14f] sm:$0xff]
      %v1724 = vld [vmem:[%s816 + $0x167] sm:$0xff]
      %v1725 = vld [vmem:[%s816 + $0x16f] sm:$0xff]
      %v1726 = vld [vmem:[%s816 + $0x187] sm:$0xff]
      %v1727 = vld [vmem:[%s816 + $0x18f] sm:$0xff]
      %v1728 = vld [vmem:[%s816 + $0x1a7] sm:$0xff]
      %v1729 = vld [vmem:[%s816 + $0x1af] sm:$0xff]
      %v1730 = vld [vmem:[%s816 + $0x1c7] sm:$0xff]
      %v1731 = vld [vmem:[%s816 + $0x1cf] sm:$0xff]
      %v1732 = vld [vmem:[%s816 + $0x1e7] sm:$0xff]
      %v1733 = vld [vmem:[%s816 + $0x1ef] sm:$0xff]
      %v1734 = vpack.c.bf16 %v1703, %v1702
      %v1735 = vpack.c.bf16 %v1705, %v1704
      %v1736 = vpack.c.bf16 %v1707, %v1706
      %v1737 = vpack.c.bf16 %v1709, %v1708
      %v1738 = vpack.c.bf16 %v1711, %v1710
      %v1739 = vpack.c.bf16 %v1713, %v1712
      %v1740 = vpack.c.bf16 %v1715, %v1714
      %v1741 = vpack.c.bf16 %v1717, %v1716
      %v1742 = vpack.c.bf16 %v1719, %v1718
      %v1743 = vpack.c.bf16 %v1721, %v1720
      %v1744 = vpack.c.bf16 %v1723, %v1722
      %v1745 = vpack.c.bf16 %v1725, %v1724
      %v1746 = vpack.c.bf16 %v1727, %v1726
      %v1747 = vpack.c.bf16 %v1729, %v1728
      %v1748 = vpack.c.bf16 %v1731, %v1730
      %v1749 = vpack.c.bf16 %v1733, %v1732
      %s1750 = scalar_lea.vmem %s4, 192
      %v1751 = vld [vmem:[%s1750] sm:$0xf]
      %v1752 = vld [vmem:[%s1750 + $0x4] sm:$0xf]
      %v1753 = vld [vmem:[%s1750 + $0x8] sm:$0xf]
      %v1754 = vld [vmem:[%s1750 + $0xc] sm:$0xf]
      %v1755 = vld [vmem:[%s1750 + $0x10] sm:$0xf]
      %v1756 = vld [vmem:[%s1750 + $0x14] sm:$0xf]
      %v1757 = vld [vmem:[%s1750 + $0x18] sm:$0xf]
      %v1758 = vld [vmem:[%s1750 + $0x1c] sm:$0xf]
      %v1759 = vld [vmem:[%s1750 + $0x20] sm:$0xf]
      %v1760 = vld [vmem:[%s1750 + $0x24] sm:$0xf]
      %v1761 = vld [vmem:[%s1750 + $0x28] sm:$0xf]
      %v1762 = vld [vmem:[%s1750 + $0x2c] sm:$0xf]
      %v1763 = vld [vmem:[%s1750 + $0x30] sm:$0xf]
      %v1764 = vld [vmem:[%s1750 + $0x34] sm:$0xf]
      %v1765 = vld [vmem:[%s1750 + $0x38] sm:$0xf]
      %v1766 = vld [vmem:[%s1750 + $0x3c] sm:$0xf]
      %v1783 = vunpack.c.l.b16 %v1751
      %v1784 = vunpack.c.l.b16 %v1752
      %v1785 = vunpack.c.l.b16 %v1753
      %v1786 = vunpack.c.l.b16 %v1754
      %v1787 = vunpack.c.l.b16 %v1755
      %v1788 = vunpack.c.l.b16 %v1756
      %v1789 = vunpack.c.l.b16 %v1757
      %v1790 = vunpack.c.l.b16 %v1758
      %v1791 = vunpack.c.l.b16 %v1759
      %v1792 = vunpack.c.l.b16 %v1760
      %v1793 = vunpack.c.l.b16 %v1761
      %v1794 = vunpack.c.l.b16 %v1762
      %v1795 = vunpack.c.l.b16 %v1763
      %v1796 = vunpack.c.l.b16 %v1764
      %v1797 = vunpack.c.l.b16 %v1765
      %v1798 = vunpack.c.l.b16 %v1766
      %v1799 = vpack.c.b16 %v1784, %v1783
      %v1800 = vpack.c.b16 %v1786, %v1785
      %v1801 = vpack.c.b16 %v1788, %v1787
      %v1802 = vpack.c.b16 %v1790, %v1789
      %v1803 = vpack.c.b16 %v1792, %v1791
      %v1804 = vpack.c.b16 %v1794, %v1793
      %v1805 = vpack.c.b16 %v1796, %v1795
      %v1806 = vpack.c.b16 %v1798, %v1797
      %1815 = vmatprep.subr.bf16.mxu0 0
      %1816 = vmatpush1.bf16.msra.mxu0 %v1799
      %1817 = vmatprep.subr.bf16.mxu0 0
      %1818 = vmatpush1.bf16.msra.mxu0 %v1800
      %1819 = vmatprep.subr.bf16.mxu0 0
      %1820 = vmatpush1.bf16.msra.mxu0 %v1801
      %1821 = vmatprep.subr.bf16.mxu0 0
      %1822 = vmatpush1.bf16.msra.mxu0 %v1802
      %1823 = vmatprep.subr.bf16.mxu0 0
      %1824 = vmatpush1.bf16.msra.mxu0 %v1803
      %1825 = vmatprep.subr.bf16.mxu0 0
      %1826 = vmatpush1.bf16.msra.mxu0 %v1804
      %1827 = vmatprep.subr.bf16.mxu0 0
      %1828 = vmatpush1.bf16.msra.mxu0 %v1805
      %1829 = vmatprep.subr.bf16.mxu0 0
      %1830 = vmatpush1.bf16.msra.mxu0 %v1806
      %1831 = vmatprep.subr.bf16.mxu0 0
      %1832 = vmatpush1.bf16.msra.mxu0 0
      %1833 = vmatprep.subr.bf16.mxu0 0
      %1834 = vmatpush1.bf16.msra.mxu0 0
      %1835 = vmatprep.subr.bf16.mxu0 0
      %1836 = vmatpush1.bf16.msra.mxu0 0
      %1837 = vmatprep.subr.bf16.mxu0 0
      %1838 = vmatpush1.bf16.msra.mxu0 0
      %1839 = vmatprep.subr.bf16.mxu0 0
      %1840 = vmatpush1.bf16.msra.mxu0 0
      %1841 = vmatprep.subr.bf16.mxu0 0
      %1842 = vmatpush1.bf16.msra.mxu0 0
      %1843 = vmatprep.subr.bf16.mxu0 0
      %1844 = vmatpush1.bf16.msra.mxu0 0
      %1845 = vmatprep.subr.bf16.mxu0 0
      %1846 = vmatpush1.bf16.msra.mxu0 0
      %1847 = vmatprep.mubr.bf16.mxu0 0
      %1848 = vmatmul.mubr.bf16.gmra.mrb[0].mxu0 %v1734
      %v1849 = vpop.f32.mrb[0].mxu0
      %v1850 = vadd.f32 0.0, %v1849
      %v1851 = vpop.f32.mrb[0].mxu0
      %v1852 = vpop.f32.mrb[0].mxu0
      %v1853 = vadd.f32 0.0, %v1852
      %v1854 = vpop.f32.mrb[0].mxu0
      %1855 = vmatprep.mubr.bf16.mxu0 0
      %1856 = vmatmul.mubr.bf16.gmra.mrb[0].mxu0 %v1735
      %v1857 = vpop.f32.mrb[0].mxu0
      %v1858 = vadd.f32 0.0, %v1857
      %v1859 = vpop.f32.mrb[0].mxu0
      %v1860 = vpop.f32.mrb[0].mxu0
      %v1861 = vadd.f32 0.0, %v1860
      %v1862 = vpop.f32.mrb[0].mxu0
      %1863 = vmatprep.mubr.bf16.mxu0 0
      %1864 = vmatmul.mubr.bf16.gmra.mrb[0].mxu0 %v1736
      %v1865 = vpop.f32.mrb[0].mxu0
      %v1866 = vadd.f32 0.0, %v1865
      %v1867 = vpop.f32.mrb[0].mxu0
      %v1868 = vpop.f32.mrb[0].mxu0
      %v1869 = vadd.f32 0.0, %v1868
      %v1870 = vpop.f32.mrb[0].mxu0
      %1871 = vmatprep.mubr.bf16.mxu0 0
      %1872 = vmatmul.mubr.bf16.gmra.mrb[0].mxu0 %v1737
      %v1873 = vpop.f32.mrb[0].mxu0
      %v1874 = vadd.f32 0.0, %v1873
      %v1875 = vpop.f32.mrb[0].mxu0
      %v1876 = vpop.f32.mrb[0].mxu0
      %v1877 = vadd.f32 0.0, %v1876
      %v1878 = vpop.f32.mrb[0].mxu0
      %1879 = vmatprep.mubr.bf16.mxu0 0
      %1880 = vmatmul.mubr.bf16.gmra.mrb[0].mxu0 %v1738
      %v1881 = vpop.f32.mrb[0].mxu0
      %v1882 = vadd.f32 0.0, %v1881
      %v1883 = vpop.f32.mrb[0].mxu0
      %v1884 = vpop.f32.mrb[0].mxu0
      %v1885 = vadd.f32 0.0, %v1884
      %v1886 = vpop.f32.mrb[0].mxu0
      %1887 = vmatprep.mubr.bf16.mxu0 0
      %1888 = vmatmul.mubr.bf16.gmra.mrb[0].mxu0 %v1739
      %v1889 = vpop.f32.mrb[0].mxu0
      %v1890 = vadd.f32 0.0, %v1889
      %v1891 = vpop.f32.mrb[0].mxu0
      %v1892 = vpop.f32.mrb[0].mxu0
      %v1893 = vadd.f32 0.0, %v1892
      %v1894 = vpop.f32.mrb[0].mxu0
      %1895 = vmatprep.mubr.bf16.mxu0 0
      %1896 = vmatmul.mubr.bf16.gmra.mrb[0].mxu0 %v1740
      %v1897 = vpop.f32.mrb[0].mxu0
      %v1898 = vadd.f32 0.0, %v1897
      %v1899 = vpop.f32.mrb[0].mxu0
      %v1900 = vpop.f32.mrb[0].mxu0
      %v1901 = vadd.f32 0.0, %v1900
      %v1902 = vpop.f32.mrb[0].mxu0
      %1903 = vmatprep.mubr.bf16.mxu0 0
      %1904 = vmatmul.mubr.bf16.gmra.mrb[0].mxu0 %v1741
      %v1905 = vpop.f32.mrb[0].mxu0
      %v1906 = vadd.f32 0.0, %v1905
      %v1907 = vpop.f32.mrb[0].mxu0
      %v1908 = vpop.f32.mrb[0].mxu0
      %v1909 = vadd.f32 0.0, %v1908
      %v1910 = vpop.f32.mrb[0].mxu0
      %1911 = vmatprep.mubr.bf16.mxu0 0
      %1912 = vmatmul.mubr.bf16.gmra.mrb[0].mxu0 %v1742
      %v1913 = vpop.f32.mrb[0].mxu0
      %v1914 = vadd.f32 0.0, %v1913
      %v1915 = vpop.f32.mrb[0].mxu0
      %v1916 = vpop.f32.mrb[0].mxu0
      %v1917 = vadd.f32 0.0, %v1916
      %v1918 = vpop.f32.mrb[0].mxu0
      %1919 = vmatprep.mubr.bf16.mxu0 0
      %1920 = vmatmul.mubr.bf16.gmra.mrb[0].mxu0 %v1743
      %v1921 = vpop.f32.mrb[0].mxu0
      %v1922 = vadd.f32 0.0, %v1921
      %v1923 = vpop.f32.mrb[0].mxu0
      %v1924 = vpop.f32.mrb[0].mxu0
      %v1925 = vadd.f32 0.0, %v1924
      %v1926 = vpop.f32.mrb[0].mxu0
      %1927 = vmatprep.mubr.bf16.mxu0 0
      %1928 = vmatmul.mubr.bf16.gmra.mrb[0].mxu0 %v1744
      %v1929 = vpop.f32.mrb[0].mxu0
      %v1930 = vadd.f32 0.0, %v1929
      %v1931 = vpop.f32.mrb[0].mxu0
      %v1932 = vpop.f32.mrb[0].mxu0
      %v1933 = vadd.f32 0.0, %v1932
      %v1934 = vpop.f32.mrb[0].mxu0
      %1935 = vmatprep.mubr.bf16.mxu0 0
      %1936 = vmatmul.mubr.bf16.gmra.mrb[0].mxu0 %v1745
      %v1937 = vpop.f32.mrb[0].mxu0
      %v1938 = vadd.f32 0.0, %v1937
      %v1939 = vpop.f32.mrb[0].mxu0
      %v1940 = vpop.f32.mrb[0].mxu0
      %v1941 = vadd.f32 0.0, %v1940
      %v1942 = vpop.f32.mrb[0].mxu0
      %1943 = vmatprep.mubr.bf16.mxu0 0
      %1944 = vmatmul.mubr.bf16.gmra.mrb[0].mxu0 %v1746
      %v1945 = vpop.f32.mrb[0].mxu0
      %v1946 = vadd.f32 0.0, %v1945
      %v1947 = vpop.f32.mrb[0].mxu0
      %v1948 = vpop.f32.mrb[0].mxu0
      %v1949 = vadd.f32 0.0, %v1948
      %v1950 = vpop.f32.mrb[0].mxu0
      %1951 = vmatprep.mubr.bf16.mxu0 0
      %1952 = vmatmul.mubr.bf16.gmra.mrb[0].mxu0 %v1747
      %v1953 = vpop.f32.mrb[0].mxu0
      %v1954 = vadd.f32 0.0, %v1953
      %v1955 = vpop.f32.mrb[0].mxu0
      %v1956 = vpop.f32.mrb[0].mxu0
      %v1957 = vadd.f32 0.0, %v1956
      %v1958 = vpop.f32.mrb[0].mxu0
      %1959 = vmatprep.mubr.bf16.mxu0 0
      %1960 = vmatmul.mubr.bf16.gmra.mrb[0].mxu0 %v1748
      %v1961 = vpop.f32.mrb[0].mxu0
      %v1962 = vadd.f32 0.0, %v1961
      %v1963 = vpop.f32.mrb[0].mxu0
      %v1964 = vpop.f32.mrb[0].mxu0
      %v1965 = vadd.f32 0.0, %v1964
      %v1966 = vpop.f32.mrb[0].mxu0
      %1967 = vmatprep.mubr.bf16.mxu0 0
      %1968 = vmatmul.mubr.bf16.gmra.mrb[0].mxu0 %v1749
      %v1969 = vpop.f32.mrb[0].mxu0
      %v1970 = vadd.f32 0.0, %v1969
      %v1971 = vpop.f32.mrb[0].mxu0
      %v1972 = vpop.f32.mrb[0].mxu0
      %v1973 = vadd.f32 0.0, %v1972
      %v1974 = vpop.f32.mrb[0].mxu0
      %1975 = vdwg.mxu0
      %v1976 = vadd.f32 %v1670, %v1850
      %v1977 = vadd.f32 %v1671, %v1853
      %v1978 = vadd.f32 %v1672, %v1858
      %v1979 = vadd.f32 %v1673, %v1861
      %v1980 = vadd.f32 %v1674, %v1866
      %v1981 = vadd.f32 %v1675, %v1869
      %v1982 = vadd.f32 %v1676, %v1874
      %v1983 = vadd.f32 %v1677, %v1877
      %v1984 = vadd.f32 %v1678, %v1882
      %v1985 = vadd.f32 %v1679, %v1885
      %v1986 = vadd.f32 %v1680, %v1890
      %v1987 = vadd.f32 %v1681, %v1893
      %v1988 = vadd.f32 %v1682, %v1898
      %v1989 = vadd.f32 %v1683, %v1901
      %v1990 = vadd.f32 %v1684, %v1906
      %v1991 = vadd.f32 %v1685, %v1909
      %v1992 = vadd.f32 %v1686, %v1914
      %v1993 = vadd.f32 %v1687, %v1917
      %v1994 = vadd.f32 %v1688, %v1922
      %v1995 = vadd.f32 %v1689, %v1925
      %v1996 = vadd.f32 %v1690, %v1930
      %v1997 = vadd.f32 %v1691, %v1933
      %v1998 = vadd.f32 %v1692, %v1938
      %v1999 = vadd.f32 %v1693, %v1941
      %v2000 = vadd.f32 %v1694, %v1946
      %v2001 = vadd.f32 %v1695, %v1949
      %v2002 = vadd.f32 %v1696, %v1954
      %v2003 = vadd.f32 %v1697, %v1957
      %v2004 = vadd.f32 %v1698, %v1962
      %v2005 = vadd.f32 %v1699, %v1965
      %v2006 = vadd.f32 %v1700, %v1970
      %v2007 = vadd.f32 %v1701, %v1973
      %v2008 = vld [vmem:[%s816 + $0x8] sm:$0xff]
      %v2009 = vld [vmem:[%s816 + $0x10] sm:$0xff]
      %v2010 = vld [vmem:[%s816 + $0x28] sm:$0xff]
      %v2011 = vld [vmem:[%s816 + $0x30] sm:$0xff]
      %v2012 = vld [vmem:[%s816 + $0x48] sm:$0xff]
      %v2013 = vld [vmem:[%s816 + $0x50] sm:$0xff]
      %v2014 = vld [vmem:[%s816 + $0x68] sm:$0xff]
      %v2015 = vld [vmem:[%s816 + $0x70] sm:$0xff]
      %v2016 = vld [vmem:[%s816 + $0x88] sm:$0xff]
      %v2017 = vld [vmem:[%s816 + $0x90] sm:$0xff]
      %v2018 = vld [vmem:[%s816 + $0xa8] sm:$0xff]
      %v2019 = vld [vmem:[%s816 + $0xb0] sm:$0xff]
      %v2020 = vld [vmem:[%s816 + $0xc8] sm:$0xff]
      %v2021 = vld [vmem:[%s816 + $0xd0] sm:$0xff]
      %v2022 = vld [vmem:[%s816 + $0xe8] sm:$0xff]
      %v2023 = vld [vmem:[%s816 + $0xf0] sm:$0xff]
      %v2024 = vld [vmem:[%s816 + $0x108] sm:$0xff]
      %v2025 = vld [vmem:[%s816 + $0x110] sm:$0xff]
      %v2026 = vld [vmem:[%s816 + $0x128] sm:$0xff]
      %v2027 = vld [vmem:[%s816 + $0x130] sm:$0xff]
      %v2028 = vld [vmem:[%s816 + $0x148] sm:$0xff]
      %v2029 = vld [vmem:[%s816 + $0x150] sm:$0xff]
      %v2030 = vld [vmem:[%s816 + $0x168] sm:$0xff]
      %v2031 = vld [vmem:[%s816 + $0x170] sm:$0xff]
      %v2032 = vld [vmem:[%s816 + $0x188] sm:$0xff]
      %v2033 = vld [vmem:[%s816 + $0x190] sm:$0xff]
      %v2034 = vld [vmem:[%s816 + $0x1a8] sm:$0xff]
      %v2035 = vld [vmem:[%s816 + $0x1b0] sm:$0xff]
      %v2036 = vld [vmem:[%s816 + $0x1c8] sm:$0xff]
      %v2037 = vld [vmem:[%s816 + $0x1d0] sm:$0xff]
      %v2038 = vld [vmem:[%s816 + $0x1e8] sm:$0xff]
      %v2039 = vld [vmem:[%s816 + $0x1f0] sm:$0xff]
      %v2040 = vpack.c.bf16 %v2009, %v2008
      %v2041 = vpack.c.bf16 %v2011, %v2010
      %v2042 = vpack.c.bf16 %v2013, %v2012
      %v2043 = vpack.c.bf16 %v2015, %v2014
      %v2044 = vpack.c.bf16 %v2017, %v2016
      %v2045 = vpack.c.bf16 %v2019, %v2018
      %v2046 = vpack.c.bf16 %v2021, %v2020
      %v2047 = vpack.c.bf16 %v2023, %v2022
      %v2048 = vpack.c.bf16 %v2025, %v2024
      %v2049 = vpack.c.bf16 %v2027, %v2026
      %v2050 = vpack.c.bf16 %v2029, %v2028
      %v2051 = vpack.c.bf16 %v2031, %v2030
      %v2052 = vpack.c.bf16 %v2033, %v2032
      %v2053 = vpack.c.bf16 %v2035, %v2034
      %v2054 = vpack.c.bf16 %v2037, %v2036
      %v2055 = vpack.c.bf16 %v2039, %v2038
      %s2056 = scalar_lea.vmem %s4, 256
      %v2057 = vld [vmem:[%s2056] sm:$0xf]
      %v2058 = vld [vmem:[%s2056 + $0x4] sm:$0xf]
      %v2059 = vld [vmem:[%s2056 + $0x8] sm:$0xf]
      %v2060 = vld [vmem:[%s2056 + $0xc] sm:$0xf]
      %v2061 = vld [vmem:[%s2056 + $0x10] sm:$0xf]
      %v2062 = vld [vmem:[%s2056 + $0x14] sm:$0xf]
      %v2063 = vld [vmem:[%s2056 + $0x18] sm:$0xf]
      %v2064 = vld [vmem:[%s2056 + $0x1c] sm:$0xf]
      %v2065 = vld [vmem:[%s2056 + $0x20] sm:$0xf]
      %v2066 = vld [vmem:[%s2056 + $0x24] sm:$0xf]
      %v2067 = vld [vmem:[%s2056 + $0x28] sm:$0xf]
      %v2068 = vld [vmem:[%s2056 + $0x2c] sm:$0xf]
      %v2069 = vld [vmem:[%s2056 + $0x30] sm:$0xf]
      %v2070 = vld [vmem:[%s2056 + $0x34] sm:$0xf]
      %v2071 = vld [vmem:[%s2056 + $0x38] sm:$0xf]
      %v2072 = vld [vmem:[%s2056 + $0x3c] sm:$0xf]
      %v2089 = vunpack.c.l.b16 %v2057
      %v2090 = vunpack.c.l.b16 %v2058
      %v2091 = vunpack.c.l.b16 %v2059
      %v2092 = vunpack.c.l.b16 %v2060
      %v2093 = vunpack.c.l.b16 %v2061
      %v2094 = vunpack.c.l.b16 %v2062
      %v2095 = vunpack.c.l.b16 %v2063
      %v2096 = vunpack.c.l.b16 %v2064
      %v2097 = vunpack.c.l.b16 %v2065
      %v2098 = vunpack.c.l.b16 %v2066
      %v2099 = vunpack.c.l.b16 %v2067
      %v2100 = vunpack.c.l.b16 %v2068
      %v2101 = vunpack.c.l.b16 %v2069
      %v2102 = vunpack.c.l.b16 %v2070
      %v2103 = vunpack.c.l.b16 %v2071
      %v2104 = vunpack.c.l.b16 %v2072
      %v2105 = vpack.c.b16 %v2090, %v2089
      %v2106 = vpack.c.b16 %v2092, %v2091
      %v2107 = vpack.c.b16 %v2094, %v2093
      %v2108 = vpack.c.b16 %v2096, %v2095
      %v2109 = vpack.c.b16 %v2098, %v2097
      %v2110 = vpack.c.b16 %v2100, %v2099
      %v2111 = vpack.c.b16 %v2102, %v2101
      %v2112 = vpack.c.b16 %v2104, %v2103
      %2121 = vmatprep.subr.bf16.mxu0 0
      %2122 = vmatpush1.bf16.msra.mxu0 %v2105
      %2123 = vmatprep.subr.bf16.mxu0 0
      %2124 = vmatpush1.bf16.msra.mxu0 %v2106
      %2125 = vmatprep.subr.bf16.mxu0 0
      %2126 = vmatpush1.bf16.msra.mxu0 %v2107
      %2127 = vmatprep.subr.bf16.mxu0 0
      %2128 = vmatpush1.bf16.msra.mxu0 %v2108
      %2129 = vmatprep.subr.bf16.mxu0 0
      %2130 = vmatpush1.bf16.msra.mxu0 %v2109
      %2131 = vmatprep.subr.bf16.mxu0 0
      %2132 = vmatpush1.bf16.msra.mxu0 %v2110
      %2133 = vmatprep.subr.bf16.mxu0 0
      %2134 = vmatpush1.bf16.msra.mxu0 %v2111
      %2135 = vmatprep.subr.bf16.mxu0 0
      %2136 = vmatpush1.bf16.msra.mxu0 %v2112
      %2137 = vmatprep.subr.bf16.mxu0 0
      %2138 = vmatpush1.bf16.msra.mxu0 0
      %2139 = vmatprep.subr.bf16.mxu0 0
      %2140 = vmatpush1.bf16.msra.mxu0 0
      %2141 = vmatprep.subr.bf16.mxu0 0
      %2142 = vmatpush1.bf16.msra.mxu0 0
      %2143 = vmatprep.subr.bf16.mxu0 0
      %2144 = vmatpush1.bf16.msra.mxu0 0
      %2145 = vmatprep.subr.bf16.mxu0 0
      %2146 = vmatpush1.bf16.msra.mxu0 0
      %2147 = vmatprep.subr.bf16.mxu0 0
      %2148 = vmatpush1.bf16.msra.mxu0 0
      %2149 = vmatprep.subr.bf16.mxu0 0
      %2150 = vmatpush1.bf16.msra.mxu0 0
      %2151 = vmatprep.subr.bf16.mxu0 0
      %2152 = vmatpush1.bf16.msra.mxu0 0
      %2153 = vmatprep.mubr.bf16.mxu0 0
      %2154 = vmatmul.mubr.bf16.gmra.mrb[0].mxu0 %v2040
      %v2155 = vpop.f32.mrb[0].mxu0
      %v2156 = vadd.f32 0.0, %v2155
      %v2157 = vpop.f32.mrb[0].mxu0
      %v2158 = vpop.f32.mrb[0].mxu0
      %v2159 = vadd.f32 0.0, %v2158
      %v2160 = vpop.f32.mrb[0].mxu0
      %2161 = vmatprep.mubr.bf16.mxu0 0
      %2162 = vmatmul.mubr.bf16.gmra.mrb[0].mxu0 %v2041
      %v2163 = vpop.f32.mrb[0].mxu0
      %v2164 = vadd.f32 0.0, %v2163
      %v2165 = vpop.f32.mrb[0].mxu0
      %v2166 = vpop.f32.mrb[0].mxu0
      %v2167 = vadd.f32 0.0, %v2166
      %v2168 = vpop.f32.mrb[0].mxu0
      %2169 = vmatprep.mubr.bf16.mxu0 0
      %2170 = vmatmul.mubr.bf16.gmra.mrb[0].mxu0 %v2042
      %v2171 = vpop.f32.mrb[0].mxu0
      %v2172 = vadd.f32 0.0, %v2171
      %v2173 = vpop.f32.mrb[0].mxu0
      %v2174 = vpop.f32.mrb[0].mxu0
      %v2175 = vadd.f32 0.0, %v2174
      %v2176 = vpop.f32.mrb[0].mxu0
      %2177 = vmatprep.mubr.bf16.mxu0 0
      %2178 = vmatmul.mubr.bf16.gmra.mrb[0].mxu0 %v2043
      %v2179 = vpop.f32.mrb[0].mxu0
      %v2180 = vadd.f32 0.0, %v2179
      %v2181 = vpop.f32.mrb[0].mxu0
      %v2182 = vpop.f32.mrb[0].mxu0
      %v2183 = vadd.f32 0.0, %v2182
      %v2184 = vpop.f32.mrb[0].mxu0
      %2185 = vmatprep.mubr.bf16.mxu0 0
      %2186 = vmatmul.mubr.bf16.gmra.mrb[0].mxu0 %v2044
      %v2187 = vpop.f32.mrb[0].mxu0
      %v2188 = vadd.f32 0.0, %v2187
      %v2189 = vpop.f32.mrb[0].mxu0
      %v2190 = vpop.f32.mrb[0].mxu0
      %v2191 = vadd.f32 0.0, %v2190
      %v2192 = vpop.f32.mrb[0].mxu0
      %2193 = vmatprep.mubr.bf16.mxu0 0
      %2194 = vmatmul.mubr.bf16.gmra.mrb[0].mxu0 %v2045
      %v2195 = vpop.f32.mrb[0].mxu0
      %v2196 = vadd.f32 0.0, %v2195
      %v2197 = vpop.f32.mrb[0].mxu0
      %v2198 = vpop.f32.mrb[0].mxu0
      %v2199 = vadd.f32 0.0, %v2198
      %v2200 = vpop.f32.mrb[0].mxu0
      %2201 = vmatprep.mubr.bf16.mxu0 0
      %2202 = vmatmul.mubr.bf16.gmra.mrb[0].mxu0 %v2046
      %v2203 = vpop.f32.mrb[0].mxu0
      %v2204 = vadd.f32 0.0, %v2203
      %v2205 = vpop.f32.mrb[0].mxu0
      %v2206 = vpop.f32.mrb[0].mxu0
      %v2207 = vadd.f32 0.0, %v2206
      %v2208 = vpop.f32.mrb[0].mxu0
      %2209 = vmatprep.mubr.bf16.mxu0 0
      %2210 = vmatmul.mubr.bf16.gmra.mrb[0].mxu0 %v2047
      %v2211 = vpop.f32.mrb[0].mxu0
      %v2212 = vadd.f32 0.0, %v2211
      %v2213 = vpop.f32.mrb[0].mxu0
      %v2214 = vpop.f32.mrb[0].mxu0
      %v2215 = vadd.f32 0.0, %v2214
      %v2216 = vpop.f32.mrb[0].mxu0
      %2217 = vmatprep.mubr.bf16.mxu0 0
      %2218 = vmatmul.mubr.bf16.gmra.mrb[0].mxu0 %v2048
      %v2219 = vpop.f32.mrb[0].mxu0
      %v2220 = vadd.f32 0.0, %v2219
      %v2221 = vpop.f32.mrb[0].mxu0
      %v2222 = vpop.f32.mrb[0].mxu0
      %v2223 = vadd.f32 0.0, %v2222
      %v2224 = vpop.f32.mrb[0].mxu0
      %2225 = vmatprep.mubr.bf16.mxu0 0
      %2226 = vmatmul.mubr.bf16.gmra.mrb[0].mxu0 %v2049
      %v2227 = vpop.f32.mrb[0].mxu0
      %v2228 = vadd.f32 0.0, %v2227
      %v2229 = vpop.f32.mrb[0].mxu0
      %v2230 = vpop.f32.mrb[0].mxu0
      %v2231 = vadd.f32 0.0, %v2230
      %v2232 = vpop.f32.mrb[0].mxu0
      %2233 = vmatprep.mubr.bf16.mxu0 0
      %2234 = vmatmul.mubr.bf16.gmra.mrb[0].mxu0 %v2050
      %v2235 = vpop.f32.mrb[0].mxu0
      %v2236 = vadd.f32 0.0, %v2235
      %v2237 = vpop.f32.mrb[0].mxu0
      %v2238 = vpop.f32.mrb[0].mxu0
      %v2239 = vadd.f32 0.0, %v2238
      %v2240 = vpop.f32.mrb[0].mxu0
      %2241 = vmatprep.mubr.bf16.mxu0 0
      %2242 = vmatmul.mubr.bf16.gmra.mrb[0].mxu0 %v2051
      %v2243 = vpop.f32.mrb[0].mxu0
      %v2244 = vadd.f32 0.0, %v2243
      %v2245 = vpop.f32.mrb[0].mxu0
      %v2246 = vpop.f32.mrb[0].mxu0
      %v2247 = vadd.f32 0.0, %v2246
      %v2248 = vpop.f32.mrb[0].mxu0
      %2249 = vmatprep.mubr.bf16.mxu0 0
      %2250 = vmatmul.mubr.bf16.gmra.mrb[0].mxu0 %v2052
      %v2251 = vpop.f32.mrb[0].mxu0
      %v2252 = vadd.f32 0.0, %v2251
      %v2253 = vpop.f32.mrb[0].mxu0
      %v2254 = vpop.f32.mrb[0].mxu0
      %v2255 = vadd.f32 0.0, %v2254
      %v2256 = vpop.f32.mrb[0].mxu0
      %2257 = vmatprep.mubr.bf16.mxu0 0
      %2258 = vmatmul.mubr.bf16.gmra.mrb[0].mxu0 %v2053
      %v2259 = vpop.f32.mrb[0].mxu0
      %v2260 = vadd.f32 0.0, %v2259
      %v2261 = vpop.f32.mrb[0].mxu0
      %v2262 = vpop.f32.mrb[0].mxu0
      %v2263 = vadd.f32 0.0, %v2262
      %v2264 = vpop.f32.mrb[0].mxu0
      %2265 = vmatprep.mubr.bf16.mxu0 0
      %2266 = vmatmul.mubr.bf16.gmra.mrb[0].mxu0 %v2054
      %v2267 = vpop.f32.mrb[0].mxu0
      %v2268 = vadd.f32 0.0, %v2267
      %v2269 = vpop.f32.mrb[0].mxu0
      %v2270 = vpop.f32.mrb[0].mxu0
      %v2271 = vadd.f32 0.0, %v2270
      %v2272 = vpop.f32.mrb[0].mxu0
      %2273 = vmatprep.mubr.bf16.mxu0 0
      %2274 = vmatmul.mubr.bf16.gmra.mrb[0].mxu0 %v2055
      %v2275 = vpop.f32.mrb[0].mxu0
      %v2276 = vadd.f32 0.0, %v2275
      %v2277 = vpop.f32.mrb[0].mxu0
      %v2278 = vpop.f32.mrb[0].mxu0
      %v2279 = vadd.f32 0.0, %v2278
      %v2280 = vpop.f32.mrb[0].mxu0
      %2281 = vdwg.mxu0
      %v2282 = vadd.f32 %v1976, %v2156
      %v2283 = vadd.f32 %v1977, %v2159
      %v2284 = vadd.f32 %v1978, %v2164
      %v2285 = vadd.f32 %v1979, %v2167
      %v2286 = vadd.f32 %v1980, %v2172
      %v2287 = vadd.f32 %v1981, %v2175
      %v2288 = vadd.f32 %v1982, %v2180
      %v2289 = vadd.f32 %v1983, %v2183
      %v2290 = vadd.f32 %v1984, %v2188
      %v2291 = vadd.f32 %v1985, %v2191
      %v2292 = vadd.f32 %v1986, %v2196
      %v2293 = vadd.f32 %v1987, %v2199
      %v2294 = vadd.f32 %v1988, %v2204
      %v2295 = vadd.f32 %v1989, %v2207
      %v2296 = vadd.f32 %v1990, %v2212
      %v2297 = vadd.f32 %v1991, %v2215
      %v2298 = vadd.f32 %v1992, %v2220
      %v2299 = vadd.f32 %v1993, %v2223
      %v2300 = vadd.f32 %v1994, %v2228
      %v2301 = vadd.f32 %v1995, %v2231
      %v2302 = vadd.f32 %v1996, %v2236
      %v2303 = vadd.f32 %v1997, %v2239
      %v2304 = vadd.f32 %v1998, %v2244
      %v2305 = vadd.f32 %v1999, %v2247
      %v2306 = vadd.f32 %v2000, %v2252
      %v2307 = vadd.f32 %v2001, %v2255
      %v2308 = vadd.f32 %v2002, %v2260
      %v2309 = vadd.f32 %v2003, %v2263
      %v2310 = vadd.f32 %v2004, %v2268
      %v2311 = vadd.f32 %v2005, %v2271
      %v2312 = vadd.f32 %v2006, %v2276
      %v2313 = vadd.f32 %v2007, %v2279
      %v2314 = vld [vmem:[%s816 + $0x9] sm:$0xff]
      %v2315 = vld [vmem:[%s816 + $0x11] sm:$0xff]
      %v2316 = vld [vmem:[%s816 + $0x29] sm:$0xff]
      %v2317 = vld [vmem:[%s816 + $0x31] sm:$0xff]
      %v2318 = vld [vmem:[%s816 + $0x49] sm:$0xff]
      %v2319 = vld [vmem:[%s816 + $0x51] sm:$0xff]
      %v2320 = vld [vmem:[%s816 + $0x69] sm:$0xff]
      %v2321 = vld [vmem:[%s816 + $0x71] sm:$0xff]
      %v2322 = vld [vmem:[%s816 + $0x89] sm:$0xff]
      %v2323 = vld [vmem:[%s816 + $0x91] sm:$0xff]
      %v2324 = vld [vmem:[%s816 + $0xa9] sm:$0xff]
      %v2325 = vld [vmem:[%s816 + $0xb1] sm:$0xff]
      %v2326 = vld [vmem:[%s816 + $0xc9] sm:$0xff]
      %v2327 = vld [vmem:[%s816 + $0xd1] sm:$0xff]
      %v2328 = vld [vmem:[%s816 + $0xe9] sm:$0xff]
      %v2329 = vld [vmem:[%s816 + $0xf1] sm:$0xff]
      %v2330 = vld [vmem:[%s816 + $0x109] sm:$0xff]
      %v2331 = vld [vmem:[%s816 + $0x111] sm:$0xff]
      %v2332 = vld [vmem:[%s816 + $0x129] sm:$0xff]
      %v2333 = vld [vmem:[%s816 + $0x131] sm:$0xff]
      %v2334 = vld [vmem:[%s816 + $0x149] sm:$0xff]
      %v2335 = vld [vmem:[%s816 + $0x151] sm:$0xff]
      %v2336 = vld [vmem:[%s816 + $0x169] sm:$0xff]
      %v2337 = vld [vmem:[%s816 + $0x171] sm:$0xff]
      %v2338 = vld [vmem:[%s816 + $0x189] sm:$0xff]
      %v2339 = vld [vmem:[%s816 + $0x191] sm:$0xff]
      %v2340 = vld [vmem:[%s816 + $0x1a9] sm:$0xff]
      %v2341 = vld [vmem:[%s816 + $0x1b1] sm:$0xff]
      %v2342 = vld [vmem:[%s816 + $0x1c9] sm:$0xff]
      %v2343 = vld [vmem:[%s816 + $0x1d1] sm:$0xff]
      %v2344 = vld [vmem:[%s816 + $0x1e9] sm:$0xff]
      %v2345 = vld [vmem:[%s816 + $0x1f1] sm:$0xff]
      %v2346 = vpack.c.bf16 %v2315, %v2314
      %v2347 = vpack.c.bf16 %v2317, %v2316
      %v2348 = vpack.c.bf16 %v2319, %v2318
      %v2349 = vpack.c.bf16 %v2321, %v2320
      %v2350 = vpack.c.bf16 %v2323, %v2322
      %v2351 = vpack.c.bf16 %v2325, %v2324
      %v2352 = vpack.c.bf16 %v2327, %v2326
      %v2353 = vpack.c.bf16 %v2329, %v2328
      %v2354 = vpack.c.bf16 %v2331, %v2330
      %v2355 = vpack.c.bf16 %v2333, %v2332
      %v2356 = vpack.c.bf16 %v2335, %v2334
      %v2357 = vpack.c.bf16 %v2337, %v2336
      %v2358 = vpack.c.bf16 %v2339, %v2338
      %v2359 = vpack.c.bf16 %v2341, %v2340
      %v2360 = vpack.c.bf16 %v2343, %v2342
      %v2361 = vpack.c.bf16 %v2345, %v2344
      %s2362 = scalar_lea.vmem %s4, 320
      %v2363 = vld [vmem:[%s2362] sm:$0xf]
      %v2364 = vld [vmem:[%s2362 + $0x4] sm:$0xf]
      %v2365 = vld [vmem:[%s2362 + $0x8] sm:$0xf]
      %v2366 = vld [vmem:[%s2362 + $0xc] sm:$0xf]
      %v2367 = vld [vmem:[%s2362 + $0x10] sm:$0xf]
      %v2368 = vld [vmem:[%s2362 + $0x14] sm:$0xf]
      %v2369 = vld [vmem:[%s2362 + $0x18] sm:$0xf]
      %v2370 = vld [vmem:[%s2362 + $0x1c] sm:$0xf]
      %v2371 = vld [vmem:[%s2362 + $0x20] sm:$0xf]
      %v2372 = vld [vmem:[%s2362 + $0x24] sm:$0xf]
      %v2373 = vld [vmem:[%s2362 + $0x28] sm:$0xf]
      %v2374 = vld [vmem:[%s2362 + $0x2c] sm:$0xf]
      %v2375 = vld [vmem:[%s2362 + $0x30] sm:$0xf]
      %v2376 = vld [vmem:[%s2362 + $0x34] sm:$0xf]
      %v2377 = vld [vmem:[%s2362 + $0x38] sm:$0xf]
      %v2378 = vld [vmem:[%s2362 + $0x3c] sm:$0xf]
      %v2395 = vunpack.c.l.b16 %v2363
      %v2396 = vunpack.c.l.b16 %v2364
      %v2397 = vunpack.c.l.b16 %v2365
      %v2398 = vunpack.c.l.b16 %v2366
      %v2399 = vunpack.c.l.b16 %v2367
      %v2400 = vunpack.c.l.b16 %v2368
      %v2401 = vunpack.c.l.b16 %v2369
      %v2402 = vunpack.c.l.b16 %v2370
      %v2403 = vunpack.c.l.b16 %v2371
      %v2404 = vunpack.c.l.b16 %v2372
      %v2405 = vunpack.c.l.b16 %v2373
      %v2406 = vunpack.c.l.b16 %v2374
      %v2407 = vunpack.c.l.b16 %v2375
      %v2408 = vunpack.c.l.b16 %v2376
      %v2409 = vunpack.c.l.b16 %v2377
      %v2410 = vunpack.c.l.b16 %v2378
      %v2411 = vpack.c.b16 %v2396, %v2395
      %v2412 = vpack.c.b16 %v2398, %v2397
      %v2413 = vpack.c.b16 %v2400, %v2399
      %v2414 = vpack.c.b16 %v2402, %v2401
      %v2415 = vpack.c.b16 %v2404, %v2403
      %v2416 = vpack.c.b16 %v2406, %v2405
      %v2417 = vpack.c.b16 %v2408, %v2407
      %v2418 = vpack.c.b16 %v2410, %v2409
      %2427 = vmatprep.subr.bf16.mxu0 0
      %2428 = vmatpush1.bf16.msra.mxu0 %v2411
      %2429 = vmatprep.subr.bf16.mxu0 0
      %2430 = vmatpush1.bf16.msra.mxu0 %v2412
      %2431 = vmatprep.subr.bf16.mxu0 0
      %2432 = vmatpush1.bf16.msra.mxu0 %v2413
      %2433 = vmatprep.subr.bf16.mxu0 0
      %2434 = vmatpush1.bf16.msra.mxu0 %v2414
      %2435 = vmatprep.subr.bf16.mxu0 0
      %2436 = vmatpush1.bf16.msra.mxu0 %v2415
      %2437 = vmatprep.subr.bf16.mxu0 0
      %2438 = vmatpush1.bf16.msra.mxu0 %v2416
      %2439 = vmatprep.subr.bf16.mxu0 0
      %2440 = vmatpush1.bf16.msra.mxu0 %v2417
      %2441 = vmatprep.subr.bf16.mxu0 0
      %2442 = vmatpush1.bf16.msra.mxu0 %v2418
      %2443 = vmatprep.subr.bf16.mxu0 0
      %2444 = vmatpush1.bf16.msra.mxu0 0
      %2445 = vmatprep.subr.bf16.mxu0 0
      %2446 = vmatpush1.bf16.msra.mxu0 0
      %2447 = vmatprep.subr.bf16.mxu0 0
      %2448 = vmatpush1.bf16.msra.mxu0 0
      %2449 = vmatprep.subr.bf16.mxu0 0
      %2450 = vmatpush1.bf16.msra.mxu0 0
      %2451 = vmatprep.subr.bf16.mxu0 0
      %2452 = vmatpush1.bf16.msra.mxu0 0
      %2453 = vmatprep.subr.bf16.mxu0 0
      %2454 = vmatpush1.bf16.msra.mxu0 0
      %2455 = vmatprep.subr.bf16.mxu0 0
      %2456 = vmatpush1.bf16.msra.mxu0 0
      %2457 = vmatprep.subr.bf16.mxu0 0
      %2458 = vmatpush1.bf16.msra.mxu0 0
      %2459 = vmatprep.mubr.bf16.mxu0 0
      %2460 = vmatmul.mubr.bf16.gmra.mrb[0].mxu0 %v2346
      %v2461 = vpop.f32.mrb[0].mxu0
      %v2462 = vadd.f32 0.0, %v2461
      %v2463 = vpop.f32.mrb[0].mxu0
      %v2464 = vpop.f32.mrb[0].mxu0
      %v2465 = vadd.f32 0.0, %v2464
      %v2466 = vpop.f32.mrb[0].mxu0
      %2467 = vmatprep.mubr.bf16.mxu0 0
      %2468 = vmatmul.mubr.bf16.gmra.mrb[0].mxu0 %v2347
      %v2469 = vpop.f32.mrb[0].mxu0
      %v2470 = vadd.f32 0.0, %v2469
      %v2471 = vpop.f32.mrb[0].mxu0
      %v2472 = vpop.f32.mrb[0].mxu0
      %v2473 = vadd.f32 0.0, %v2472
      %v2474 = vpop.f32.mrb[0].mxu0
      %2475 = vmatprep.mubr.bf16.mxu0 0
      %2476 = vmatmul.mubr.bf16.gmra.mrb[0].mxu0 %v2348
      %v2477 = vpop.f32.mrb[0].mxu0
      %v2478 = vadd.f32 0.0, %v2477
      %v2479 = vpop.f32.mrb[0].mxu0
      %v2480 = vpop.f32.mrb[0].mxu0
      %v2481 = vadd.f32 0.0, %v2480
      %v2482 = vpop.f32.mrb[0].mxu0
      %2483 = vmatprep.mubr.bf16.mxu0 0
      %2484 = vmatmul.mubr.bf16.gmra.mrb[0].mxu0 %v2349
      %v2485 = vpop.f32.mrb[0].mxu0
      %v2486 = vadd.f32 0.0, %v2485
      %v2487 = vpop.f32.mrb[0].mxu0
      %v2488 = vpop.f32.mrb[0].mxu0
      %v2489 = vadd.f32 0.0, %v2488
      %v2490 = vpop.f32.mrb[0].mxu0
      %2491 = vmatprep.mubr.bf16.mxu0 0
      %2492 = vmatmul.mubr.bf16.gmra.mrb[0].mxu0 %v2350
      %v2493 = vpop.f32.mrb[0].mxu0
      %v2494 = vadd.f32 0.0, %v2493
      %v2495 = vpop.f32.mrb[0].mxu0
      %v2496 = vpop.f32.mrb[0].mxu0
      %v2497 = vadd.f32 0.0, %v2496
      %v2498 = vpop.f32.mrb[0].mxu0
      %2499 = vmatprep.mubr.bf16.mxu0 0
      %2500 = vmatmul.mubr.bf16.gmra.mrb[0].mxu0 %v2351
      %v2501 = vpop.f32.mrb[0].mxu0
      %v2502 = vadd.f32 0.0, %v2501
      %v2503 = vpop.f32.mrb[0].mxu0
      %v2504 = vpop.f32.mrb[0].mxu0
      %v2505 = vadd.f32 0.0, %v2504
      %v2506 = vpop.f32.mrb[0].mxu0
      %2507 = vmatprep.mubr.bf16.mxu0 0
      %2508 = vmatmul.mubr.bf16.gmra.mrb[0].mxu0 %v2352
      %v2509 = vpop.f32.mrb[0].mxu0
      %v2510 = vadd.f32 0.0, %v2509
      %v2511 = vpop.f32.mrb[0].mxu0
      %v2512 = vpop.f32.mrb[0].mxu0
      %v2513 = vadd.f32 0.0, %v2512
      %v2514 = vpop.f32.mrb[0].mxu0
      %2515 = vmatprep.mubr.bf16.mxu0 0
      %2516 = vmatmul.mubr.bf16.gmra.mrb[0].mxu0 %v2353
      %v2517 = vpop.f32.mrb[0].mxu0
      %v2518 = vadd.f32 0.0, %v2517
      %v2519 = vpop.f32.mrb[0].mxu0
      %v2520 = vpop.f32.mrb[0].mxu0
      %v2521 = vadd.f32 0.0, %v2520
      %v2522 = vpop.f32.mrb[0].mxu0
      %2523 = vmatprep.mubr.bf16.mxu0 0
      %2524 = vmatmul.mubr.bf16.gmra.mrb[0].mxu0 %v2354
      %v2525 = vpop.f32.mrb[0].mxu0
      %v2526 = vadd.f32 0.0, %v2525
      %v2527 = vpop.f32.mrb[0].mxu0
      %v2528 = vpop.f32.mrb[0].mxu0
      %v2529 = vadd.f32 0.0, %v2528
      %v2530 = vpop.f32.mrb[0].mxu0
      %2531 = vmatprep.mubr.bf16.mxu0 0
      %2532 = vmatmul.mubr.bf16.gmra.mrb[0].mxu0 %v2355
      %v2533 = vpop.f32.mrb[0].mxu0
      %v2534 = vadd.f32 0.0, %v2533
      %v2535 = vpop.f32.mrb[0].mxu0
      %v2536 = vpop.f32.mrb[0].mxu0
      %v2537 = vadd.f32 0.0, %v2536
      %v2538 = vpop.f32.mrb[0].mxu0
      %2539 = vmatprep.mubr.bf16.mxu0 0
      %2540 = vmatmul.mubr.bf16.gmra.mrb[0].mxu0 %v2356
      %v2541 = vpop.f32.mrb[0].mxu0
      %v2542 = vadd.f32 0.0, %v2541
      %v2543 = vpop.f32.mrb[0].mxu0
      %v2544 = vpop.f32.mrb[0].mxu0
      %v2545 = vadd.f32 0.0, %v2544
      %v2546 = vpop.f32.mrb[0].mxu0
      %2547 = vmatprep.mubr.bf16.mxu0 0
      %2548 = vmatmul.mubr.bf16.gmra.mrb[0].mxu0 %v2357
      %v2549 = vpop.f32.mrb[0].mxu0
      %v2550 = vadd.f32 0.0, %v2549
      %v2551 = vpop.f32.mrb[0].mxu0
      %v2552 = vpop.f32.mrb[0].mxu0
      %v2553 = vadd.f32 0.0, %v2552
      %v2554 = vpop.f32.mrb[0].mxu0
      %2555 = vmatprep.mubr.bf16.mxu0 0
      %2556 = vmatmul.mubr.bf16.gmra.mrb[0].mxu0 %v2358
      %v2557 = vpop.f32.mrb[0].mxu0
      %v2558 = vadd.f32 0.0, %v2557
      %v2559 = vpop.f32.mrb[0].mxu0
      %v2560 = vpop.f32.mrb[0].mxu0
      %v2561 = vadd.f32 0.0, %v2560
      %v2562 = vpop.f32.mrb[0].mxu0
      %2563 = vmatprep.mubr.bf16.mxu0 0
      %2564 = vmatmul.mubr.bf16.gmra.mrb[0].mxu0 %v2359
      %v2565 = vpop.f32.mrb[0].mxu0
      %v2566 = vadd.f32 0.0, %v2565
      %v2567 = vpop.f32.mrb[0].mxu0
      %v2568 = vpop.f32.mrb[0].mxu0
      %v2569 = vadd.f32 0.0, %v2568
      %v2570 = vpop.f32.mrb[0].mxu0
      %2571 = vmatprep.mubr.bf16.mxu0 0
      %2572 = vmatmul.mubr.bf16.gmra.mrb[0].mxu0 %v2360
      %v2573 = vpop.f32.mrb[0].mxu0
      %v2574 = vadd.f32 0.0, %v2573
      %v2575 = vpop.f32.mrb[0].mxu0
      %v2576 = vpop.f32.mrb[0].mxu0
      %v2577 = vadd.f32 0.0, %v2576
      %v2578 = vpop.f32.mrb[0].mxu0
      %2579 = vmatprep.mubr.bf16.mxu0 0
      %2580 = vmatmul.mubr.bf16.gmra.mrb[0].mxu0 %v2361
      %v2581 = vpop.f32.mrb[0].mxu0
      %v2582 = vadd.f32 0.0, %v2581
      %v2583 = vpop.f32.mrb[0].mxu0
      %v2584 = vpop.f32.mrb[0].mxu0
      %v2585 = vadd.f32 0.0, %v2584
      %v2586 = vpop.f32.mrb[0].mxu0
      %2587 = vdwg.mxu0
      %v2588 = vadd.f32 %v2282, %v2462
      %v2589 = vadd.f32 %v2283, %v2465
      %v2590 = vadd.f32 %v2284, %v2470
      %v2591 = vadd.f32 %v2285, %v2473
      %v2592 = vadd.f32 %v2286, %v2478
      %v2593 = vadd.f32 %v2287, %v2481
      %v2594 = vadd.f32 %v2288, %v2486
      %v2595 = vadd.f32 %v2289, %v2489
      %v2596 = vadd.f32 %v2290, %v2494
      %v2597 = vadd.f32 %v2291, %v2497
      %v2598 = vadd.f32 %v2292, %v2502
      %v2599 = vadd.f32 %v2293, %v2505
      %v2600 = vadd.f32 %v2294, %v2510
      %v2601 = vadd.f32 %v2295, %v2513
      %v2602 = vadd.f32 %v2296, %v2518
      %v2603 = vadd.f32 %v2297, %v2521
      %v2604 = vadd.f32 %v2298, %v2526
      %v2605 = vadd.f32 %v2299, %v2529
      %v2606 = vadd.f32 %v2300, %v2534
      %v2607 = vadd.f32 %v2301, %v2537
      %v2608 = vadd.f32 %v2302, %v2542
      %v2609 = vadd.f32 %v2303, %v2545
      %v2610 = vadd.f32 %v2304, %v2550
      %v2611 = vadd.f32 %v2305, %v2553
      %v2612 = vadd.f32 %v2306, %v2558
      %v2613 = vadd.f32 %v2307, %v2561
      %v2614 = vadd.f32 %v2308, %v2566
      %v2615 = vadd.f32 %v2309, %v2569
      %v2616 = vadd.f32 %v2310, %v2574
      %v2617 = vadd.f32 %v2311, %v2577
      %v2618 = vadd.f32 %v2312, %v2582
      %v2619 = vadd.f32 %v2313, %v2585
      %s2620 = scalar_lea.vmem [#allocation2], 64
      %v2621 = vld [vmem:[%s2620 + $0x7] sm:$0xff]
      %v2622 = vld [vmem:[%s2620 + $0xf] sm:$0xff]
      %v2623 = vld [vmem:[%s2620 + $0x27] sm:$0xff]
      %v2624 = vld [vmem:[%s2620 + $0x2f] sm:$0xff]
      %v2625 = vld [vmem:[%s2620 + $0x47] sm:$0xff]
      %v2626 = vld [vmem:[%s2620 + $0x4f] sm:$0xff]
      %v2627 = vld [vmem:[%s2620 + $0x67] sm:$0xff]
      %v2628 = vld [vmem:[%s2620 + $0x6f] sm:$0xff]
      %v2629 = vld [vmem:[%s2620 + $0x87] sm:$0xff]
      %v2630 = vld [vmem:[%s2620 + $0x8f] sm:$0xff]
      %v2631 = vld [vmem:[%s2620 + $0xa7] sm:$0xff]
      %v2632 = vld [vmem:[%s2620 + $0xaf] sm:$0xff]
      %v2633 = vld [vmem:[%s2620 + $0xc7] sm:$0xff]
      %v2634 = vld [vmem:[%s2620 + $0xcf] sm:$0xff]
      %v2635 = vld [vmem:[%s2620 + $0xe7] sm:$0xff]
      %v2636 = vld [vmem:[%s2620 + $0xef] sm:$0xff]
      %v2637 = vld [vmem:[%s2620 + $0x107] sm:$0xff]
      %v2638 = vld [vmem:[%s2620 + $0x10f] sm:$0xff]
      %v2639 = vld [vmem:[%s2620 + $0x127] sm:$0xff]
      %v2640 = vld [vmem:[%s2620 + $0x12f] sm:$0xff]
      %v2641 = vld [vmem:[%s2620 + $0x147] sm:$0xff]
      %v2642 = vld [vmem:[%s2620 + $0x14f] sm:$0xff]
      %v2643 = vld [vmem:[%s2620 + $0x167] sm:$0xff]
      %v2644 = vld [vmem:[%s2620 + $0x16f] sm:$0xff]
      %v2645 = vld [vmem:[%s2620 + $0x187] sm:$0xff]
      %v2646 = vld [vmem:[%s2620 + $0x18f] sm:$0xff]
      %v2647 = vld [vmem:[%s2620 + $0x1a7] sm:$0xff]
      %v2648 = vld [vmem:[%s2620 + $0x1af] sm:$0xff]
      %v2649 = vld [vmem:[%s2620 + $0x1c7] sm:$0xff]
      %v2650 = vld [vmem:[%s2620 + $0x1cf] sm:$0xff]
      %v2651 = vld [vmem:[%s2620 + $0x1e7] sm:$0xff]
      %v2652 = vld [vmem:[%s2620 + $0x1ef] sm:$0xff]
      %v2653 = vpack.c.bf16 %v2622, %v2621
      %v2654 = vpack.c.bf16 %v2624, %v2623
      %v2655 = vpack.c.bf16 %v2626, %v2625
      %v2656 = vpack.c.bf16 %v2628, %v2627
      %v2657 = vpack.c.bf16 %v2630, %v2629
      %v2658 = vpack.c.bf16 %v2632, %v2631
      %v2659 = vpack.c.bf16 %v2634, %v2633
      %v2660 = vpack.c.bf16 %v2636, %v2635
      %v2661 = vpack.c.bf16 %v2638, %v2637
      %v2662 = vpack.c.bf16 %v2640, %v2639
      %v2663 = vpack.c.bf16 %v2642, %v2641
      %v2664 = vpack.c.bf16 %v2644, %v2643
      %v2665 = vpack.c.bf16 %v2646, %v2645
      %v2666 = vpack.c.bf16 %v2648, %v2647
      %v2667 = vpack.c.bf16 %v2650, %v2649
      %v2668 = vpack.c.bf16 %v2652, %v2651
      %s2669 = scalar_lea.vmem %s4, 384
      %v2670 = vld [vmem:[%s2669] sm:$0xf]
      %v2671 = vld [vmem:[%s2669 + $0x4] sm:$0xf]
      %v2672 = vld [vmem:[%s2669 + $0x8] sm:$0xf]
      %v2673 = vld [vmem:[%s2669 + $0xc] sm:$0xf]
      %v2674 = vld [vmem:[%s2669 + $0x10] sm:$0xf]
      %v2675 = vld [vmem:[%s2669 + $0x14] sm:$0xf]
      %v2676 = vld [vmem:[%s2669 + $0x18] sm:$0xf]
      %v2677 = vld [vmem:[%s2669 + $0x1c] sm:$0xf]
      %v2678 = vld [vmem:[%s2669 + $0x20] sm:$0xf]
      %v2679 = vld [vmem:[%s2669 + $0x24] sm:$0xf]
      %v2680 = vld [vmem:[%s2669 + $0x28] sm:$0xf]
      %v2681 = vld [vmem:[%s2669 + $0x2c] sm:$0xf]
      %v2682 = vld [vmem:[%s2669 + $0x30] sm:$0xf]
      %v2683 = vld [vmem:[%s2669 + $0x34] sm:$0xf]
      %v2684 = vld [vmem:[%s2669 + $0x38] sm:$0xf]
      %v2685 = vld [vmem:[%s2669 + $0x3c] sm:$0xf]
      %v2702 = vunpack.c.l.b16 %v2670
      %v2703 = vunpack.c.l.b16 %v2671
      %v2704 = vunpack.c.l.b16 %v2672
      %v2705 = vunpack.c.l.b16 %v2673
      %v2706 = vunpack.c.l.b16 %v2674
      %v2707 = vunpack.c.l.b16 %v2675
      %v2708 = vunpack.c.l.b16 %v2676
      %v2709 = vunpack.c.l.b16 %v2677
      %v2710 = vunpack.c.l.b16 %v2678
      %v2711 = vunpack.c.l.b16 %v2679
      %v2712 = vunpack.c.l.b16 %v2680
      %v2713 = vunpack.c.l.b16 %v2681
      %v2714 = vunpack.c.l.b16 %v2682
      %v2715 = vunpack.c.l.b16 %v2683
      %v2716 = vunpack.c.l.b16 %v2684
      %v2717 = vunpack.c.l.b16 %v2685
      %v2718 = vpack.c.b16 %v2703, %v2702
      %v2719 = vpack.c.b16 %v2705, %v2704
      %v2720 = vpack.c.b16 %v2707, %v2706
      %v2721 = vpack.c.b16 %v2709, %v2708
      %v2722 = vpack.c.b16 %v2711, %v2710
      %v2723 = vpack.c.b16 %v2713, %v2712
      %v2724 = vpack.c.b16 %v2715, %v2714
      %v2725 = vpack.c.b16 %v2717, %v2716
      %2734 = vmatprep.subr.bf16.mxu0 0
      %2735 = vmatpush1.bf16.msra.mxu0 %v2718
      %2736 = vmatprep.subr.bf16.mxu0 0
      %2737 = vmatpush1.bf16.msra.mxu0 %v2719
      %2738 = vmatprep.subr.bf16.mxu0 0
      %2739 = vmatpush1.bf16.msra.mxu0 %v2720
      %2740 = vmatprep.subr.bf16.mxu0 0
      %2741 = vmatpush1.bf16.msra.mxu0 %v2721
      %2742 = vmatprep.subr.bf16.mxu0 0
      %2743 = vmatpush1.bf16.msra.mxu0 %v2722
      %2744 = vmatprep.subr.bf16.mxu0 0
      %2745 = vmatpush1.bf16.msra.mxu0 %v2723
      %2746 = vmatprep.subr.bf16.mxu0 0
      %2747 = vmatpush1.bf16.msra.mxu0 %v2724
      %2748 = vmatprep.subr.bf16.mxu0 0
      %2749 = vmatpush1.bf16.msra.mxu0 %v2725
      %2750 = vmatprep.subr.bf16.mxu0 0
      %2751 = vmatpush1.bf16.msra.mxu0 0
      %2752 = vmatprep.subr.bf16.mxu0 0
      %2753 = vmatpush1.bf16.msra.mxu0 0
      %2754 = vmatprep.subr.bf16.mxu0 0
      %2755 = vmatpush1.bf16.msra.mxu0 0
      %2756 = vmatprep.subr.bf16.mxu0 0
      %2757 = vmatpush1.bf16.msra.mxu0 0
      %2758 = vmatprep.subr.bf16.mxu0 0
      %2759 = vmatpush1.bf16.msra.mxu0 0
      %2760 = vmatprep.subr.bf16.mxu0 0
      %2761 = vmatpush1.bf16.msra.mxu0 0
      %2762 = vmatprep.subr.bf16.mxu0 0
      %2763 = vmatpush1.bf16.msra.mxu0 0
      %2764 = vmatprep.subr.bf16.mxu0 0
      %2765 = vmatpush1.bf16.msra.mxu0 0
      %2766 = vmatprep.mubr.bf16.mxu0 0
      %2767 = vmatmul.mubr.bf16.gmra.mrb[0].mxu0 %v2653
      %v2768 = vpop.f32.mrb[0].mxu0
      %v2769 = vadd.f32 0.0, %v2768
      %v2770 = vpop.f32.mrb[0].mxu0
      %v2771 = vpop.f32.mrb[0].mxu0
      %v2772 = vadd.f32 0.0, %v2771
      %v2773 = vpop.f32.mrb[0].mxu0
      %2774 = vmatprep.mubr.bf16.mxu0 0
      %2775 = vmatmul.mubr.bf16.gmra.mrb[0].mxu0 %v2654
      %v2776 = vpop.f32.mrb[0].mxu0
      %v2777 = vadd.f32 0.0, %v2776
      %v2778 = vpop.f32.mrb[0].mxu0
      %v2779 = vpop.f32.mrb[0].mxu0
      %v2780 = vadd.f32 0.0, %v2779
      %v2781 = vpop.f32.mrb[0].mxu0
      %2782 = vmatprep.mubr.bf16.mxu0 0
      %2783 = vmatmul.mubr.bf16.gmra.mrb[0].mxu0 %v2655
      %v2784 = vpop.f32.mrb[0].mxu0
      %v2785 = vadd.f32 0.0, %v2784
      %v2786 = vpop.f32.mrb[0].mxu0
      %v2787 = vpop.f32.mrb[0].mxu0
      %v2788 = vadd.f32 0.0, %v2787
      %v2789 = vpop.f32.mrb[0].mxu0
      %2790 = vmatprep.mubr.bf16.mxu0 0
      %2791 = vmatmul.mubr.bf16.gmra.mrb[0].mxu0 %v2656
      %v2792 = vpop.f32.mrb[0].mxu0
      %v2793 = vadd.f32 0.0, %v2792
      %v2794 = vpop.f32.mrb[0].mxu0
      %v2795 = vpop.f32.mrb[0].mxu0
      %v2796 = vadd.f32 0.0, %v2795
      %v2797 = vpop.f32.mrb[0].mxu0
      %2798 = vmatprep.mubr.bf16.mxu0 0
      %2799 = vmatmul.mubr.bf16.gmra.mrb[0].mxu0 %v2657
      %v2800 = vpop.f32.mrb[0].mxu0
      %v2801 = vadd.f32 0.0, %v2800
      %v2802 = vpop.f32.mrb[0].mxu0
      %v2803 = vpop.f32.mrb[0].mxu0
      %v2804 = vadd.f32 0.0, %v2803
      %v2805 = vpop.f32.mrb[0].mxu0
      %2806 = vmatprep.mubr.bf16.mxu0 0
      %2807 = vmatmul.mubr.bf16.gmra.mrb[0].mxu0 %v2658
      %v2808 = vpop.f32.mrb[0].mxu0
      %v2809 = vadd.f32 0.0, %v2808
      %v2810 = vpop.f32.mrb[0].mxu0
      %v2811 = vpop.f32.mrb[0].mxu0
      %v2812 = vadd.f32 0.0, %v2811
      %v2813 = vpop.f32.mrb[0].mxu0
      %2814 = vmatprep.mubr.bf16.mxu0 0
      %2815 = vmatmul.mubr.bf16.gmra.mrb[0].mxu0 %v2659
      %v2816 = vpop.f32.mrb[0].mxu0
      %v2817 = vadd.f32 0.0, %v2816
      %v2818 = vpop.f32.mrb[0].mxu0
      %v2819 = vpop.f32.mrb[0].mxu0
      %v2820 = vadd.f32 0.0, %v2819
      %v2821 = vpop.f32.mrb[0].mxu0
      %2822 = vmatprep.mubr.bf16.mxu0 0
      %2823 = vmatmul.mubr.bf16.gmra.mrb[0].mxu0 %v2660
      %v2824 = vpop.f32.mrb[0].mxu0
      %v2825 = vadd.f32 0.0, %v2824
      %v2826 = vpop.f32.mrb[0].mxu0
      %v2827 = vpop.f32.mrb[0].mxu0
      %v2828 = vadd.f32 0.0, %v2827
      %v2829 = vpop.f32.mrb[0].mxu0
      %2830 = vmatprep.mubr.bf16.mxu0 0
      %2831 = vmatmul.mubr.bf16.gmra.mrb[0].mxu0 %v2661
      %v2832 = vpop.f32.mrb[0].mxu0
      %v2833 = vadd.f32 0.0, %v2832
      %v2834 = vpop.f32.mrb[0].mxu0
      %v2835 = vpop.f32.mrb[0].mxu0
      %v2836 = vadd.f32 0.0, %v2835
      %v2837 = vpop.f32.mrb[0].mxu0
      %2838 = vmatprep.mubr.bf16.mxu0 0
      %2839 = vmatmul.mubr.bf16.gmra.mrb[0].mxu0 %v2662
      %v2840 = vpop.f32.mrb[0].mxu0
      %v2841 = vadd.f32 0.0, %v2840
      %v2842 = vpop.f32.mrb[0].mxu0
      %v2843 = vpop.f32.mrb[0].mxu0
      %v2844 = vadd.f32 0.0, %v2843
      %v2845 = vpop.f32.mrb[0].mxu0
      %2846 = vmatprep.mubr.bf16.mxu0 0
      %2847 = vmatmul.mubr.bf16.gmra.mrb[0].mxu0 %v2663
      %v2848 = vpop.f32.mrb[0].mxu0
      %v2849 = vadd.f32 0.0, %v2848
      %v2850 = vpop.f32.mrb[0].mxu0
      %v2851 = vpop.f32.mrb[0].mxu0
      %v2852 = vadd.f32 0.0, %v2851
      %v2853 = vpop.f32.mrb[0].mxu0
      %2854 = vmatprep.mubr.bf16.mxu0 0
      %2855 = vmatmul.mubr.bf16.gmra.mrb[0].mxu0 %v2664
      %v2856 = vpop.f32.mrb[0].mxu0
      %v2857 = vadd.f32 0.0, %v2856
      %v2858 = vpop.f32.mrb[0].mxu0
      %v2859 = vpop.f32.mrb[0].mxu0
      %v2860 = vadd.f32 0.0, %v2859
      %v2861 = vpop.f32.mrb[0].mxu0
      %2862 = vmatprep.mubr.bf16.mxu0 0
      %2863 = vmatmul.mubr.bf16.gmra.mrb[0].mxu0 %v2665
      %v2864 = vpop.f32.mrb[0].mxu0
      %v2865 = vadd.f32 0.0, %v2864
      %v2866 = vpop.f32.mrb[0].mxu0
      %v2867 = vpop.f32.mrb[0].mxu0
      %v2868 = vadd.f32 0.0, %v2867
      %v2869 = vpop.f32.mrb[0].mxu0
      %2870 = vmatprep.mubr.bf16.mxu0 0
      %2871 = vmatmul.mubr.bf16.gmra.mrb[0].mxu0 %v2666
      %v2872 = vpop.f32.mrb[0].mxu0
      %v2873 = vadd.f32 0.0, %v2872
      %v2874 = vpop.f32.mrb[0].mxu0
      %v2875 = vpop.f32.mrb[0].mxu0
      %v2876 = vadd.f32 0.0, %v2875
      %v2877 = vpop.f32.mrb[0].mxu0
      %2878 = vmatprep.mubr.bf16.mxu0 0
      %2879 = vmatmul.mubr.bf16.gmra.mrb[0].mxu0 %v2667
      %v2880 = vpop.f32.mrb[0].mxu0
      %v2881 = vadd.f32 0.0, %v2880
      %v2882 = vpop.f32.mrb[0].mxu0
      %v2883 = vpop.f32.mrb[0].mxu0
      %v2884 = vadd.f32 0.0, %v2883
      %v2885 = vpop.f32.mrb[0].mxu0
      %2886 = vmatprep.mubr.bf16.mxu0 0
      %2887 = vmatmul.mubr.bf16.gmra.mrb[0].mxu0 %v2668
      %v2888 = vpop.f32.mrb[0].mxu0
      %v2889 = vadd.f32 0.0, %v2888
      %v2890 = vpop.f32.mrb[0].mxu0
      %v2891 = vpop.f32.mrb[0].mxu0
      %v2892 = vadd.f32 0.0, %v2891
      %v2893 = vpop.f32.mrb[0].mxu0
      %2894 = vdwg.mxu0
      %v2895 = vadd.f32 %v2588, %v2769
      %v2896 = vadd.f32 %v2589, %v2772
      %v2897 = vadd.f32 %v2590, %v2777
      %v2898 = vadd.f32 %v2591, %v2780
      %v2899 = vadd.f32 %v2592, %v2785
      %v2900 = vadd.f32 %v2593, %v2788
      %v2901 = vadd.f32 %v2594, %v2793
      %v2902 = vadd.f32 %v2595, %v2796
      %v2903 = vadd.f32 %v2596, %v2801
      %v2904 = vadd.f32 %v2597, %v2804
      %v2905 = vadd.f32 %v2598, %v2809
      %v2906 = vadd.f32 %v2599, %v2812
      %v2907 = vadd.f32 %v2600, %v2817
      %v2908 = vadd.f32 %v2601, %v2820
      %v2909 = vadd.f32 %v2602, %v2825
      %v2910 = vadd.f32 %v2603, %v2828
      %v2911 = vadd.f32 %v2604, %v2833
      %v2912 = vadd.f32 %v2605, %v2836
      %v2913 = vadd.f32 %v2606, %v2841
      %v2914 = vadd.f32 %v2607, %v2844
      %v2915 = vadd.f32 %v2608, %v2849
      %v2916 = vadd.f32 %v2609, %v2852
      %v2917 = vadd.f32 %v2610, %v2857
      %v2918 = vadd.f32 %v2611, %v2860
      %v2919 = vadd.f32 %v2612, %v2865
      %v2920 = vadd.f32 %v2613, %v2868
      %v2921 = vadd.f32 %v2614, %v2873
      %v2922 = vadd.f32 %v2615, %v2876
      %v2923 = vadd.f32 %v2616, %v2881
      %v2924 = vadd.f32 %v2617, %v2884
      %v2925 = vadd.f32 %v2618, %v2889
      %v2926 = vadd.f32 %v2619, %v2892
      %v2927 = vld [vmem:[%s2620 + $0x8] sm:$0xff]
      %v2928 = vld [vmem:[%s2620 + $0x10] sm:$0xff]
      %v2929 = vld [vmem:[%s2620 + $0x28] sm:$0xff]
      %v2930 = vld [vmem:[%s2620 + $0x30] sm:$0xff]
      %v2931 = vld [vmem:[%s2620 + $0x48] sm:$0xff]
      %v2932 = vld [vmem:[%s2620 + $0x50] sm:$0xff]
      %v2933 = vld [vmem:[%s2620 + $0x68] sm:$0xff]
      %v2934 = vld [vmem:[%s2620 + $0x70] sm:$0xff]
      %v2935 = vld [vmem:[%s2620 + $0x88] sm:$0xff]
      %v2936 = vld [vmem:[%s2620 + $0x90] sm:$0xff]
      %v2937 = vld [vmem:[%s2620 + $0xa8] sm:$0xff]
      %v2938 = vld [vmem:[%s2620 + $0xb0] sm:$0xff]
      %v2939 = vld [vmem:[%s2620 + $0xc8] sm:$0xff]
      %v2940 = vld [vmem:[%s2620 + $0xd0] sm:$0xff]
      %v2941 = vld [vmem:[%s2620 + $0xe8] sm:$0xff]
      %v2942 = vld [vmem:[%s2620 + $0xf0] sm:$0xff]
      %v2943 = vld [vmem:[%s2620 + $0x108] sm:$0xff]
      %v2944 = vld [vmem:[%s2620 + $0x110] sm:$0xff]
      %v2945 = vld [vmem:[%s2620 + $0x128] sm:$0xff]
      %v2946 = vld [vmem:[%s2620 + $0x130] sm:$0xff]
      %v2947 = vld [vmem:[%s2620 + $0x148] sm:$0xff]
      %v2948 = vld [vmem:[%s2620 + $0x150] sm:$0xff]
      %v2949 = vld [vmem:[%s2620 + $0x168] sm:$0xff]
      %v2950 = vld [vmem:[%s2620 + $0x170] sm:$0xff]
      %v2951 = vld [vmem:[%s2620 + $0x188] sm:$0xff]
      %v2952 = vld [vmem:[%s2620 + $0x190] sm:$0xff]
      %v2953 = vld [vmem:[%s2620 + $0x1a8] sm:$0xff]
      %v2954 = vld [vmem:[%s2620 + $0x1b0] sm:$0xff]
      %v2955 = vld [vmem:[%s2620 + $0x1c8] sm:$0xff]
      %v2956 = vld [vmem:[%s2620 + $0x1d0] sm:$0xff]
      %v2957 = vld [vmem:[%s2620 + $0x1e8] sm:$0xff]
      %v2958 = vld [vmem:[%s2620 + $0x1f0] sm:$0xff]
      %v2959 = vpack.c.bf16 %v2928, %v2927
      %v2960 = vpack.c.bf16 %v2930, %v2929
      %v2961 = vpack.c.bf16 %v2932, %v2931
      %v2962 = vpack.c.bf16 %v2934, %v2933
      %v2963 = vpack.c.bf16 %v2936, %v2935
      %v2964 = vpack.c.bf16 %v2938, %v2937
      %v2965 = vpack.c.bf16 %v2940, %v2939
      %v2966 = vpack.c.bf16 %v2942, %v2941
      %v2967 = vpack.c.bf16 %v2944, %v2943
      %v2968 = vpack.c.bf16 %v2946, %v2945
      %v2969 = vpack.c.bf16 %v2948, %v2947
      %v2970 = vpack.c.bf16 %v2950, %v2949
      %v2971 = vpack.c.bf16 %v2952, %v2951
      %v2972 = vpack.c.bf16 %v2954, %v2953
      %v2973 = vpack.c.bf16 %v2956, %v2955
      %v2974 = vpack.c.bf16 %v2958, %v2957
      %s2975 = scalar_lea.vmem %s4, 448
      %v2976 = vld [vmem:[%s2975] sm:$0xf]
      %v2977 = vld [vmem:[%s2975 + $0x4] sm:$0xf]
      %v2978 = vld [vmem:[%s2975 + $0x8] sm:$0xf]
      %v2979 = vld [vmem:[%s2975 + $0xc] sm:$0xf]
      %v2980 = vld [vmem:[%s2975 + $0x10] sm:$0xf]
      %v2981 = vld [vmem:[%s2975 + $0x14] sm:$0xf]
      %v2982 = vld [vmem:[%s2975 + $0x18] sm:$0xf]
      %v2983 = vld [vmem:[%s2975 + $0x1c] sm:$0xf]
      %v2984 = vld [vmem:[%s2975 + $0x20] sm:$0xf]
      %v2985 = vld [vmem:[%s2975 + $0x24] sm:$0xf]
      %v2986 = vld [vmem:[%s2975 + $0x28] sm:$0xf]
      %v2987 = vld [vmem:[%s2975 + $0x2c] sm:$0xf]
      %v2988 = vld [vmem:[%s2975 + $0x30] sm:$0xf]
      %v2989 = vld [vmem:[%s2975 + $0x34] sm:$0xf]
      %v2990 = vld [vmem:[%s2975 + $0x38] sm:$0xf]
      %v2991 = vld [vmem:[%s2975 + $0x3c] sm:$0xf]
      %v3008 = vunpack.c.l.b16 %v2976
      %v3009 = vunpack.c.l.b16 %v2977
      %v3010 = vunpack.c.l.b16 %v2978
      %v3011 = vunpack.c.l.b16 %v2979
      %v3012 = vunpack.c.l.b16 %v2980
      %v3013 = vunpack.c.l.b16 %v2981
      %v3014 = vunpack.c.l.b16 %v2982
      %v3015 = vunpack.c.l.b16 %v2983
      %v3016 = vunpack.c.l.b16 %v2984
      %v3017 = vunpack.c.l.b16 %v2985
      %v3018 = vunpack.c.l.b16 %v2986
      %v3019 = vunpack.c.l.b16 %v2987
      %v3020 = vunpack.c.l.b16 %v2988
      %v3021 = vunpack.c.l.b16 %v2989
      %v3022 = vunpack.c.l.b16 %v2990
      %v3023 = vunpack.c.l.b16 %v2991
      %v3024 = vpack.c.b16 %v3009, %v3008
      %v3025 = vpack.c.b16 %v3011, %v3010
      %v3026 = vpack.c.b16 %v3013, %v3012
      %v3027 = vpack.c.b16 %v3015, %v3014
      %v3028 = vpack.c.b16 %v3017, %v3016
      %v3029 = vpack.c.b16 %v3019, %v3018
      %v3030 = vpack.c.b16 %v3021, %v3020
      %v3031 = vpack.c.b16 %v3023, %v3022
      %3040 = vmatprep.subr.bf16.mxu0 0
      %3041 = vmatpush1.bf16.msra.mxu0 %v3024
      %3042 = vmatprep.subr.bf16.mxu0 0
      %3043 = vmatpush1.bf16.msra.mxu0 %v3025
      %3044 = vmatprep.subr.bf16.mxu0 0
      %3045 = vmatpush1.bf16.msra.mxu0 %v3026
      %3046 = vmatprep.subr.bf16.mxu0 0
      %3047 = vmatpush1.bf16.msra.mxu0 %v3027
      %3048 = vmatprep.subr.bf16.mxu0 0
      %3049 = vmatpush1.bf16.msra.mxu0 %v3028
      %3050 = vmatprep.subr.bf16.mxu0 0
      %3051 = vmatpush1.bf16.msra.mxu0 %v3029
      %3052 = vmatprep.subr.bf16.mxu0 0
      %3053 = vmatpush1.bf16.msra.mxu0 %v3030
      %3054 = vmatprep.subr.bf16.mxu0 0
      %3055 = vmatpush1.bf16.msra.mxu0 %v3031
      %3056 = vmatprep.subr.bf16.mxu0 0
      %3057 = vmatpush1.bf16.msra.mxu0 0
      %3058 = vmatprep.subr.bf16.mxu0 0
      %3059 = vmatpush1.bf16.msra.mxu0 0
      %3060 = vmatprep.subr.bf16.mxu0 0
      %3061 = vmatpush1.bf16.msra.mxu0 0
      %3062 = vmatprep.subr.bf16.mxu0 0
      %3063 = vmatpush1.bf16.msra.mxu0 0
      %3064 = vmatprep.subr.bf16.mxu0 0
      %3065 = vmatpush1.bf16.msra.mxu0 0
      %3066 = vmatprep.subr.bf16.mxu0 0
      %3067 = vmatpush1.bf16.msra.mxu0 0
      %3068 = vmatprep.subr.bf16.mxu0 0
      %3069 = vmatpush1.bf16.msra.mxu0 0
      %3070 = vmatprep.subr.bf16.mxu0 0
      %3071 = vmatpush1.bf16.msra.mxu0 0
      %3072 = vmatprep.mubr.bf16.mxu0 0
      %3073 = vmatmul.mubr.bf16.gmra.mrb[0].mxu0 %v2959
      %v3074 = vpop.f32.mrb[0].mxu0
      %v3075 = vadd.f32 0.0, %v3074
      %v3076 = vpop.f32.mrb[0].mxu0
      %v3077 = vpop.f32.mrb[0].mxu0
      %v3078 = vadd.f32 0.0, %v3077
      %v3079 = vpop.f32.mrb[0].mxu0
      %3080 = vmatprep.mubr.bf16.mxu0 0
      %3081 = vmatmul.mubr.bf16.gmra.mrb[0].mxu0 %v2960
      %v3082 = vpop.f32.mrb[0].mxu0
      %v3083 = vadd.f32 0.0, %v3082
      %v3084 = vpop.f32.mrb[0].mxu0
      %v3085 = vpop.f32.mrb[0].mxu0
      %v3086 = vadd.f32 0.0, %v3085
      %v3087 = vpop.f32.mrb[0].mxu0
      %3088 = vmatprep.mubr.bf16.mxu0 0
      %3089 = vmatmul.mubr.bf16.gmra.mrb[0].mxu0 %v2961
      %v3090 = vpop.f32.mrb[0].mxu0
      %v3091 = vadd.f32 0.0, %v3090
      %v3092 = vpop.f32.mrb[0].mxu0
      %v3093 = vpop.f32.mrb[0].mxu0
      %v3094 = vadd.f32 0.0, %v3093
      %v3095 = vpop.f32.mrb[0].mxu0
      %3096 = vmatprep.mubr.bf16.mxu0 0
      %3097 = vmatmul.mubr.bf16.gmra.mrb[0].mxu0 %v2962
      %v3098 = vpop.f32.mrb[0].mxu0
      %v3099 = vadd.f32 0.0, %v3098
      %v3100 = vpop.f32.mrb[0].mxu0
      %v3101 = vpop.f32.mrb[0].mxu0
      %v3102 = vadd.f32 0.0, %v3101
      %v3103 = vpop.f32.mrb[0].mxu0
      %3104 = vmatprep.mubr.bf16.mxu0 0
      %3105 = vmatmul.mubr.bf16.gmra.mrb[0].mxu0 %v2963
      %v3106 = vpop.f32.mrb[0].mxu0
      %v3107 = vadd.f32 0.0, %v3106
      %v3108 = vpop.f32.mrb[0].mxu0
      %v3109 = vpop.f32.mrb[0].mxu0
      %v3110 = vadd.f32 0.0, %v3109
      %v3111 = vpop.f32.mrb[0].mxu0
      %3112 = vmatprep.mubr.bf16.mxu0 0
      %3113 = vmatmul.mubr.bf16.gmra.mrb[0].mxu0 %v2964
      %v3114 = vpop.f32.mrb[0].mxu0
      %v3115 = vadd.f32 0.0, %v3114
      %v3116 = vpop.f32.mrb[0].mxu0
      %v3117 = vpop.f32.mrb[0].mxu0
      %v3118 = vadd.f32 0.0, %v3117
      %v3119 = vpop.f32.mrb[0].mxu0
      %3120 = vmatprep.mubr.bf16.mxu0 0
      %3121 = vmatmul.mubr.bf16.gmra.mrb[0].mxu0 %v2965
      %v3122 = vpop.f32.mrb[0].mxu0
      %v3123 = vadd.f32 0.0, %v3122
      %v3124 = vpop.f32.mrb[0].mxu0
      %v3125 = vpop.f32.mrb[0].mxu0
      %v3126 = vadd.f32 0.0, %v3125
      %v3127 = vpop.f32.mrb[0].mxu0
      %3128 = vmatprep.mubr.bf16.mxu0 0
      %3129 = vmatmul.mubr.bf16.gmra.mrb[0].mxu0 %v2966
      %v3130 = vpop.f32.mrb[0].mxu0
      %v3131 = vadd.f32 0.0, %v3130
      %v3132 = vpop.f32.mrb[0].mxu0
      %v3133 = vpop.f32.mrb[0].mxu0
      %v3134 = vadd.f32 0.0, %v3133
      %v3135 = vpop.f32.mrb[0].mxu0
      %3136 = vmatprep.mubr.bf16.mxu0 0
      %3137 = vmatmul.mubr.bf16.gmra.mrb[0].mxu0 %v2967
      %v3138 = vpop.f32.mrb[0].mxu0
      %v3139 = vadd.f32 0.0, %v3138
      %v3140 = vpop.f32.mrb[0].mxu0
      %v3141 = vpop.f32.mrb[0].mxu0
      %v3142 = vadd.f32 0.0, %v3141
      %v3143 = vpop.f32.mrb[0].mxu0
      %3144 = vmatprep.mubr.bf16.mxu0 0
      %3145 = vmatmul.mubr.bf16.gmra.mrb[0].mxu0 %v2968
      %v3146 = vpop.f32.mrb[0].mxu0
      %v3147 = vadd.f32 0.0, %v3146
      %v3148 = vpop.f32.mrb[0].mxu0
      %v3149 = vpop.f32.mrb[0].mxu0
      %v3150 = vadd.f32 0.0, %v3149
      %v3151 = vpop.f32.mrb[0].mxu0
      %3152 = vmatprep.mubr.bf16.mxu0 0
      %3153 = vmatmul.mubr.bf16.gmra.mrb[0].mxu0 %v2969
      %v3154 = vpop.f32.mrb[0].mxu0
      %v3155 = vadd.f32 0.0, %v3154
      %v3156 = vpop.f32.mrb[0].mxu0
      %v3157 = vpop.f32.mrb[0].mxu0
      %v3158 = vadd.f32 0.0, %v3157
      %v3159 = vpop.f32.mrb[0].mxu0
      %3160 = vmatprep.mubr.bf16.mxu0 0
      %3161 = vmatmul.mubr.bf16.gmra.mrb[0].mxu0 %v2970
      %v3162 = vpop.f32.mrb[0].mxu0
      %v3163 = vadd.f32 0.0, %v3162
      %v3164 = vpop.f32.mrb[0].mxu0
      %v3165 = vpop.f32.mrb[0].mxu0
      %v3166 = vadd.f32 0.0, %v3165
      %v3167 = vpop.f32.mrb[0].mxu0
      %3168 = vmatprep.mubr.bf16.mxu0 0
      %3169 = vmatmul.mubr.bf16.gmra.mrb[0].mxu0 %v2971
      %v3170 = vpop.f32.mrb[0].mxu0
      %v3171 = vadd.f32 0.0, %v3170
      %v3172 = vpop.f32.mrb[0].mxu0
      %v3173 = vpop.f32.mrb[0].mxu0
      %v3174 = vadd.f32 0.0, %v3173
      %v3175 = vpop.f32.mrb[0].mxu0
      %3176 = vmatprep.mubr.bf16.mxu0 0
      %3177 = vmatmul.mubr.bf16.gmra.mrb[0].mxu0 %v2972
      %v3178 = vpop.f32.mrb[0].mxu0
      %v3179 = vadd.f32 0.0, %v3178
      %v3180 = vpop.f32.mrb[0].mxu0
      %v3181 = vpop.f32.mrb[0].mxu0
      %v3182 = vadd.f32 0.0, %v3181
      %v3183 = vpop.f32.mrb[0].mxu0
      %3184 = vmatprep.mubr.bf16.mxu0 0
      %3185 = vmatmul.mubr.bf16.gmra.mrb[0].mxu0 %v2973
      %v3186 = vpop.f32.mrb[0].mxu0
      %v3187 = vadd.f32 0.0, %v3186
      %v3188 = vpop.f32.mrb[0].mxu0
      %v3189 = vpop.f32.mrb[0].mxu0
      %v3190 = vadd.f32 0.0, %v3189
      %v3191 = vpop.f32.mrb[0].mxu0
      %3192 = vmatprep.mubr.bf16.mxu0 0
      %3193 = vmatmul.mubr.bf16.gmra.mrb[0].mxu0 %v2974
      %v3194 = vpop.f32.mrb[0].mxu0
      %v3195 = vadd.f32 0.0, %v3194
      %v3196 = vpop.f32.mrb[0].mxu0
      %v3197 = vpop.f32.mrb[0].mxu0
      %v3198 = vadd.f32 0.0, %v3197
      %v3199 = vpop.f32.mrb[0].mxu0
      %3200 = vdwg.mxu0
      %v3201 = vadd.f32 %v2895, %v3075
      %v3202 = vadd.f32 %v2896, %v3078
      %v3203 = vadd.f32 %v2897, %v3083
      %v3204 = vadd.f32 %v2898, %v3086
      %v3205 = vadd.f32 %v2899, %v3091
      %v3206 = vadd.f32 %v2900, %v3094
      %v3207 = vadd.f32 %v2901, %v3099
      %v3208 = vadd.f32 %v2902, %v3102
      %v3209 = vadd.f32 %v2903, %v3107
      %v3210 = vadd.f32 %v2904, %v3110
      %v3211 = vadd.f32 %v2905, %v3115
      %v3212 = vadd.f32 %v2906, %v3118
      %v3213 = vadd.f32 %v2907, %v3123
      %v3214 = vadd.f32 %v2908, %v3126
      %v3215 = vadd.f32 %v2909, %v3131
      %v3216 = vadd.f32 %v2910, %v3134
      %v3217 = vadd.f32 %v2911, %v3139
      %v3218 = vadd.f32 %v2912, %v3142
      %v3219 = vadd.f32 %v2913, %v3147
      %v3220 = vadd.f32 %v2914, %v3150
      %v3221 = vadd.f32 %v2915, %v3155
      %v3222 = vadd.f32 %v2916, %v3158
      %v3223 = vadd.f32 %v2917, %v3163
      %v3224 = vadd.f32 %v2918, %v3166
      %v3225 = vadd.f32 %v2919, %v3171
      %v3226 = vadd.f32 %v2920, %v3174
      %v3227 = vadd.f32 %v2921, %v3179
      %v3228 = vadd.f32 %v2922, %v3182
      %v3229 = vadd.f32 %v2923, %v3187
      %v3230 = vadd.f32 %v2924, %v3190
      %v3231 = vadd.f32 %v2925, %v3195
      %v3232 = vadd.f32 %v2926, %v3198
      %v3233 = vld [vmem:[%s2620 + $0x9] sm:$0xff]
      %v3234 = vld [vmem:[%s2620 + $0x11] sm:$0xff]
      %v3235 = vld [vmem:[%s2620 + $0x29] sm:$0xff]
      %v3236 = vld [vmem:[%s2620 + $0x31] sm:$0xff]
      %v3237 = vld [vmem:[%s2620 + $0x49] sm:$0xff]
      %v3238 = vld [vmem:[%s2620 + $0x51] sm:$0xff]
      %v3239 = vld [vmem:[%s2620 + $0x69] sm:$0xff]
      %v3240 = vld [vmem:[%s2620 + $0x71] sm:$0xff]
      %v3241 = vld [vmem:[%s2620 + $0x89] sm:$0xff]
      %v3242 = vld [vmem:[%s2620 + $0x91] sm:$0xff]
      %v3243 = vld [vmem:[%s2620 + $0xa9] sm:$0xff]
      %v3244 = vld [vmem:[%s2620 + $0xb1] sm:$0xff]
      %v3245 = vld [vmem:[%s2620 + $0xc9] sm:$0xff]
      %v3246 = vld [vmem:[%s2620 + $0xd1] sm:$0xff]
      %v3247 = vld [vmem:[%s2620 + $0xe9] sm:$0xff]
      %v3248 = vld [vmem:[%s2620 + $0xf1] sm:$0xff]
      %v3249 = vld [vmem:[%s2620 + $0x109] sm:$0xff]
      %v3250 = vld [vmem:[%s2620 + $0x111] sm:$0xff]
      %v3251 = vld [vmem:[%s2620 + $0x129] sm:$0xff]
      %v3252 = vld [vmem:[%s2620 + $0x131] sm:$0xff]
      %v3253 = vld [vmem:[%s2620 + $0x149] sm:$0xff]
      %v3254 = vld [vmem:[%s2620 + $0x151] sm:$0xff]
      %v3255 = vld [vmem:[%s2620 + $0x169] sm:$0xff]
      %v3256 = vld [vmem:[%s2620 + $0x171] sm:$0xff]
      %v3257 = vld [vmem:[%s2620 + $0x189] sm:$0xff]
      %v3258 = vld [vmem:[%s2620 + $0x191] sm:$0xff]
      %v3259 = vld [vmem:[%s2620 + $0x1a9] sm:$0xff]
      %v3260 = vld [vmem:[%s2620 + $0x1b1] sm:$0xff]
      %v3261 = vld [vmem:[%s2620 + $0x1c9] sm:$0xff]
      %v3262 = vld [vmem:[%s2620 + $0x1d1] sm:$0xff]
      %v3263 = vld [vmem:[%s2620 + $0x1e9] sm:$0xff]
      %v3264 = vld [vmem:[%s2620 + $0x1f1] sm:$0xff]
      %v3265 = vpack.c.bf16 %v3234, %v3233
      %v3266 = vpack.c.bf16 %v3236, %v3235
      %v3267 = vpack.c.bf16 %v3238, %v3237
      %v3268 = vpack.c.bf16 %v3240, %v3239
      %v3269 = vpack.c.bf16 %v3242, %v3241
      %v3270 = vpack.c.bf16 %v3244, %v3243
      %v3271 = vpack.c.bf16 %v3246, %v3245
      %v3272 = vpack.c.bf16 %v3248, %v3247
      %v3273 = vpack.c.bf16 %v3250, %v3249
      %v3274 = vpack.c.bf16 %v3252, %v3251
      %v3275 = vpack.c.bf16 %v3254, %v3253
      %v3276 = vpack.c.bf16 %v3256, %v3255
      %v3277 = vpack.c.bf16 %v3258, %v3257
      %v3278 = vpack.c.bf16 %v3260, %v3259
      %v3279 = vpack.c.bf16 %v3262, %v3261
      %v3280 = vpack.c.bf16 %v3264, %v3263
      %s3281 = scalar_lea.vmem %s4, 512
      %v3282 = vld [vmem:[%s3281] sm:$0xf]
      %v3283 = vld [vmem:[%s3281 + $0x4] sm:$0xf]
      %v3284 = vld [vmem:[%s3281 + $0x8] sm:$0xf]
      %v3285 = vld [vmem:[%s3281 + $0xc] sm:$0xf]
      %v3286 = vld [vmem:[%s3281 + $0x10] sm:$0xf]
      %v3287 = vld [vmem:[%s3281 + $0x14] sm:$0xf]
      %v3288 = vld [vmem:[%s3281 + $0x18] sm:$0xf]
      %v3289 = vld [vmem:[%s3281 + $0x1c] sm:$0xf]
      %v3290 = vld [vmem:[%s3281 + $0x20] sm:$0xf]
      %v3291 = vld [vmem:[%s3281 + $0x24] sm:$0xf]
      %v3292 = vld [vmem:[%s3281 + $0x28] sm:$0xf]
      %v3293 = vld [vmem:[%s3281 + $0x2c] sm:$0xf]
      %v3294 = vld [vmem:[%s3281 + $0x30] sm:$0xf]
      %v3295 = vld [vmem:[%s3281 + $0x34] sm:$0xf]
      %v3296 = vld [vmem:[%s3281 + $0x38] sm:$0xf]
      %v3297 = vld [vmem:[%s3281 + $0x3c] sm:$0xf]
      %v3314 = vunpack.c.l.b16 %v3282
      %v3315 = vunpack.c.l.b16 %v3283
      %v3316 = vunpack.c.l.b16 %v3284
      %v3317 = vunpack.c.l.b16 %v3285
      %v3318 = vunpack.c.l.b16 %v3286
      %v3319 = vunpack.c.l.b16 %v3287
      %v3320 = vunpack.c.l.b16 %v3288
      %v3321 = vunpack.c.l.b16 %v3289
      %v3322 = vunpack.c.l.b16 %v3290
      %v3323 = vunpack.c.l.b16 %v3291
      %v3324 = vunpack.c.l.b16 %v3292
      %v3325 = vunpack.c.l.b16 %v3293
      %v3326 = vunpack.c.l.b16 %v3294
      %v3327 = vunpack.c.l.b16 %v3295
      %v3328 = vunpack.c.l.b16 %v3296
      %v3329 = vunpack.c.l.b16 %v3297
      %v3330 = vpack.c.b16 %v3315, %v3314
      %v3331 = vpack.c.b16 %v3317, %v3316
      %v3332 = vpack.c.b16 %v3319, %v3318
      %v3333 = vpack.c.b16 %v3321, %v3320
      %v3334 = vpack.c.b16 %v3323, %v3322
      %v3335 = vpack.c.b16 %v3325, %v3324
      %v3336 = vpack.c.b16 %v3327, %v3326
      %v3337 = vpack.c.b16 %v3329, %v3328
      %3346 = vmatprep.subr.bf16.mxu0 0
      %3347 = vmatpush1.bf16.msra.mxu0 %v3330
      %3348 = vmatprep.subr.bf16.mxu0 0
      %3349 = vmatpush1.bf16.msra.mxu0 %v3331
      %3350 = vmatprep.subr.bf16.mxu0 0
      %3351 = vmatpush1.bf16.msra.mxu0 %v3332
      %3352 = vmatprep.subr.bf16.mxu0 0
      %3353 = vmatpush1.bf16.msra.mxu0 %v3333
      %3354 = vmatprep.subr.bf16.mxu0 0
      %3355 = vmatpush1.bf16.msra.mxu0 %v3334
      %3356 = vmatprep.subr.bf16.mxu0 0
      %3357 = vmatpush1.bf16.msra.mxu0 %v3335
      %3358 = vmatprep.subr.bf16.mxu0 0
      %3359 = vmatpush1.bf16.msra.mxu0 %v3336
      %3360 = vmatprep.subr.bf16.mxu0 0
      %3361 = vmatpush1.bf16.msra.mxu0 %v3337
      %3362 = vmatprep.subr.bf16.mxu0 0
      %3363 = vmatpush1.bf16.msra.mxu0 0
      %3364 = vmatprep.subr.bf16.mxu0 0
      %3365 = vmatpush1.bf16.msra.mxu0 0
      %3366 = vmatprep.subr.bf16.mxu0 0
      %3367 = vmatpush1.bf16.msra.mxu0 0
      %3368 = vmatprep.subr.bf16.mxu0 0
      %3369 = vmatpush1.bf16.msra.mxu0 0
      %3370 = vmatprep.subr.bf16.mxu0 0
      %3371 = vmatpush1.bf16.msra.mxu0 0
      %3372 = vmatprep.subr.bf16.mxu0 0
      %3373 = vmatpush1.bf16.msra.mxu0 0
      %3374 = vmatprep.subr.bf16.mxu0 0
      %3375 = vmatpush1.bf16.msra.mxu0 0
      %3376 = vmatprep.subr.bf16.mxu0 0
      %3377 = vmatpush1.bf16.msra.mxu0 0
      %3378 = vmatprep.mubr.bf16.mxu0 0
      %3379 = vmatmul.mubr.bf16.gmra.mrb[0].mxu0 %v3265
      %v3380 = vpop.f32.mrb[0].mxu0
      %v3381 = vadd.f32 0.0, %v3380
      %v3382 = vpop.f32.mrb[0].mxu0
      %v3383 = vpop.f32.mrb[0].mxu0
      %v3384 = vadd.f32 0.0, %v3383
      %v3385 = vpop.f32.mrb[0].mxu0
      %3386 = vmatprep.mubr.bf16.mxu0 0
      %3387 = vmatmul.mubr.bf16.gmra.mrb[0].mxu0 %v3266
      %v3388 = vpop.f32.mrb[0].mxu0
      %v3389 = vadd.f32 0.0, %v3388
      %v3390 = vpop.f32.mrb[0].mxu0
      %v3391 = vpop.f32.mrb[0].mxu0
      %v3392 = vadd.f32 0.0, %v3391
      %v3393 = vpop.f32.mrb[0].mxu0
      %3394 = vmatprep.mubr.bf16.mxu0 0
      %3395 = vmatmul.mubr.bf16.gmra.mrb[0].mxu0 %v3267
      %v3396 = vpop.f32.mrb[0].mxu0
      %v3397 = vadd.f32 0.0, %v3396
      %v3398 = vpop.f32.mrb[0].mxu0
      %v3399 = vpop.f32.mrb[0].mxu0
      %v3400 = vadd.f32 0.0, %v3399
      %v3401 = vpop.f32.mrb[0].mxu0
      %3402 = vmatprep.mubr.bf16.mxu0 0
      %3403 = vmatmul.mubr.bf16.gmra.mrb[0].mxu0 %v3268
      %v3404 = vpop.f32.mrb[0].mxu0
      %v3405 = vadd.f32 0.0, %v3404
      %v3406 = vpop.f32.mrb[0].mxu0
      %v3407 = vpop.f32.mrb[0].mxu0
      %v3408 = vadd.f32 0.0, %v3407
      %v3409 = vpop.f32.mrb[0].mxu0
      %3410 = vmatprep.mubr.bf16.mxu0 0
      %3411 = vmatmul.mubr.bf16.gmra.mrb[0].mxu0 %v3269
      %v3412 = vpop.f32.mrb[0].mxu0
      %v3413 = vadd.f32 0.0, %v3412
      %v3414 = vpop.f32.mrb[0].mxu0
      %v3415 = vpop.f32.mrb[0].mxu0
      %v3416 = vadd.f32 0.0, %v3415
      %v3417 = vpop.f32.mrb[0].mxu0
      %3418 = vmatprep.mubr.bf16.mxu0 0
      %3419 = vmatmul.mubr.bf16.gmra.mrb[0].mxu0 %v3270
      %v3420 = vpop.f32.mrb[0].mxu0
      %v3421 = vadd.f32 0.0, %v3420
      %v3422 = vpop.f32.mrb[0].mxu0
      %v3423 = vpop.f32.mrb[0].mxu0
      %v3424 = vadd.f32 0.0, %v3423
      %v3425 = vpop.f32.mrb[0].mxu0
      %3426 = vmatprep.mubr.bf16.mxu0 0
      %3427 = vmatmul.mubr.bf16.gmra.mrb[0].mxu0 %v3271
      %v3428 = vpop.f32.mrb[0].mxu0
      %v3429 = vadd.f32 0.0, %v3428
      %v3430 = vpop.f32.mrb[0].mxu0
      %v3431 = vpop.f32.mrb[0].mxu0
      %v3432 = vadd.f32 0.0, %v3431
      %v3433 = vpop.f32.mrb[0].mxu0
      %3434 = vmatprep.mubr.bf16.mxu0 0
      %3435 = vmatmul.mubr.bf16.gmra.mrb[0].mxu0 %v3272
      %v3436 = vpop.f32.mrb[0].mxu0
      %v3437 = vadd.f32 0.0, %v3436
      %v3438 = vpop.f32.mrb[0].mxu0
      %v3439 = vpop.f32.mrb[0].mxu0
      %v3440 = vadd.f32 0.0, %v3439
      %v3441 = vpop.f32.mrb[0].mxu0
      %3442 = vmatprep.mubr.bf16.mxu0 0
      %3443 = vmatmul.mubr.bf16.gmra.mrb[0].mxu0 %v3273
      %v3444 = vpop.f32.mrb[0].mxu0
      %v3445 = vadd.f32 0.0, %v3444
      %v3446 = vpop.f32.mrb[0].mxu0
      %v3447 = vpop.f32.mrb[0].mxu0
      %v3448 = vadd.f32 0.0, %v3447
      %v3449 = vpop.f32.mrb[0].mxu0
      %3450 = vmatprep.mubr.bf16.mxu0 0
      %3451 = vmatmul.mubr.bf16.gmra.mrb[0].mxu0 %v3274
      %v3452 = vpop.f32.mrb[0].mxu0
      %v3453 = vadd.f32 0.0, %v3452
      %v3454 = vpop.f32.mrb[0].mxu0
      %v3455 = vpop.f32.mrb[0].mxu0
      %v3456 = vadd.f32 0.0, %v3455
      %v3457 = vpop.f32.mrb[0].mxu0
      %3458 = vmatprep.mubr.bf16.mxu0 0
      %3459 = vmatmul.mubr.bf16.gmra.mrb[0].mxu0 %v3275
      %v3460 = vpop.f32.mrb[0].mxu0
      %v3461 = vadd.f32 0.0, %v3460
      %v3462 = vpop.f32.mrb[0].mxu0
      %v3463 = vpop.f32.mrb[0].mxu0
      %v3464 = vadd.f32 0.0, %v3463
      %v3465 = vpop.f32.mrb[0].mxu0
      %3466 = vmatprep.mubr.bf16.mxu0 0
      %3467 = vmatmul.mubr.bf16.gmra.mrb[0].mxu0 %v3276
      %v3468 = vpop.f32.mrb[0].mxu0
      %v3469 = vadd.f32 0.0, %v3468
      %v3470 = vpop.f32.mrb[0].mxu0
      %v3471 = vpop.f32.mrb[0].mxu0
      %v3472 = vadd.f32 0.0, %v3471
      %v3473 = vpop.f32.mrb[0].mxu0
      %3474 = vmatprep.mubr.bf16.mxu0 0
      %3475 = vmatmul.mubr.bf16.gmra.mrb[0].mxu0 %v3277
      %v3476 = vpop.f32.mrb[0].mxu0
      %v3477 = vadd.f32 0.0, %v3476
      %v3478 = vpop.f32.mrb[0].mxu0
      %v3479 = vpop.f32.mrb[0].mxu0
      %v3480 = vadd.f32 0.0, %v3479
      %v3481 = vpop.f32.mrb[0].mxu0
      %3482 = vmatprep.mubr.bf16.mxu0 0
      %3483 = vmatmul.mubr.bf16.gmra.mrb[0].mxu0 %v3278
      %v3484 = vpop.f32.mrb[0].mxu0
      %v3485 = vadd.f32 0.0, %v3484
      %v3486 = vpop.f32.mrb[0].mxu0
      %v3487 = vpop.f32.mrb[0].mxu0
      %v3488 = vadd.f32 0.0, %v3487
      %v3489 = vpop.f32.mrb[0].mxu0
      %3490 = vmatprep.mubr.bf16.mxu0 0
      %3491 = vmatmul.mubr.bf16.gmra.mrb[0].mxu0 %v3279
      %v3492 = vpop.f32.mrb[0].mxu0
      %v3493 = vadd.f32 0.0, %v3492
      %v3494 = vpop.f32.mrb[0].mxu0
      %v3495 = vpop.f32.mrb[0].mxu0
      %v3496 = vadd.f32 0.0, %v3495
      %v3497 = vpop.f32.mrb[0].mxu0
      %3498 = vmatprep.mubr.bf16.mxu0 0
      %3499 = vmatmul.mubr.bf16.gmra.mrb[0].mxu0 %v3280
      %v3500 = vpop.f32.mrb[0].mxu0
      %v3501 = vadd.f32 0.0, %v3500
      %v3502 = vpop.f32.mrb[0].mxu0
      %v3503 = vpop.f32.mrb[0].mxu0
      %v3504 = vadd.f32 0.0, %v3503
      %v3505 = vpop.f32.mrb[0].mxu0
      %3506 = vdwg.mxu0
      %v3507 = vadd.f32 %v3201, %v3381
      %v3508 = vadd.f32 %v3202, %v3384
      %v3509 = vadd.f32 %v3203, %v3389
      %v3510 = vadd.f32 %v3204, %v3392
      %v3511 = vadd.f32 %v3205, %v3397
      %v3512 = vadd.f32 %v3206, %v3400
      %v3513 = vadd.f32 %v3207, %v3405
      %v3514 = vadd.f32 %v3208, %v3408
      %v3515 = vadd.f32 %v3209, %v3413
      %v3516 = vadd.f32 %v3210, %v3416
      %v3517 = vadd.f32 %v3211, %v3421
      %v3518 = vadd.f32 %v3212, %v3424
      %v3519 = vadd.f32 %v3213, %v3429
      %v3520 = vadd.f32 %v3214, %v3432
      %v3521 = vadd.f32 %v3215, %v3437
      %v3522 = vadd.f32 %v3216, %v3440
      %v3523 = vadd.f32 %v3217, %v3445
      %v3524 = vadd.f32 %v3218, %v3448
      %v3525 = vadd.f32 %v3219, %v3453
      %v3526 = vadd.f32 %v3220, %v3456
      %v3527 = vadd.f32 %v3221, %v3461
      %v3528 = vadd.f32 %v3222, %v3464
      %v3529 = vadd.f32 %v3223, %v3469
      %v3530 = vadd.f32 %v3224, %v3472
      %v3531 = vadd.f32 %v3225, %v3477
      %v3532 = vadd.f32 %v3226, %v3480
      %v3533 = vadd.f32 %v3227, %v3485
      %v3534 = vadd.f32 %v3228, %v3488
      %v3535 = vadd.f32 %v3229, %v3493
      %v3536 = vadd.f32 %v3230, %v3496
      %v3537 = vadd.f32 %v3231, %v3501
      %v3538 = vadd.f32 %v3232, %v3504
      %v3539 = vld [vmem:[%s5] sm:$0x1]
      %v3541 = vlaneseq
      %v3542 = vshrl.u32 %v3541, 7
      %v3543 = vsub.s32 0, %v3542
      %v3544 = vrot.slane %v3539, %v3543
      %v3546 = vmul.f32 %v3507, %v3544
      %v3547 = vmul.f32 %v3508, %v3544
      %v3548 = vmul.f32 %v3509, %v3544
      %v3549 = vmul.f32 %v3510, %v3544
      %v3550 = vmul.f32 %v3511, %v3544
      %v3551 = vmul.f32 %v3512, %v3544
      %v3552 = vmul.f32 %v3513, %v3544
      %v3553 = vmul.f32 %v3514, %v3544
      %v3554 = vmul.f32 %v3515, %v3544
      %v3555 = vmul.f32 %v3516, %v3544
      %v3556 = vmul.f32 %v3517, %v3544
      %v3557 = vmul.f32 %v3518, %v3544
      %v3558 = vmul.f32 %v3519, %v3544
      %v3559 = vmul.f32 %v3520, %v3544
      %v3560 = vmul.f32 %v3521, %v3544
      %v3561 = vmul.f32 %v3522, %v3544
      %v3562 = vmul.f32 %v3523, %v3544
      %v3563 = vmul.f32 %v3524, %v3544
      %v3564 = vmul.f32 %v3525, %v3544
      %v3565 = vmul.f32 %v3526, %v3544
      %v3566 = vmul.f32 %v3527, %v3544
      %v3567 = vmul.f32 %v3528, %v3544
      %v3568 = vmul.f32 %v3529, %v3544
      %v3569 = vmul.f32 %v3530, %v3544
      %v3570 = vmul.f32 %v3531, %v3544
      %v3571 = vmul.f32 %v3532, %v3544
      %v3572 = vmul.f32 %v3533, %v3544
      %v3573 = vmul.f32 %v3534, %v3544
      %v3574 = vmul.f32 %v3535, %v3544
      %v3575 = vmul.f32 %v3536, %v3544
      %v3576 = vmul.f32 %v3537, %v3544
      %v3577 = vmul.f32 %v3538, %v3544
      %v3578 = vld [vmem:[%s6] sm:$0x1]
      %v3580 = vlaneseq
      %v3581 = vshrl.u32 %v3580, 7
      %v3582 = vsub.s32 0, %v3581
      %v3583 = vrot.slane %v3578, %v3582
      %v3585 = vadd.f32 %v3546, %v3583
      %v3586 = vadd.f32 %v3547, %v3583
      %v3587 = vadd.f32 %v3548, %v3583
      %v3588 = vadd.f32 %v3549, %v3583
      %v3589 = vadd.f32 %v3550, %v3583
      %v3590 = vadd.f32 %v3551, %v3583
      %v3591 = vadd.f32 %v3552, %v3583
      %v3592 = vadd.f32 %v3553, %v3583
      %v3593 = vadd.f32 %v3554, %v3583
      %v3594 = vadd.f32 %v3555, %v3583
      %v3595 = vadd.f32 %v3556, %v3583
      %v3596 = vadd.f32 %v3557, %v3583
      %v3597 = vadd.f32 %v3558, %v3583
      %v3598 = vadd.f32 %v3559, %v3583
      %v3599 = vadd.f32 %v3560, %v3583
      %v3600 = vadd.f32 %v3561, %v3583
      %v3601 = vadd.f32 %v3562, %v3583
      %v3602 = vadd.f32 %v3563, %v3583
      %v3603 = vadd.f32 %v3564, %v3583
      %v3604 = vadd.f32 %v3565, %v3583
      %v3605 = vadd.f32 %v3566, %v3583
      %v3606 = vadd.f32 %v3567, %v3583
      %v3607 = vadd.f32 %v3568, %v3583
      %v3608 = vadd.f32 %v3569, %v3583
      %v3609 = vadd.f32 %v3570, %v3583
      %v3610 = vadd.f32 %v3571, %v3583
      %v3611 = vadd.f32 %v3572, %v3583
      %v3612 = vadd.f32 %v3573, %v3583
      %v3613 = vadd.f32 %v3574, %v3583
      %v3614 = vadd.f32 %v3575, %v3583
      %v3615 = vadd.f32 %v3576, %v3583
      %v3616 = vadd.f32 %v3577, %v3583
      %v3617 = vmax.f32 %v3585, 0.0
      %v3618 = vmax.f32 %v3586, 0.0
      %v3619 = vmax.f32 %v3587, 0.0
      %v3620 = vmax.f32 %v3588, 0.0
      %v3621 = vmax.f32 %v3589, 0.0
      %v3622 = vmax.f32 %v3590, 0.0
      %v3623 = vmax.f32 %v3591, 0.0
      %v3624 = vmax.f32 %v3592, 0.0
      %v3625 = vmax.f32 %v3593, 0.0
      %v3626 = vmax.f32 %v3594, 0.0
      %v3627 = vmax.f32 %v3595, 0.0
      %v3628 = vmax.f32 %v3596, 0.0
      %v3629 = vmax.f32 %v3597, 0.0
      %v3630 = vmax.f32 %v3598, 0.0
      %v3631 = vmax.f32 %v3599, 0.0
      %v3632 = vmax.f32 %v3600, 0.0
      %v3633 = vmax.f32 %v3601, 0.0
      %v3634 = vmax.f32 %v3602, 0.0
      %v3635 = vmax.f32 %v3603, 0.0
      %v3636 = vmax.f32 %v3604, 0.0
      %v3637 = vmax.f32 %v3605, 0.0
      %v3638 = vmax.f32 %v3606, 0.0
      %v3639 = vmax.f32 %v3607, 0.0
      %v3640 = vmax.f32 %v3608, 0.0
      %v3641 = vmax.f32 %v3609, 0.0
      %v3642 = vmax.f32 %v3610, 0.0
      %v3643 = vmax.f32 %v3611, 0.0
      %v3644 = vmax.f32 %v3612, 0.0
      %v3645 = vmax.f32 %v3613, 0.0
      %v3646 = vmax.f32 %v3614, 0.0
      %v3647 = vmax.f32 %v3615, 0.0
      %v3648 = vmax.f32 %v3616, 0.0
      %v3649 = vpack.c.bf16 %v3618, %v3617
      %v3650 = vpack.c.bf16 %v3620, %v3619
      %v3651 = vpack.c.bf16 %v3622, %v3621
      %v3652 = vpack.c.bf16 %v3624, %v3623
      %v3653 = vpack.c.bf16 %v3626, %v3625
      %v3654 = vpack.c.bf16 %v3628, %v3627
      %v3655 = vpack.c.bf16 %v3630, %v3629
      %v3656 = vpack.c.bf16 %v3632, %v3631
      %v3657 = vpack.c.bf16 %v3634, %v3633
      %v3658 = vpack.c.bf16 %v3636, %v3635
      %v3659 = vpack.c.bf16 %v3638, %v3637
      %v3660 = vpack.c.bf16 %v3640, %v3639
      %v3661 = vpack.c.bf16 %v3642, %v3641
      %v3662 = vpack.c.bf16 %v3644, %v3643
      %v3663 = vpack.c.bf16 %v3646, %v3645
      %v3664 = vpack.c.bf16 %v3648, %v3647
      %v3665 = vld [vmem:[%s7] sm:$0xf]
      %v3666 = vld [vmem:[%s7 + $0x4] sm:$0xf]
      %v3667 = vld [vmem:[%s7 + $0x8] sm:$0xf]
      %v3668 = vld [vmem:[%s7 + $0xc] sm:$0xf]
      %v3669 = vld [vmem:[%s7 + $0x10] sm:$0xf]
      %v3670 = vld [vmem:[%s7 + $0x14] sm:$0xf]
      %v3671 = vld [vmem:[%s7 + $0x18] sm:$0xf]
      %v3672 = vld [vmem:[%s7 + $0x1c] sm:$0xf]
      %v3673 = vld [vmem:[%s7 + $0x20] sm:$0xf]
      %v3674 = vld [vmem:[%s7 + $0x24] sm:$0xf]
      %v3675 = vld [vmem:[%s7 + $0x28] sm:$0xf]
      %v3676 = vld [vmem:[%s7 + $0x2c] sm:$0xf]
      %v3677 = vld [vmem:[%s7 + $0x30] sm:$0xf]
      %v3678 = vld [vmem:[%s7 + $0x34] sm:$0xf]
      %v3679 = vld [vmem:[%s7 + $0x38] sm:$0xf]
      %v3680 = vld [vmem:[%s7 + $0x3c] sm:$0xf]
      %v3697 = vunpack.c.l.b16 %v3665
      %v3698 = vunpack.c.l.b16 %v3666
      %v3699 = vunpack.c.l.b16 %v3667
      %v3700 = vunpack.c.l.b16 %v3668
      %v3701 = vunpack.c.l.b16 %v3669
      %v3702 = vunpack.c.l.b16 %v3670
      %v3703 = vunpack.c.l.b16 %v3671
      %v3704 = vunpack.c.l.b16 %v3672
      %v3705 = vunpack.c.l.b16 %v3673
      %v3706 = vunpack.c.l.b16 %v3674
      %v3707 = vunpack.c.l.b16 %v3675
      %v3708 = vunpack.c.l.b16 %v3676
      %v3709 = vunpack.c.l.b16 %v3677
      %v3710 = vunpack.c.l.b16 %v3678
      %v3711 = vunpack.c.l.b16 %v3679
      %v3712 = vunpack.c.l.b16 %v3680
      %v3713 = vpack.c.b16 %v3698, %v3697
      %v3714 = vpack.c.b16 %v3700, %v3699
      %v3715 = vpack.c.b16 %v3702, %v3701
      %v3716 = vpack.c.b16 %v3704, %v3703
      %v3717 = vpack.c.b16 %v3706, %v3705
      %v3718 = vpack.c.b16 %v3708, %v3707
      %v3719 = vpack.c.b16 %v3710, %v3709
      %v3720 = vpack.c.b16 %v3712, %v3711
      %3729 = vmatprep.subr.bf16.mxu0 0
      %3730 = vmatpush1.bf16.msra.mxu0 %v3713
      %3731 = vmatprep.subr.bf16.mxu0 0
      %3732 = vmatpush1.bf16.msra.mxu0 %v3714
      %3733 = vmatprep.subr.bf16.mxu0 0
      %3734 = vmatpush1.bf16.msra.mxu0 %v3715
      %3735 = vmatprep.subr.bf16.mxu0 0
      %3736 = vmatpush1.bf16.msra.mxu0 %v3716
      %3737 = vmatprep.subr.bf16.mxu0 0
      %3738 = vmatpush1.bf16.msra.mxu0 %v3717
      %3739 = vmatprep.subr.bf16.mxu0 0
      %3740 = vmatpush1.bf16.msra.mxu0 %v3718
      %3741 = vmatprep.subr.bf16.mxu0 0
      %3742 = vmatpush1.bf16.msra.mxu0 %v3719
      %3743 = vmatprep.subr.bf16.mxu0 0
      %3744 = vmatpush1.bf16.msra.mxu0 %v3720
      %3745 = vmatprep.subr.bf16.mxu0 0
      %3746 = vmatpush1.bf16.msra.mxu0 0
      %3747 = vmatprep.subr.bf16.mxu0 0
      %3748 = vmatpush1.bf16.msra.mxu0 0
      %3749 = vmatprep.subr.bf16.mxu0 0
      %3750 = vmatpush1.bf16.msra.mxu0 0
      %3751 = vmatprep.subr.bf16.mxu0 0
      %3752 = vmatpush1.bf16.msra.mxu0 0
      %3753 = vmatprep.subr.bf16.mxu0 0
      %3754 = vmatpush1.bf16.msra.mxu0 0
      %3755 = vmatprep.subr.bf16.mxu0 0
      %3756 = vmatpush1.bf16.msra.mxu0 0
      %3757 = vmatprep.subr.bf16.mxu0 0
      %3758 = vmatpush1.bf16.msra.mxu0 0
      %3759 = vmatprep.subr.bf16.mxu0 0
      %3760 = vmatpush1.bf16.msra.mxu0 0
      %3761 = vmatprep.mubr.bf16.mxu0 0
      %3762 = vmatmul.mubr.bf16.gmra.mrb[0].mxu0 %v3649
      %v3763 = vpop.f32.mrb[0].mxu0
      %v3764 = vadd.f32 0.0, %v3763
      %v3765 = vpop.f32.mrb[0].mxu0
      %v3766 = vpop.f32.mrb[0].mxu0
      %v3767 = vadd.f32 0.0, %v3766
      %v3768 = vpop.f32.mrb[0].mxu0
      %3769 = vmatprep.mubr.bf16.mxu0 0
      %3770 = vmatmul.mubr.bf16.gmra.mrb[0].mxu0 %v3650
      %v3771 = vpop.f32.mrb[0].mxu0
      %v3772 = vadd.f32 0.0, %v3771
      %v3773 = vpop.f32.mrb[0].mxu0
      %v3774 = vpop.f32.mrb[0].mxu0
      %v3775 = vadd.f32 0.0, %v3774
      %v3776 = vpop.f32.mrb[0].mxu0
      %3777 = vmatprep.mubr.bf16.mxu0 0
      %3778 = vmatmul.mubr.bf16.gmra.mrb[0].mxu0 %v3651
      %v3779 = vpop.f32.mrb[0].mxu0
      %v3780 = vadd.f32 0.0, %v3779
      %v3781 = vpop.f32.mrb[0].mxu0
      %v3782 = vpop.f32.mrb[0].mxu0
      %v3783 = vadd.f32 0.0, %v3782
      %v3784 = vpop.f32.mrb[0].mxu0
      %3785 = vmatprep.mubr.bf16.mxu0 0
      %3786 = vmatmul.mubr.bf16.gmra.mrb[0].mxu0 %v3652
      %v3787 = vpop.f32.mrb[0].mxu0
      %v3788 = vadd.f32 0.0, %v3787
      %v3789 = vpop.f32.mrb[0].mxu0
      %v3790 = vpop.f32.mrb[0].mxu0
      %v3791 = vadd.f32 0.0, %v3790
      %v3792 = vpop.f32.mrb[0].mxu0
      %3793 = vmatprep.mubr.bf16.mxu0 0
      %3794 = vmatmul.mubr.bf16.gmra.mrb[0].mxu0 %v3653
      %v3795 = vpop.f32.mrb[0].mxu0
      %v3796 = vadd.f32 0.0, %v3795
      %v3797 = vpop.f32.mrb[0].mxu0
      %v3798 = vpop.f32.mrb[0].mxu0
      %v3799 = vadd.f32 0.0, %v3798
      %v3800 = vpop.f32.mrb[0].mxu0
      %3801 = vmatprep.mubr.bf16.mxu0 0
      %3802 = vmatmul.mubr.bf16.gmra.mrb[0].mxu0 %v3654
      %v3803 = vpop.f32.mrb[0].mxu0
      %v3804 = vadd.f32 0.0, %v3803
      %v3805 = vpop.f32.mrb[0].mxu0
      %v3806 = vpop.f32.mrb[0].mxu0
      %v3807 = vadd.f32 0.0, %v3806
      %v3808 = vpop.f32.mrb[0].mxu0
      %3809 = vmatprep.mubr.bf16.mxu0 0
      %3810 = vmatmul.mubr.bf16.gmra.mrb[0].mxu0 %v3655
      %v3811 = vpop.f32.mrb[0].mxu0
      %v3812 = vadd.f32 0.0, %v3811
      %v3813 = vpop.f32.mrb[0].mxu0
      %v3814 = vpop.f32.mrb[0].mxu0
      %v3815 = vadd.f32 0.0, %v3814
      %v3816 = vpop.f32.mrb[0].mxu0
      %3817 = vmatprep.mubr.bf16.mxu0 0
      %3818 = vmatmul.mubr.bf16.gmra.mrb[0].mxu0 %v3656
      %v3819 = vpop.f32.mrb[0].mxu0
      %v3820 = vadd.f32 0.0, %v3819
      %v3821 = vpop.f32.mrb[0].mxu0
      %v3822 = vpop.f32.mrb[0].mxu0
      %v3823 = vadd.f32 0.0, %v3822
      %v3824 = vpop.f32.mrb[0].mxu0
      %3825 = vmatprep.mubr.bf16.mxu0 0
      %3826 = vmatmul.mubr.bf16.gmra.mrb[0].mxu0 %v3657
      %v3827 = vpop.f32.mrb[0].mxu0
      %v3828 = vadd.f32 0.0, %v3827
      %v3829 = vpop.f32.mrb[0].mxu0
      %v3830 = vpop.f32.mrb[0].mxu0
      %v3831 = vadd.f32 0.0, %v3830
      %v3832 = vpop.f32.mrb[0].mxu0
      %3833 = vmatprep.mubr.bf16.mxu0 0
      %3834 = vmatmul.mubr.bf16.gmra.mrb[0].mxu0 %v3658
      %v3835 = vpop.f32.mrb[0].mxu0
      %v3836 = vadd.f32 0.0, %v3835
      %v3837 = vpop.f32.mrb[0].mxu0
      %v3838 = vpop.f32.mrb[0].mxu0
      %v3839 = vadd.f32 0.0, %v3838
      %v3840 = vpop.f32.mrb[0].mxu0
      %3841 = vmatprep.mubr.bf16.mxu0 0
      %3842 = vmatmul.mubr.bf16.gmra.mrb[0].mxu0 %v3659
      %v3843 = vpop.f32.mrb[0].mxu0
      %v3844 = vadd.f32 0.0, %v3843
      %v3845 = vpop.f32.mrb[0].mxu0
      %v3846 = vpop.f32.mrb[0].mxu0
      %v3847 = vadd.f32 0.0, %v3846
      %v3848 = vpop.f32.mrb[0].mxu0
      %3849 = vmatprep.mubr.bf16.mxu0 0
      %3850 = vmatmul.mubr.bf16.gmra.mrb[0].mxu0 %v3660
      %v3851 = vpop.f32.mrb[0].mxu0
      %v3852 = vadd.f32 0.0, %v3851
      %v3853 = vpop.f32.mrb[0].mxu0
      %v3854 = vpop.f32.mrb[0].mxu0
      %v3855 = vadd.f32 0.0, %v3854
      %v3856 = vpop.f32.mrb[0].mxu0
      %3857 = vmatprep.mubr.bf16.mxu0 0
      %3858 = vmatmul.mubr.bf16.gmra.mrb[0].mxu0 %v3661
      %v3859 = vpop.f32.mrb[0].mxu0
      %v3860 = vadd.f32 0.0, %v3859
      %v3861 = vpop.f32.mrb[0].mxu0
      %v3862 = vpop.f32.mrb[0].mxu0
      %v3863 = vadd.f32 0.0, %v3862
      %v3864 = vpop.f32.mrb[0].mxu0
      %3865 = vmatprep.mubr.bf16.mxu0 0
      %3866 = vmatmul.mubr.bf16.gmra.mrb[0].mxu0 %v3662
      %v3867 = vpop.f32.mrb[0].mxu0
      %v3868 = vadd.f32 0.0, %v3867
      %v3869 = vpop.f32.mrb[0].mxu0
      %v3870 = vpop.f32.mrb[0].mxu0
      %v3871 = vadd.f32 0.0, %v3870
      %v3872 = vpop.f32.mrb[0].mxu0
      %3873 = vmatprep.mubr.bf16.mxu0 0
      %3874 = vmatmul.mubr.bf16.gmra.mrb[0].mxu0 %v3663
      %v3875 = vpop.f32.mrb[0].mxu0
      %v3876 = vadd.f32 0.0, %v3875
      %v3877 = vpop.f32.mrb[0].mxu0
      %v3878 = vpop.f32.mrb[0].mxu0
      %v3879 = vadd.f32 0.0, %v3878
      %v3880 = vpop.f32.mrb[0].mxu0
      %3881 = vmatprep.mubr.bf16.mxu0 0
      %3882 = vmatmul.mubr.bf16.gmra.mrb[0].mxu0 %v3664
      %v3883 = vpop.f32.mrb[0].mxu0
      %v3884 = vadd.f32 0.0, %v3883
      %v3885 = vpop.f32.mrb[0].mxu0
      %v3886 = vpop.f32.mrb[0].mxu0
      %v3887 = vadd.f32 0.0, %v3886
      %v3888 = vpop.f32.mrb[0].mxu0
      %3889 = vdwg.mxu0
      %v3890 = vld [vmem:[%s8] sm:$0x1]
      %v3892 = vlaneseq
      %v3893 = vshrl.u32 %v3892, 7
      %v3894 = vsub.s32 0, %v3893
      %v3895 = vrot.slane %v3890, %v3894
      %v3897 = vmul.f32 %v3764, %v3895
      %v3898 = vmul.f32 %v3767, %v3895
      %v3899 = vmul.f32 %v3772, %v3895
      %v3900 = vmul.f32 %v3775, %v3895
      %v3901 = vmul.f32 %v3780, %v3895
      %v3902 = vmul.f32 %v3783, %v3895
      %v3903 = vmul.f32 %v3788, %v3895
      %v3904 = vmul.f32 %v3791, %v3895
      %v3905 = vmul.f32 %v3796, %v3895
      %v3906 = vmul.f32 %v3799, %v3895
      %v3907 = vmul.f32 %v3804, %v3895
      %v3908 = vmul.f32 %v3807, %v3895
      %v3909 = vmul.f32 %v3812, %v3895
      %v3910 = vmul.f32 %v3815, %v3895
      %v3911 = vmul.f32 %v3820, %v3895
      %v3912 = vmul.f32 %v3823, %v3895
      %v3913 = vmul.f32 %v3828, %v3895
      %v3914 = vmul.f32 %v3831, %v3895
      %v3915 = vmul.f32 %v3836, %v3895
      %v3916 = vmul.f32 %v3839, %v3895
      %v3917 = vmul.f32 %v3844, %v3895
      %v3918 = vmul.f32 %v3847, %v3895
      %v3919 = vmul.f32 %v3852, %v3895
      %v3920 = vmul.f32 %v3855, %v3895
      %v3921 = vmul.f32 %v3860, %v3895
      %v3922 = vmul.f32 %v3863, %v3895
      %v3923 = vmul.f32 %v3868, %v3895
      %v3924 = vmul.f32 %v3871, %v3895
      %v3925 = vmul.f32 %v3876, %v3895
      %v3926 = vmul.f32 %v3879, %v3895
      %v3927 = vmul.f32 %v3884, %v3895
      %v3928 = vmul.f32 %v3887, %v3895
      %v3929 = vld [vmem:[%s9] sm:$0x1]
      %v3931 = vlaneseq
      %v3932 = vshrl.u32 %v3931, 7
      %v3933 = vsub.s32 0, %v3932
      %v3934 = vrot.slane %v3929, %v3933
      %v3936 = vadd.f32 %v3897, %v3934
      %v3937 = vadd.f32 %v3898, %v3934
      %v3938 = vadd.f32 %v3899, %v3934
      %v3939 = vadd.f32 %v3900, %v3934
      %v3940 = vadd.f32 %v3901, %v3934
      %v3941 = vadd.f32 %v3902, %v3934
      %v3942 = vadd.f32 %v3903, %v3934
      %v3943 = vadd.f32 %v3904, %v3934
      %v3944 = vadd.f32 %v3905, %v3934
      %v3945 = vadd.f32 %v3906, %v3934
      %v3946 = vadd.f32 %v3907, %v3934
      %v3947 = vadd.f32 %v3908, %v3934
      %v3948 = vadd.f32 %v3909, %v3934
      %v3949 = vadd.f32 %v3910, %v3934
      %v3950 = vadd.f32 %v3911, %v3934
      %v3951 = vadd.f32 %v3912, %v3934
      %v3952 = vadd.f32 %v3913, %v3934
      %v3953 = vadd.f32 %v3914, %v3934
      %v3954 = vadd.f32 %v3915, %v3934
      %v3955 = vadd.f32 %v3916, %v3934
      %v3956 = vadd.f32 %v3917, %v3934
      %v3957 = vadd.f32 %v3918, %v3934
      %v3958 = vadd.f32 %v3919, %v3934
      %v3959 = vadd.f32 %v3920, %v3934
      %v3960 = vadd.f32 %v3921, %v3934
      %v3961 = vadd.f32 %v3922, %v3934
      %v3962 = vadd.f32 %v3923, %v3934
      %v3963 = vadd.f32 %v3924, %v3934
      %v3964 = vadd.f32 %v3925, %v3934
      %v3965 = vadd.f32 %v3926, %v3934
      %v3966 = vadd.f32 %v3927, %v3934
      %v3967 = vadd.f32 %v3928, %v3934
      %v3968 = vadd.f32 %v3936, %v361
      %v3969 = vadd.f32 %v3937, %v362
      %v3970 = vadd.f32 %v3938, %v363
      %v3971 = vadd.f32 %v3939, %v364
      %v3972 = vadd.f32 %v3940, %v365
      %v3973 = vadd.f32 %v3941, %v366
      %v3974 = vadd.f32 %v3942, %v367
      %v3975 = vadd.f32 %v3943, %v368
      %v3976 = vadd.f32 %v3944, %v369
      %v3977 = vadd.f32 %v3945, %v370
      %v3978 = vadd.f32 %v3946, %v371
      %v3979 = vadd.f32 %v3947, %v372
      %v3980 = vadd.f32 %v3948, %v373
      %v3981 = vadd.f32 %v3949, %v374
      %v3982 = vadd.f32 %v3950, %v375
      %v3983 = vadd.f32 %v3951, %v376
      %v3984 = vadd.f32 %v3952, %v377
      %v3985 = vadd.f32 %v3953, %v378
      %v3986 = vadd.f32 %v3954, %v379
      %v3987 = vadd.f32 %v3955, %v380
      %v3988 = vadd.f32 %v3956, %v381
      %v3989 = vadd.f32 %v3957, %v382
      %v3990 = vadd.f32 %v3958, %v383
      %v3991 = vadd.f32 %v3959, %v384
      %v3992 = vadd.f32 %v3960, %v385
      %v3993 = vadd.f32 %v3961, %v386
      %v3994 = vadd.f32 %v3962, %v387
      %v3995 = vadd.f32 %v3963, %v388
      %v3996 = vadd.f32 %v3964, %v389
      %v3997 = vadd.f32 %v3965, %v390
      %v3998 = vadd.f32 %v3966, %v391
      %v3999 = vadd.f32 %v3967, %v392
      %v4000 = vmax.f32 %v3968, 0.0
      %v4001 = vmax.f32 %v3969, 0.0
      %v4002 = vmax.f32 %v3970, 0.0
      %v4003 = vmax.f32 %v3971, 0.0
      %v4004 = vmax.f32 %v3972, 0.0
      %v4005 = vmax.f32 %v3973, 0.0
      %v4006 = vmax.f32 %v3974, 0.0
      %v4007 = vmax.f32 %v3975, 0.0
      %v4008 = vmax.f32 %v3976, 0.0
      %v4009 = vmax.f32 %v3977, 0.0
      %v4010 = vmax.f32 %v3978, 0.0
      %v4011 = vmax.f32 %v3979, 0.0
      %v4012 = vmax.f32 %v3980, 0.0
      %v4013 = vmax.f32 %v3981, 0.0
      %v4014 = vmax.f32 %v3982, 0.0
      %v4015 = vmax.f32 %v3983, 0.0
      %v4016 = vmax.f32 %v3984, 0.0
      %v4017 = vmax.f32 %v3985, 0.0
      %v4018 = vmax.f32 %v3986, 0.0
      %v4019 = vmax.f32 %v3987, 0.0
      %v4020 = vmax.f32 %v3988, 0.0
      %v4021 = vmax.f32 %v3989, 0.0
      %v4022 = vmax.f32 %v3990, 0.0
      %v4023 = vmax.f32 %v3991, 0.0
      %v4024 = vmax.f32 %v3992, 0.0
      %v4025 = vmax.f32 %v3993, 0.0
      %v4026 = vmax.f32 %v3994, 0.0
      %v4027 = vmax.f32 %v3995, 0.0
      %v4028 = vmax.f32 %v3996, 0.0
      %v4029 = vmax.f32 %v3997, 0.0
      %v4030 = vmax.f32 %v3998, 0.0
      %v4031 = vmax.f32 %v3999, 0.0
      %4032 = vst [vmem:[%s359] sm:$0xff] %v4000
      %4033 = vst [vmem:[%s359 + $0x8] sm:$0xff] %v4001
      %4034 = vst [vmem:[%s359 + $0x10] sm:$0xff] %v4002
      %4035 = vst [vmem:[%s359 + $0x18] sm:$0xff] %v4003
      %4036 = vst [vmem:[%s359 + $0x20] sm:$0xff] %v4004
      %4037 = vst [vmem:[%s359 + $0x28] sm:$0xff] %v4005
      %4038 = vst [vmem:[%s359 + $0x30] sm:$0xff] %v4006
      %4039 = vst [vmem:[%s359 + $0x38] sm:$0xff] %v4007
      %4040 = vst [vmem:[%s359 + $0x40] sm:$0xff] %v4008
      %4041 = vst [vmem:[%s359 + $0x48] sm:$0xff] %v4009
      %4042 = vst [vmem:[%s359 + $0x50] sm:$0xff] %v4010
      %4043 = vst [vmem:[%s359 + $0x58] sm:$0xff] %v4011
      %4044 = vst [vmem:[%s359 + $0x60] sm:$0xff] %v4012
      %4045 = vst [vmem:[%s359 + $0x68] sm:$0xff] %v4013
      %4046 = vst [vmem:[%s359 + $0x70] sm:$0xff] %v4014
      %4047 = vst [vmem:[%s359 + $0x78] sm:$0xff] %v4015
      %4048 = vst [vmem:[%s359 + $0x80] sm:$0xff] %v4016
      %4049 = vst [vmem:[%s359 + $0x88] sm:$0xff] %v4017
      %4050 = vst [vmem:[%s359 + $0x90] sm:$0xff] %v4018
      %4051 = vst [vmem:[%s359 + $0x98] sm:$0xff] %v4019
      %4052 = vst [vmem:[%s359 + $0xa0] sm:$0xff] %v4020
      %4053 = vst [vmem:[%s359 + $0xa8] sm:$0xff] %v4021
      %4054 = vst [vmem:[%s359 + $0xb0] sm:$0xff] %v4022
      %4055 = vst [vmem:[%s359 + $0xb8] sm:$0xff] %v4023
      %4056 = vst [vmem:[%s359 + $0xc0] sm:$0xff] %v4024
      %4057 = vst [vmem:[%s359 + $0xc8] sm:$0xff] %v4025
      %4058 = vst [vmem:[%s359 + $0xd0] sm:$0xff] %v4026
      %4059 = vst [vmem:[%s359 + $0xd8] sm:$0xff] %v4027
      %4060 = vst [vmem:[%s359 + $0xe0] sm:$0xff] %v4028
      %4061 = vst [vmem:[%s359 + $0xe8] sm:$0xff] %v4029
      %4062 = vst [vmem:[%s359 + $0xf0] sm:$0xff] %v4030
      %4063 = vst [vmem:[%s359 + $0xf8] sm:$0xff] %v4031
      %p4064 = scmp.lt.s32.totalorder %s21, 1
      %s4065 = scalar_select %p4064, %s21, 1
      %s4066 = smul.addr %s4065, 32
      %s4067 = smul.addr %s4066, 8
      %s4068 = scalar_lea.vmem %s10, %s4067
      // Predicated region
      $region61: #{bottleneck_forward.1} parent=59 // pred_check
        %p4069 = pneg %p254
      $region62: #{bottleneck_forward.1} parent=59 // pred_check_branch
        %4071 = sbr.rel (%p4069) target = $region64
      $region63: #{bottleneck_forward.1} parent=59 // pred_region
        _
      $region64: #{bottleneck_forward.1} parent=59 // pred_fallthru
        _
    $region60: #{bottleneck_forward.1} parent=5 // pred_fallthru
      _
    %p4072 = scmp.le.s32.totalorder 2, %s16
    // Predicated region
    $region65: #{bottleneck_forward.1} parent=5 // pred_check
      %p4073 = pneg %p4072
    $region66: #{bottleneck_forward.1} parent=5 // pred_check_branch
      %4075 = sbr.rel (%p4073) target = $region68
    $region67: #{bottleneck_forward.1} parent=5 // pred_region
      %s4076 = ssub.s32 %s16, 2
      // Predicated region
      $region69: #{bottleneck_forward.1} parent=67 // pred_check
        %p4077 = pneg %p260
      $region70: #{bottleneck_forward.1} parent=67 // pred_check_branch
        %4079 = sbr.rel (%p4077) target = $region72
      $region71: #{bottleneck_forward.1} parent=67 // pred_region
        %p4080 = scmp.lt.s32.totalorder %s22, 1
        %s4081 = scalar_select %p4080, %s22, 1
        %s4082 = smul.addr %s4081, 32
        %s4083 = smul.addr %s4082, 8
        %s4084 = scalar_lea.vmem %s10, %s4083
      $region72: #{bottleneck_forward.1} parent=67 // pred_fallthru
        _
    $region68: #{bottleneck_forward.1} parent=5 // pred_fallthru
      _
  $region6: #{bottleneck_forward.1} parent=0 // loop_footer
    %s20 = sadd.s32 1, %s16
  $region7: #{bottleneck_forward.1} parent=0 // loop_footer_branch
    %15 = sbr.rel target = $region3
  $region8: #{bottleneck_forward.1} parent=0 // loop_exit
    _

</llo_original>
